<compile_context>
chip_gen: v7x
topology: tpu7x:2x2x1
jax: 0.10.0
libtpu: 0.0.40
codegen_flags: <defaults>
</compile_context>

<pallas_src>
import functools

import jax
import jax.numpy as jnp
from jax import lax
from jax.experimental import pallas as pl
from jax.experimental.pallas import tpu as pltpu

EPS = 1e-5


def _round_up(x, m):
    return ((x + m - 1) // m) * m


# ------------------------- tiled matmul kernels (MXU) -------------------------

def _mm_kernel(a_ref, b_ref, o_ref, acc_ref):
    @pl.when(pl.program_id(2) == 0)
    def _():
        acc_ref[...] = jnp.zeros_like(acc_ref)

    acc_ref[...] += jnp.dot(a_ref[...].astype(jnp.bfloat16),
                            b_ref[...].astype(jnp.bfloat16),
                            preferred_element_type=jnp.float32)

    @pl.when(pl.program_id(2) == pl.num_programs(2) - 1)
    def _():
        o_ref[...] = acc_ref[...].astype(o_ref.dtype)


def _mm_affine_kernel(a_ref, s_ref, t_ref, b_ref, o_ref, acc_ref, *, relu):
    # Per-K-column affine (+relu) applied to the A tile before the dot: fuses the
    # preceding BatchNorm+ReLU into the conv matmul (no HBM materialization).
    @pl.when(pl.program_id(2) == 0)
    def _():
        acc_ref[...] = jnp.zeros_like(acc_ref)

    a = a_ref[...].astype(jnp.float32) * s_ref[...] + t_ref[...]
    if relu:
        a = jnp.maximum(a, 0.0)
    acc_ref[...] += jnp.dot(a.astype(jnp.bfloat16),
                            b_ref[...].astype(jnp.bfloat16),
                            preferred_element_type=jnp.float32)

    @pl.when(pl.program_id(2) == pl.num_programs(2) - 1)
    def _():
        o_ref[...] = acc_ref[...].astype(o_ref.dtype)


def matmul(a, b, in_scale=None, in_shift=None, in_relu=False, out_dtype=jnp.bfloat16):
    """out = (relu(a*scale+shift) if fused else a) @ b, tiled over an (M,N,K) grid."""
    M, K = a.shape
    _, N = b.shape
    tm = min(512, _round_up(M, 8))
    tn = min(256, _round_up(N, 128))   # lane-dense: always a multiple of 128
    tk = min(512, _round_up(K, 128))
    Mp, Kp, Np = _round_up(M, tm), _round_up(K, tk), _round_up(N, tn)

    a_p = jnp.pad(a, ((0, Mp - M), (0, Kp - K)))
    b_p = jnp.pad(b, ((0, Kp - K), (0, Np - N)))

    grid = (Mp // tm, Np // tn, Kp // tk)
    a_spec = pl.BlockSpec((tm, tk), lambda i, j, k: (i, k))
    b_spec = pl.BlockSpec((tk, tn), lambda i, j, k: (k, j))
    o_spec = pl.BlockSpec((tm, tn), lambda i, j, k: (i, j))
    scratch = [pltpu.VMEM((tm, tn), jnp.float32)]
    cp = pltpu.CompilerParams(
        dimension_semantics=("parallel", "parallel", "arbitrary"))

    if in_scale is None:
        out = pl.pallas_call(
            _mm_kernel,
            out_shape=jax.ShapeDtypeStruct((Mp, Np), out_dtype),
            grid_spec=pltpu.PrefetchScalarGridSpec(
                num_scalar_prefetch=0, grid=grid,
                in_specs=[a_spec, b_spec], out_specs=o_spec,
                scratch_shapes=scratch),
            compiler_params=cp,
        )(a_p, b_p)
    else:
        s_p = jnp.pad(in_scale.astype(jnp.float32).reshape(1, K), ((0, 0), (0, Kp - K)))
        t_p = jnp.pad(in_shift.astype(jnp.float32).reshape(1, K), ((0, 0), (0, Kp - K)))
        st_spec = pl.BlockSpec((1, tk), lambda i, j, k: (0, k))
        out = pl.pallas_call(
            functools.partial(_mm_affine_kernel, relu=in_relu),
            out_shape=jax.ShapeDtypeStruct((Mp, Np), out_dtype),
            grid_spec=pltpu.PrefetchScalarGridSpec(
                num_scalar_prefetch=0, grid=grid,
                in_specs=[a_spec, st_spec, st_spec, b_spec], out_specs=o_spec,
                scratch_shapes=scratch),
            compiler_params=cp,
        )(a_p, s_p, t_p, b_p)
    return out[:M, :N]


# ------------------------- tiled sum / sum-of-squares reduction -------------------------

def _stats_kernel(x_ref, sum_ref, ssq_ref):
    @pl.when(pl.program_id(0) == 0)
    def _():
        sum_ref[...] = jnp.zeros_like(sum_ref)
        ssq_ref[...] = jnp.zeros_like(ssq_ref)

    x = x_ref[...].astype(jnp.float32)
    sum_ref[...] += jnp.sum(x, axis=1)
    ssq_ref[...] += jnp.sum(x * x, axis=1)


def group_stats(x3d):
    """x3d: (G, L, C) -> per-(g, c) sum and sum-of-squares over L, shape (G, C) f32."""
    G, L, C = x3d.shape
    Cp = _round_up(C, 128)
    tl = min(512, _round_up(L, 8))
    Lp = _round_up(L, tl)
    xp = jnp.pad(x3d, ((0, 0), (0, Lp - L), (0, Cp - C)))
    s, ss = pl.pallas_call(
        _stats_kernel,
        out_shape=(jax.ShapeDtypeStruct((G, Cp), jnp.float32),
                   jax.ShapeDtypeStruct((G, Cp), jnp.float32)),
        grid_spec=pltpu.PrefetchScalarGridSpec(
            num_scalar_prefetch=0, grid=(Lp // tl,),
            in_specs=[pl.BlockSpec((G, tl, Cp), lambda i: (0, i, 0))],
            out_specs=(pl.BlockSpec((G, Cp), lambda i: (0, 0)),
                       pl.BlockSpec((G, Cp), lambda i: (0, 0)))),
        compiler_params=pltpu.CompilerParams(dimension_semantics=("arbitrary",)),
    )(xp)
    return s[:, :C], ss[:, :C]


# ------------------------- tiled per-channel affine (+relu) -------------------------

def _affine_kernel(x_ref, s_ref, t_ref, o_ref, *, relu):
    y = x_ref[...].astype(jnp.float32) * s_ref[...] + t_ref[...]
    if relu:
        y = jnp.maximum(y, 0.0)
    o_ref[...] = y.astype(o_ref.dtype)


def bn_apply(x2d, scale, shift, relu, out_dtype=jnp.bfloat16):
    M, C = x2d.shape
    Cp = _round_up(C, 128)
    tr = min(512, _round_up(M, 8))
    Mp = _round_up(M, tr)
    xp = jnp.pad(x2d, ((0, Mp - M), (0, Cp - C)))
    sp = jnp.pad(scale.astype(jnp.float32), (0, Cp - C)).reshape(1, Cp)
    tp = jnp.pad(shift.astype(jnp.float32), (0, Cp - C)).reshape(1, Cp)
    out = pl.pallas_call(
        functools.partial(_affine_kernel, relu=relu),
        out_shape=jax.ShapeDtypeStruct((Mp, Cp), out_dtype),
        grid_spec=pltpu.PrefetchScalarGridSpec(
            num_scalar_prefetch=0, grid=(Mp // tr,),
            in_specs=[pl.BlockSpec((tr, Cp), lambda i: (i, 0)),
                      pl.BlockSpec((1, Cp), lambda i: (0, 0)),
                      pl.BlockSpec((1, Cp), lambda i: (0, 0))],
            out_specs=pl.BlockSpec((tr, Cp), lambda i: (i, 0))),
        compiler_params=pltpu.CompilerParams(dimension_semantics=("parallel",)),
    )(xp, sp, tp)
    return out[:M, :C]


# ------------------------- fused tail: bn3 * SRM-gate + bn_shortcut, then relu -------------------------

def _tail_kernel(z3_ref, zs_ref, g_ref, s3_ref, t3_ref, ss_ref, ts_ref, o_ref):
    z3 = z3_ref[...].astype(jnp.float32)
    zs = zs_ref[...].astype(jnp.float32)
    y = (z3 * s3_ref[...] + t3_ref[...]) * g_ref[...] + (zs * ss_ref[...] + ts_ref[...])
    o_ref[...] = jnp.maximum(y, 0.0)


def fused_tail(z3, zs, gate, s3, t3, ssc, tsc):
    """z3/zs: (N, L, C) raw conv outputs; gate: (N, C); scale/shift: (C,). Returns f32 (N, L, C)."""
    N, L, C = z3.shape
    Cp = _round_up(C, 128)
    tl = min(512, _round_up(L, 8))
    Lp = _round_up(L, tl)
    z3p = jnp.pad(z3, ((0, 0), (0, Lp - L), (0, Cp - C)))
    zsp = jnp.pad(zs, ((0, 0), (0, Lp - L), (0, Cp - C)))
    gp = jnp.pad(gate.astype(jnp.float32), ((0, 0), (0, Cp - C))).reshape(N, 1, Cp)

    def vec(v):
        return jnp.pad(v.astype(jnp.float32), (0, Cp - C)).reshape(1, 1, Cp)

    out = pl.pallas_call(
        _tail_kernel,
        out_shape=jax.ShapeDtypeStruct((N, Lp, Cp), jnp.float32),
        grid_spec=pltpu.PrefetchScalarGridSpec(
            num_scalar_prefetch=0, grid=(N, Lp // tl),
            in_specs=[pl.BlockSpec((1, tl, Cp), lambda n, l: (n, l, 0)),
                      pl.BlockSpec((1, tl, Cp), lambda n, l: (n, l, 0)),
                      pl.BlockSpec((1, 1, Cp), lambda n, l: (n, 0, 0)),
                      pl.BlockSpec((1, 1, Cp), lambda n, l: (0, 0, 0)),
                      pl.BlockSpec((1, 1, Cp), lambda n, l: (0, 0, 0)),
                      pl.BlockSpec((1, 1, Cp), lambda n, l: (0, 0, 0)),
                      pl.BlockSpec((1, 1, Cp), lambda n, l: (0, 0, 0))],
            out_specs=pl.BlockSpec((1, tl, Cp), lambda n, l: (n, l, 0))),
        compiler_params=pltpu.CompilerParams(dimension_semantics=("parallel", "parallel")),
    )(z3p, zsp, gp, vec(s3), vec(t3), vec(ssc), vec(tsc))
    return out[:, :L, :C]


# ------------------------- small per-channel / per-(n,c) math (XLA; tiny arrays) -------------------------

def _bn_affine(sum_c, ssq_c, count, gamma, beta):
    mean = sum_c / count
    var = jnp.maximum(ssq_c / count - mean * mean, 0.0)          # biased, BN training mode
    scale = gamma * lax.rsqrt(var + EPS)
    shift = beta - mean * scale
    return scale, shift


def _srm_gate(sum_nc, ssq_nc, hw, scale3, shift3, w2c, gamma, beta):
    # Spatial stats of raw conv3 output per (n, c), pushed through the bn3 affine.
    m = sum_nc / hw
    denom = max(hw - 1, 1)                                       # guard hw == 1 (reviewer note)
    var_u = jnp.maximum((ssq_nc - hw * m * m) / denom, 0.0)      # unbiased, as torch.std
    std = jnp.sqrt(var_u)
    mean_u = m * scale3[None, :] + shift3[None, :]
    std_u = std * jnp.abs(scale3)[None, :]
    # channel-wise Conv1d(k=2, groups=C, bias=False) over [mean, std]
    z = mean_u * w2c[0][None, :] + std_u * w2c[1][None, :]       # (N, C)
    # BatchNorm1d (training mode): normalize over the batch axis
    mz = jnp.mean(z, axis=0, keepdims=True)
    vz = jnp.mean((z - mz) ** 2, axis=0, keepdims=True)
    zn = (z - mz) * lax.rsqrt(vz + EPS) * gamma[None, :] + beta[None, :]
    return jax.nn.sigmoid(zn)                                    # (N, C)


# ------------------------- glue (rotations / im2col) -------------------------

def _rots(t):
    # torch.rot90(x, k, [2,3]) on NCHW  ==  jnp.rot90(x_nhwc, k, axes=(1,2)) on NHWC.
    return [t,
            jnp.rot90(t, 1, axes=(1, 2)),
            jnp.rot90(t, 2, axes=(1, 2)),
            jnp.rot90(t, 3, axes=(1, 2))]


def im2col_3x3(x, stride):
    # x: (N, H, W, C), padding=1, kernel=3.  Returns (N*Ho*Wo, 9*C) ordered (kh, kw, cin).
    # TODO(synk): replace with an in-kernel haloed-tile 3x3 (manual DMA + 9 shifted dots)
    # to avoid materializing the 9x-wide slab in HBM; kept as XLA glue here.
    N, H, W, C = x.shape
    xp = jnp.pad(x, ((0, 0), (1, 1), (1, 1), (0, 0)))
    Ho = (H - 1) // stride + 1
    Wo = (W - 1) // stride + 1
    cols = []
    for kh in range(3):
        for kw in range(3):
            cols.append(xp[:, kh:kh + (Ho - 1) * stride + 1:stride,
                           kw:kw + (Wo - 1) * stride + 1:stride, :])
    cols = jnp.concatenate(cols, axis=-1)
    return cols.reshape(N * Ho * Wo, 9 * C), Ho, Wo


def conv1x1_4rot(t, w_torch, stride=1, in_scale=None, in_shift=None, in_relu=False):
    """4-rotation 1x1 conv; optional fused per-channel input affine(+relu) (i.e. preceding BN)."""
    cout, cin = int(w_torch.shape[0]), int(w_torch.shape[1])
    wmat = w_torch.reshape(cout, cin).T.astype(jnp.bfloat16)     # (cin, cout)
    n, h, w_, _ = t.shape
    if stride == 1:
        # rot90 commutes with a stride-1 1x1 conv (and with per-channel pointwise ops):
        # one matmul, then rotate the narrower output four ways.
        y = matmul(t.reshape(n * h * w_, cin), wmat, in_scale, in_shift, in_relu)
        y = y.reshape(n, h, w_, cout)
        return jnp.concatenate(_rots(y), axis=-1)                # (n, h, w, 4*cout)
    # stride > 1: striding does not commute with rot90 -> batch the 4 rotations along M.
    rs = [r[:, ::stride, ::stride, :] for r in _rots(t)]
    ho, wo = rs[0].shape[1], rs[0].shape[2]
    a = jnp.stack(rs, axis=0).reshape(4 * n * ho * wo, cin)
    y = matmul(a, wmat, in_scale, in_shift, in_relu)
    y = y.reshape(4, n, ho, wo, cout)
    return jnp.transpose(y, (1, 2, 3, 0, 4)).reshape(n, ho, wo, 4 * cout)


def conv3x3_4rot(t, w_torch, stride):
    """4-rotation 3x3 conv (padding=1): im2col each rotation, one matmul over 4x-stacked M."""
    cout, cin = int(w_torch.shape[0]), int(w_torch.shape[1])
    wmat = jnp.transpose(w_torch, (2, 3, 1, 0)).reshape(9 * cin, cout).astype(jnp.bfloat16)
    n = t.shape[0]
    cols_all, ho, wo = [], None, None
    for r in _rots(t):
        cols, ho, wo = im2col_3x3(r, stride)
        cols_all.append(cols)
    a = jnp.concatenate(cols_all, axis=0)                        # (4*n*ho*wo, 9*cin)
    y = matmul(a, wmat)
    y = y.reshape(4, n, ho, wo, cout)
    return jnp.transpose(y, (1, 2, 3, 0, 4)).reshape(n, ho, wo, 4 * cout)


# ------------------------- Bottleneck forward -------------------------

def bottleneck_forward(x_nchw, params, stride=1):
    x = jnp.transpose(x_nchw, (0, 2, 3, 1)).astype(jnp.bfloat16)  # NHWC, bf16 MXU inputs
    N, H, W, Cin = x.shape
    assert H == W, "rotation-concat requires square spatial dims"
    P = params["bn1_g"].shape[0]
    C4 = params["bn3_g"].shape[0]

    # conv1 (1x1, 4 rotations) -> raw z1 -> bn1 stats -> materialize relu(bn1(z1))
    z1 = conv1x1_4rot(x, params["w1"], stride=1)                  # (N, H, W, P)
    s1, q1 = group_stats(z1.reshape(1, N * H * W, P))
    sc1, sh1 = _bn_affine(s1[0], q1[0], N * H * W, params["bn1_g"], params["bn1_b"])
    a1 = bn_apply(z1.reshape(N * H * W, P), sc1, sh1, relu=True).reshape(N, H, W, P)

    # conv2 (3x3, stride, 4 rotations) -> raw z2; bn2 stats only (bn2+relu fused into conv3)
    z2 = conv3x3_4rot(a1, params["w2"], stride)                   # (N, Ho, Wo, P)
    Ho, Wo = z2.shape[1], z2.shape[2]
    HWo = Ho * Wo
    s2, q2 = group_stats(z2.reshape(1, N * HWo, P))
    sc2, sh2 = _bn_affine(s2[0], q2[0], N * HWo, params["bn2_g"], params["bn2_b"])

    # conv3 (1x1, 4 rotations) with relu(bn2(.)) fused into the matmul prologue -> raw z3
    z3 = conv1x1_4rot(z2, params["w3"], stride=1,
                      in_scale=sc2, in_shift=sh2, in_relu=True)   # (N, Ho, Wo, 4P)

    # shortcut conv (1x1, stride, 4 rotations) on x -> raw zs
    zs = conv1x1_4rot(x, params["wsc"], stride=stride)            # (N, Ho, Wo, 4P)

    # statistics: per-(n,c) for z3 (feeds both bn3 and the SRM gate), per-channel for zs
    s3_nc, q3_nc = group_stats(z3.reshape(N, HWo, C4))
    sc3, sh3 = _bn_affine(jnp.sum(s3_nc, 0), jnp.sum(q3_nc, 0), N * HWo,
                          params["bn3_g"], params["bn3_b"])
    ssc, qsc = group_stats(zs.reshape(1, N * HWo, C4))
    scS, shS = _bn_affine(ssc[0], qsc[0], N * HWo, params["bnsc_g"], params["bnsc_b"])
    srm_w = params["srm_w"].reshape(C4, 2).T                      # (2, C4)
    gate = _srm_gate(s3_nc, q3_nc, HWo, sc3, sh3, srm_w,
                     params["srm_g"], params["srm_b"])            # (N, C4)

    # fused tail: relu( bn3(z3) * gate + bn_sc(zs) ) in ONE pass over the 4P-wide slab
    y = fused_tail(z3.reshape(N, HWo, C4), zs.reshape(N, HWo, C4),
                   gate, sc3, sh3, scS, shS)
    y = y.reshape(N, Ho, Wo, C4)
    return jnp.transpose(y, (0, 3, 1, 2)).astype(jnp.float32)     # back to NCHW


# ------------------------- deterministic parameter init -------------------------

def init_params(key, in_planes, planes):
    P = planes
    ks = jax.random.split(key, 15)

    def nrm(k, shape, s=0.1):
        return s * jax.random.normal(k, shape, dtype=jnp.float32)

    p = {}
    p["w1"] = nrm(ks[0], (P // 4, in_planes, 1, 1))               # conv1
    p["bn1_g"] = 1.0 + nrm(ks[1], (P,))
    p["bn1_b"] = nrm(ks[2], (P,))
    p["w2"] = nrm(ks[3], (P // 4, P, 3, 3))                       # conv2
    p["bn2_g"] = 1.0 + nrm(ks[4], (P,))
    p["bn2_b"] = nrm(ks[5], (P,))
    p["w3"] = nrm(ks[6], (P, P, 1, 1))                            # conv3 (expansion*P//4 = P)
    p["bn3_g"] = 1.0 + nrm(ks[7], (4 * P,))
    p["bn3_b"] = nrm(ks[8], (4 * P,))
    p["wsc"] = nrm(ks[9], (P, in_planes, 1, 1))                   # shortcut conv
    p["bnsc_g"] = 1.0 + nrm(ks[10], (4 * P,))
    p["bnsc_b"] = nrm(ks[11], (4 * P,))
    p["srm_w"] = nrm(ks[12], (4 * P, 1, 2))                       # SRM channel-wise conv1d
    p["srm_g"] = 1.0 + nrm(ks[13], (4 * P,))
    p["srm_b"] = nrm(ks[14], (4 * P,))
    return p


if __name__ == "__main__":
    in_planes, planes, stride = 16, 16, 1
    N, H, W = 2, 8, 8

    key = jax.random.PRNGKey(0)
    k_x, k_p = jax.random.split(key)
    x = jax.random.normal(k_x, (N, in_planes, H, W), dtype=jnp.float32)
    params = init_params(k_p, in_planes, planes)

    fwd = jax.jit(functools.partial(bottleneck_forward, stride=stride))
    out = fwd(x, params)
    jax.block_until_ready(out)
    assert out.shape == (N, 4 * planes, H, W), out.shape
    assert bool(jnp.all(jnp.isfinite(out)))
    print("KERNEL_OK")
</pallas_src>

<mosaic_0001>
module attributes {stable_mosaic.version = 11 : i64} {
  func.func @_mm_kernel(%arg0: i32, %arg1: i32, %arg2: i32, %arg3: memref<128x128xbf16, #tpu.memory_space<vmem>>, %arg4: memref<128x128xbf16, #tpu.memory_space<vmem>>, %arg5: memref<128x128xbf16, #tpu.memory_space<vmem>>, %arg6: memref<128x128xf32, #tpu.memory_space<vmem>>) attributes {dimension_semantics = [#tpu.dimension_semantics<parallel>, #tpu.dimension_semantics<parallel>, #tpu.dimension_semantics<arbitrary>], iteration_bounds = array<i64: 1, 1, 1>, scalar_prefetch = 0 : i64, scratch_operands = 1 : i64, tpu.core_type = #tpu.core_type<tc>, window_params = [{transform_indices = @transform_0, window_bounds = array<i64: 128, 128>}, {transform_indices = @transform_1, window_bounds = array<i64: 128, 128>}, {transform_indices = @transform_2, window_bounds = array<i64: 128, 128>}]} {
    %c0_i32 = arith.constant 0 : i32
    %0 = arith.cmpi eq, %arg2, %c0_i32 : i32
    %1 = arith.extui %0 : i1 to i32
    %c0_i32_0 = arith.constant 0 : i32
    %2 = arith.cmpi ne, %1, %c0_i32_0 : i32
    scf.if %2 {
      %cst_10 = arith.constant 0.000000e+00 : f32
      %12 = vector.broadcast %cst_10 : f32 to vector<128x128xf32>
      %c0_11 = arith.constant 0 : index
      %c0_12 = arith.constant 0 : index
      %13 = vector.load %arg6[%c0_11, %c0_12] : memref<128x128xf32, #tpu.memory_space<vmem>>, vector<128x128xf32>
      tpu.vector_store %arg6[%c0_11, %c0_12], %12 {strides = array<i32>} : memref<128x128xf32, #tpu.memory_space<vmem>>, vector<128x128xf32>,
    } else {
    }
    %c0 = arith.constant 0 : index
    %c0_1 = arith.constant 0 : index
    %3 = vector.load %arg6[%c0, %c0_1] : memref<128x128xf32, #tpu.memory_space<vmem>>, vector<128x128xf32>
    %c0_2 = arith.constant 0 : index
    %c0_3 = arith.constant 0 : index
    %4 = vector.load %arg3[%c0_2, %c0_3] : memref<128x128xbf16, #tpu.memory_space<vmem>>, vector<128x128xbf16>
    %c0_4 = arith.constant 0 : index
    %c0_5 = arith.constant 0 : index
    %5 = vector.load %arg4[%c0_4, %c0_5] : memref<128x128xbf16, #tpu.memory_space<vmem>>, vector<128x128xbf16>
    %cst = arith.constant dense<0.000000e+00> : vector<128x128xf32>
    %6 = tpu.matmul %4, %5, %cst {dimension_numbers = #tpu.dot_dimension_numbers<[1], [0], [0], [1], [0, 0, 1, 1], [], []>} : vector<128x128xbf16>, vector<128x128xbf16>, vector<128x128xf32> -> vector<128x128xf32>
    %7 = arith.addf %3, %6 : vector<128x128xf32>
    %c0_6 = arith.constant 0 : index
    %c0_7 = arith.constant 0 : index
    %8 = vector.load %arg6[%c0_6, %c0_7] : memref<128x128xf32, #tpu.memory_space<vmem>>, vector<128x128xf32>
    tpu.vector_store %arg6[%c0_6, %c0_7], %7 {strides = array<i32>} : memref<128x128xf32, #tpu.memory_space<vmem>>, vector<128x128xf32>,
    %c0_i32_8 = arith.constant 0 : i32
    %9 = arith.cmpi eq, %arg2, %c0_i32_8 : i32
    %10 = arith.extui %9 : i1 to i32
    %c0_i32_9 = arith.constant 0 : i32
    %11 = arith.cmpi ne, %10, %c0_i32_9 : i32
    scf.if %11 {
      %c0_10 = arith.constant 0 : index
      %c0_11 = arith.constant 0 : index
      %12 = vector.load %arg6[%c0_10, %c0_11] : memref<128x128xf32, #tpu.memory_space<vmem>>, vector<128x128xf32>
      %13 = arith.truncf %12 : vector<128x128xf32> to vector<128x128xbf16>
      %c0_12 = arith.constant 0 : index
      %c0_13 = arith.constant 0 : index
      %14 = vector.load %arg5[%c0_12, %c0_13] : memref<128x128xbf16, #tpu.memory_space<vmem>>, vector<128x128xbf16>
      tpu.vector_store %arg5[%c0_12, %c0_13], %13 {strides = array<i32>} : memref<128x128xbf16, #tpu.memory_space<vmem>>, vector<128x128xbf16>,
    } else {
    }
    return
  }
  func.func @transform_0(%arg0: i32, %arg1: i32, %arg2: i32) -> (i32, i32) {
    %c0_i32 = arith.constant 0 : i32
    return %arg0, %arg2 : i32, i32
  }
  func.func @transform_1(%arg0: i32, %arg1: i32, %arg2: i32) -> (i32, i32) {
    %c0_i32 = arith.constant 0 : i32
    return %arg2, %arg1 : i32, i32
  }
  func.func @transform_2(%arg0: i32, %arg1: i32, %arg2: i32) -> (i32, i32) {
    %c0_i32 = arith.constant 0 : i32
    return %arg0, %arg1 : i32, i32
  }
}

module attributes {stable_mosaic.version = 11 : i64} {
  func.func @_stats_kernel(%arg0: i32, %arg1: memref<1x128x128xbf16, #tpu.memory_space<vmem>>, %arg2: memref<1x128xf32, #tpu.memory_space<vmem>>, %arg3: memref<1x128xf32, #tpu.memory_space<vmem>>) attributes {dimension_semantics = [#tpu.dimension_semantics<arbitrary>], iteration_bounds = array<i64: 1>, scalar_prefetch = 0 : i64, scratch_operands = 0 : i64, tpu.core_type = #tpu.core_type<tc>, window_params = [{transform_indices = @transform_0, window_bounds = array<i64: 1, 128, 128>}, {pipeline_mode = #tpu.pipeline_mode<synchronous>, transform_indices = @transform_1, window_bounds = array<i64: 1, 128>}, {pipeline_mode = #tpu.pipeline_mode<synchronous>, transform_indices = @transform_2, window_bounds = array<i64: 1, 128>}]} {
    %c0_i32 = arith.constant 0 : i32
    %0 = arith.cmpi eq, %arg0, %c0_i32 : i32
    %1 = arith.extui %0 : i1 to i32
    %c0_i32_0 = arith.constant 0 : i32
    %2 = arith.cmpi ne, %1, %c0_i32_0 : i32
    scf.if %2 {
      %cst_12 = arith.constant 0.000000e+00 : f32
      %14 = vector.broadcast %cst_12 : f32 to vector<1x128xf32>
      %c0_13 = arith.constant 0 : index
      %c0_14 = arith.constant 0 : index
      %15 = vector.load %arg2[%c0_13, %c0_14] : memref<1x128xf32, #tpu.memory_space<vmem>>, vector<1x128xf32>
      tpu.vector_store %arg2[%c0_13, %c0_14], %14 {strides = array<i32>} : memref<1x128xf32, #tpu.memory_space<vmem>>, vector<1x128xf32>,
      %cst_15 = arith.constant 0.000000e+00 : f32
      %16 = vector.broadcast %cst_15 : f32 to vector<1x128xf32>
      %c0_16 = arith.constant 0 : index
      %c0_17 = arith.constant 0 : index
      %17 = vector.load %arg3[%c0_16, %c0_17] : memref<1x128xf32, #tpu.memory_space<vmem>>, vector<1x128xf32>
      tpu.vector_store %arg3[%c0_16, %c0_17], %16 {strides = array<i32>} : memref<1x128xf32, #tpu.memory_space<vmem>>, vector<1x128xf32>,
    } else {
    }
    %c0 = arith.constant 0 : index
    %c0_1 = arith.constant 0 : index
    %c0_2 = arith.constant 0 : index
    %3 = vector.load %arg1[%c0, %c0_1, %c0_2] : memref<1x128x128xbf16, #tpu.memory_space<vmem>>, vector<1x128x128xbf16>
    %4 = arith.extf %3 : vector<1x128x128xbf16> to vector<1x128x128xf32>
    %c0_3 = arith.constant 0 : index
    %c0_4 = arith.constant 0 : index
    %5 = vector.load %arg2[%c0_3, %c0_4] : memref<1x128xf32, #tpu.memory_space<vmem>>, vector<1x128xf32>
    %cst = arith.constant dense<0.000000e+00> : vector<1x128xf32>
    %6 = vector.multi_reduction <add>, %4, %cst [1] : vector<1x128x128xf32> to vector<1x128xf32>
    %7 = arith.addf %5, %6 : vector<1x128xf32>
    %c0_5 = arith.constant 0 : index
    %c0_6 = arith.constant 0 : index
    %8 = vector.load %arg2[%c0_5, %c0_6] : memref<1x128xf32, #tpu.memory_space<vmem>>, vector<1x128xf32>
    tpu.vector_store %arg2[%c0_5, %c0_6], %7 {strides = array<i32>} : memref<1x128xf32, #tpu.memory_space<vmem>>, vector<1x128xf32>,
    %c0_7 = arith.constant 0 : index
    %c0_8 = arith.constant 0 : index
    %9 = vector.load %arg3[%c0_7, %c0_8] : memref<1x128xf32, #tpu.memory_space<vmem>>, vector<1x128xf32>
    %10 = arith.mulf %4, %4 : vector<1x128x128xf32>
    %cst_9 = arith.constant dense<0.000000e+00> : vector<1x128xf32>
    %11 = vector.multi_reduction <add>, %10, %cst_9 [1] : vector<1x128x128xf32> to vector<1x128xf32>
    %12 = arith.addf %9, %11 : vector<1x128xf32>
    %c0_10 = arith.constant 0 : index
    %c0_11 = arith.constant 0 : index
    %13 = vector.load %arg3[%c0_10, %c0_11] : memref<1x128xf32, #tpu.memory_space<vmem>>, vector<1x128xf32>
    tpu.vector_store %arg3[%c0_10, %c0_11], %12 {strides = array<i32>} : memref<1x128xf32, #tpu.memory_space<vmem>>, vector<1x128xf32>,
    return
  }
  func.func @transform_0(%arg0: i32) -> (i32, i32, i32) {
    %c0_i32 = arith.constant 0 : i32
    %c0_i32_0 = arith.constant 0 : i32
    %c0_i32_1 = arith.constant 0 : i32
    return %c0_i32, %arg0, %c0_i32_0 : i32, i32, i32
  }
  func.func @transform_1(%arg0: i32) -> (i32, i32) {
    %c0_i32 = arith.constant 0 : i32
    %c0_i32_0 = arith.constant 0 : i32
    %c0_i32_1 = arith.constant 0 : i32
    return %c0_i32, %c0_i32_0 : i32, i32
  }
  func.func @transform_2(%arg0: i32) -> (i32, i32) {
    %c0_i32 = arith.constant 0 : i32
    %c0_i32_0 = arith.constant 0 : i32
    %c0_i32_1 = arith.constant 0 : i32
    return %c0_i32, %c0_i32_0 : i32, i32
  }
}

module attributes {stable_mosaic.version = 11 : i64} {
  func.func @_affine_kernel(%arg0: i32, %arg1: memref<128x128xbf16, #tpu.memory_space<vmem>>, %arg2: memref<1x128xf32, #tpu.memory_space<vmem>>, %arg3: memref<1x128xf32, #tpu.memory_space<vmem>>, %arg4: memref<128x128xbf16, #tpu.memory_space<vmem>>) attributes {dimension_semantics = [#tpu.dimension_semantics<parallel>], iteration_bounds = array<i64: 1>, scalar_prefetch = 0 : i64, scratch_operands = 0 : i64, tpu.core_type = #tpu.core_type<tc>, window_params = [{transform_indices = @transform_0, window_bounds = array<i64: 128, 128>}, {pipeline_mode = #tpu.pipeline_mode<synchronous>, transform_indices = @transform_1, window_bounds = array<i64: 1, 128>}, {pipeline_mode = #tpu.pipeline_mode<synchronous>, transform_indices = @transform_2, window_bounds = array<i64: 1, 128>}, {transform_indices = @transform_3, window_bounds = array<i64: 128, 128>}]} {
    %c0 = arith.constant 0 : index
    %c0_0 = arith.constant 0 : index
    %0 = vector.load %arg1[%c0, %c0_0] : memref<128x128xbf16, #tpu.memory_space<vmem>>, vector<128x128xbf16>
    %1 = arith.extf %0 : vector<128x128xbf16> to vector<128x128xf32>
    %c0_1 = arith.constant 0 : index
    %c0_2 = arith.constant 0 : index
    %2 = vector.load %arg2[%c0_1, %c0_2] : memref<1x128xf32, #tpu.memory_space<vmem>>, vector<1x128xf32>
    %3 = vector.broadcast %2 : vector<1x128xf32> to vector<128x128xf32>
    %4 = arith.mulf %1, %3 : vector<128x128xf32>
    %c0_3 = arith.constant 0 : index
    %c0_4 = arith.constant 0 : index
    %5 = vector.load %arg3[%c0_3, %c0_4] : memref<1x128xf32, #tpu.memory_space<vmem>>, vector<1x128xf32>
    %6 = vector.broadcast %5 : vector<1x128xf32> to vector<128x128xf32>
    %7 = arith.addf %4, %6 : vector<128x128xf32>
    %cst = arith.constant 0.000000e+00 : f32
    %8 = vector.broadcast %cst : f32 to vector<128x128xf32>
    %9 = arith.maximumf %7, %8 : vector<128x128xf32>
    %10 = arith.truncf %9 : vector<128x128xf32> to vector<128x128xbf16>
    %c0_5 = arith.constant 0 : index
    %c0_6 = arith.constant 0 : index
    %11 = vector.load %arg4[%c0_5, %c0_6] : memref<128x128xbf16, #tpu.memory_space<vmem>>, vector<128x128xbf16>
    tpu.vector_store %arg4[%c0_5, %c0_6], %10 {strides = array<i32>} : memref<128x128xbf16, #tpu.memory_space<vmem>>, vector<128x128xbf16>,
    return
  }
  func.func @transform_0(%arg0: i32) -> (i32, i32) {
    %c0_i32 = arith.constant 0 : i32
    %c0_i32_0 = arith.constant 0 : i32
    return %arg0, %c0_i32 : i32, i32
  }
  func.func @transform_1(%arg0: i32) -> (i32, i32) {
    %c0_i32 = arith.constant 0 : i32
    %c0_i32_0 = arith.constant 0 : i32
    %c0_i32_1 = arith.constant 0 : i32
    return %c0_i32, %c0_i32_0 : i32, i32
  }
  func.func @transform_2(%arg0: i32) -> (i32, i32) {
    %c0_i32 = arith.constant 0 : i32
    %c0_i32_0 = arith.constant 0 : i32
    %c0_i32_1 = arith.constant 0 : i32
    return %c0_i32, %c0_i32_0 : i32, i32
  }
  func.func @transform_3(%arg0: i32) -> (i32, i32) {
    %c0_i32 = arith.constant 0 : i32
    %c0_i32_0 = arith.constant 0 : i32
    return %arg0, %c0_i32 : i32, i32
  }
}

module attributes {stable_mosaic.version = 11 : i64} {
  func.func @_mm_kernel(%arg0: i32, %arg1: i32, %arg2: i32, %arg3: memref<512x256xbf16, #tpu.memory_space<vmem>>, %arg4: memref<256x128xbf16, #tpu.memory_space<vmem>>, %arg5: memref<512x128xbf16, #tpu.memory_space<vmem>>, %arg6: memref<512x128xf32, #tpu.memory_space<vmem>>) attributes {dimension_semantics = [#tpu.dimension_semantics<parallel>, #tpu.dimension_semantics<parallel>, #tpu.dimension_semantics<arbitrary>], iteration_bounds = array<i64: 1, 1, 1>, scalar_prefetch = 0 : i64, scratch_operands = 1 : i64, tpu.core_type = #tpu.core_type<tc>, window_params = [{transform_indices = @transform_0, window_bounds = array<i64: 512, 256>}, {transform_indices = @transform_1, window_bounds = array<i64: 256, 128>}, {transform_indices = @transform_2, window_bounds = array<i64: 512, 128>}]} {
    %c0_i32 = arith.constant 0 : i32
    %0 = arith.cmpi eq, %arg2, %c0_i32 : i32
    %1 = arith.extui %0 : i1 to i32
    %c0_i32_0 = arith.constant 0 : i32
    %2 = arith.cmpi ne, %1, %c0_i32_0 : i32
    scf.if %2 {
      %cst_10 = arith.constant 0.000000e+00 : f32
      %12 = vector.broadcast %cst_10 : f32 to vector<512x128xf32>
      %c0_11 = arith.constant 0 : index
      %c0_12 = arith.constant 0 : index
      %13 = vector.load %arg6[%c0_11, %c0_12] : memref<512x128xf32, #tpu.memory_space<vmem>>, vector<512x128xf32>
      tpu.vector_store %arg6[%c0_11, %c0_12], %12 {strides = array<i32>} : memref<512x128xf32, #tpu.memory_space<vmem>>, vector<512x128xf32>,
    } else {
    }
    %c0 = arith.constant 0 : index
    %c0_1 = arith.constant 0 : index
    %3 = vector.load %arg6[%c0, %c0_1] : memref<512x128xf32, #tpu.memory_space<vmem>>, vector<512x128xf32>
    %c0_2 = arith.constant 0 : index
    %c0_3 = arith.constant 0 : index
    %4 = vector.load %arg3[%c0_2, %c0_3] : memref<512x256xbf16, #tpu.memory_space<vmem>>, vector<512x256xbf16>
    %c0_4 = arith.constant 0 : index
    %c0_5 = arith.constant 0 : index
    %5 = vector.load %arg4[%c0_4, %c0_5] : memref<256x128xbf16, #tpu.memory_space<vmem>>, vector<256x128xbf16>
    %cst = arith.constant dense<0.000000e+00> : vector<512x128xf32>
    %6 = tpu.matmul %4, %5, %cst {dimension_numbers = #tpu.dot_dimension_numbers<[1], [0], [0], [1], [0, 0, 1, 1], [], []>} : vector<512x256xbf16>, vector<256x128xbf16>, vector<512x128xf32> -> vector<512x128xf32>
    %7 = arith.addf %3, %6 : vector<512x128xf32>
    %c0_6 = arith.constant 0 : index
    %c0_7 = arith.constant 0 : index
    %8 = vector.load %arg6[%c0_6, %c0_7] : memref<512x128xf32, #tpu.memory_space<vmem>>, vector<512x128xf32>
    tpu.vector_store %arg6[%c0_6, %c0_7], %7 {strides = array<i32>} : memref<512x128xf32, #tpu.memory_space<vmem>>, vector<512x128xf32>,
    %c0_i32_8 = arith.constant 0 : i32
    %9 = arith.cmpi eq, %arg2, %c0_i32_8 : i32
    %10 = arith.extui %9 : i1 to i32
    %c0_i32_9 = arith.constant 0 : i32
    %11 = arith.cmpi ne, %10, %c0_i32_9 : i32
    scf.if %11 {
      %c0_10 = arith.constant 0 : index
      %c0_11 = arith.constant 0 : index
      %12 = vector.load %arg6[%c0_10, %c0_11] : memref<512x128xf32, #tpu.memory_space<vmem>>, vector<512x128xf32>
      %13 = arith.truncf %12 : vector<512x128xf32> to vector<512x128xbf16>
      %c0_12 = arith.constant 0 : index
      %c0_13 = arith.constant 0 : index
      %14 = vector.load %arg5[%c0_12, %c0_13] : memref<512x128xbf16, #tpu.memory_space<vmem>>, vector<512x128xbf16>
      tpu.vector_store %arg5[%c0_12, %c0_13], %13 {strides = array<i32>} : memref<512x128xbf16, #tpu.memory_space<vmem>>, vector<512x128xbf16>,
    } else {
    }
    return
  }
  func.func @transform_0(%arg0: i32, %arg1: i32, %arg2: i32) -> (i32, i32) {
    %c0_i32 = arith.constant 0 : i32
    return %arg0, %arg2 : i32, i32
  }
  func.func @transform_1(%arg0: i32, %arg1: i32, %arg2: i32) -> (i32, i32) {
    %c0_i32 = arith.constant 0 : i32
    return %arg2, %arg1 : i32, i32
  }
  func.func @transform_2(%arg0: i32, %arg1: i32, %arg2: i32) -> (i32, i32) {
    %c0_i32 = arith.constant 0 : i32
    return %arg0, %arg1 : i32, i32
  }
}

module attributes {stable_mosaic.version = 11 : i64} {
  func.func @_mm_affine_kernel(%arg0: i32, %arg1: i32, %arg2: i32, %arg3: memref<128x128xbf16, #tpu.memory_space<vmem>>, %arg4: memref<1x128xf32, #tpu.memory_space<vmem>>, %arg5: memref<1x128xf32, #tpu.memory_space<vmem>>, %arg6: memref<128x128xbf16, #tpu.memory_space<vmem>>, %arg7: memref<128x128xbf16, #tpu.memory_space<vmem>>, %arg8: memref<128x128xf32, #tpu.memory_space<vmem>>) attributes {dimension_semantics = [#tpu.dimension_semantics<parallel>, #tpu.dimension_semantics<parallel>, #tpu.dimension_semantics<arbitrary>], iteration_bounds = array<i64: 1, 1, 1>, scalar_prefetch = 0 : i64, scratch_operands = 1 : i64, tpu.core_type = #tpu.core_type<tc>, window_params = [{transform_indices = @transform_0, window_bounds = array<i64: 128, 128>}, {transform_indices = @transform_1, window_bounds = array<i64: 1, 128>}, {transform_indices = @transform_2, window_bounds = array<i64: 1, 128>}, {transform_indices = @transform_3, window_bounds = array<i64: 128, 128>}, {transform_indices = @transform_4, window_bounds = array<i64: 128, 128>}]} {
    %c0_i32 = arith.constant 0 : i32
    %0 = arith.cmpi eq, %arg2, %c0_i32 : i32
    %1 = arith.extui %0 : i1 to i32
    %c0_i32_0 = arith.constant 0 : i32
    %2 = arith.cmpi ne, %1, %c0_i32_0 : i32
    scf.if %2 {
      %cst_15 = arith.constant 0.000000e+00 : f32
      %22 = vector.broadcast %cst_15 : f32 to vector<128x128xf32>
      %c0_16 = arith.constant 0 : index
      %c0_17 = arith.constant 0 : index
      %23 = vector.load %arg8[%c0_16, %c0_17] : memref<128x128xf32, #tpu.memory_space<vmem>>, vector<128x128xf32>
      tpu.vector_store %arg8[%c0_16, %c0_17], %22 {strides = array<i32>} : memref<128x128xf32, #tpu.memory_space<vmem>>, vector<128x128xf32>,
    } else {
    }
    %c0 = arith.constant 0 : index
    %c0_1 = arith.constant 0 : index
    %3 = vector.load %arg3[%c0, %c0_1] : memref<128x128xbf16, #tpu.memory_space<vmem>>, vector<128x128xbf16>
    %4 = arith.extf %3 : vector<128x128xbf16> to vector<128x128xf32>
    %c0_2 = arith.constant 0 : index
    %c0_3 = arith.constant 0 : index
    %5 = vector.load %arg4[%c0_2, %c0_3] : memref<1x128xf32, #tpu.memory_space<vmem>>, vector<1x128xf32>
    %6 = vector.broadcast %5 : vector<1x128xf32> to vector<128x128xf32>
    %7 = arith.mulf %4, %6 : vector<128x128xf32>
    %c0_4 = arith.constant 0 : index
    %c0_5 = arith.constant 0 : index
    %8 = vector.load %arg5[%c0_4, %c0_5] : memref<1x128xf32, #tpu.memory_space<vmem>>, vector<1x128xf32>
    %9 = vector.broadcast %8 : vector<1x128xf32> to vector<128x128xf32>
    %10 = arith.addf %7, %9 : vector<128x128xf32>
    %cst = arith.constant 0.000000e+00 : f32
    %11 = vector.broadcast %cst : f32 to vector<128x128xf32>
    %12 = arith.maximumf %10, %11 : vector<128x128xf32>
    %c0_6 = arith.constant 0 : index
    %c0_7 = arith.constant 0 : index
    %13 = vector.load %arg8[%c0_6, %c0_7] : memref<128x128xf32, #tpu.memory_space<vmem>>, vector<128x128xf32>
    %14 = arith.truncf %12 : vector<128x128xf32> to vector<128x128xbf16>
    %c0_8 = arith.constant 0 : index
    %c0_9 = arith.constant 0 : index
    %15 = vector.load %arg6[%c0_8, %c0_9] : memref<128x128xbf16, #tpu.memory_space<vmem>>, vector<128x128xbf16>
    %cst_10 = arith.constant dense<0.000000e+00> : vector<128x128xf32>
    %16 = tpu.matmul %14, %15, %cst_10 {dimension_numbers = #tpu.dot_dimension_numbers<[1], [0], [0], [1], [0, 0, 1, 1], [], []>} : vector<128x128xbf16>, vector<128x128xbf16>, vector<128x128xf32> -> vector<128x128xf32>
    %17 = arith.addf %13, %16 : vector<128x128xf32>
    %c0_11 = arith.constant 0 : index
    %c0_12 = arith.constant 0 : index
    %18 = vector.load %arg8[%c0_11, %c0_12] : memref<128x128xf32, #tpu.memory_space<vmem>>, vector<128x128xf32>
    tpu.vector_store %arg8[%c0_11, %c0_12], %17 {strides = array<i32>} : memref<128x128xf32, #tpu.memory_space<vmem>>, vector<128x128xf32>,
    %c0_i32_13 = arith.constant 0 : i32
    %19 = arith.cmpi eq, %arg2, %c0_i32_13 : i32
    %20 = arith.extui %19 : i1 to i32
    %c0_i32_14 = arith.constant 0 : i32
    %21 = arith.cmpi ne, %20, %c0_i32_14 : i32
    scf.if %21 {
      %c0_15 = arith.constant 0 : index
      %c0_16 = arith.constant 0 : index
      %22 = vector.load %arg8[%c0_15, %c0_16] : memref<128x128xf32, #tpu.memory_space<vmem>>, vector<128x128xf32>
      %23 = arith.truncf %22 : vector<128x128xf32> to vector<128x128xbf16>
      %c0_17 = arith.constant 0 : index
      %c0_18 = arith.constant 0 : index
      %24 = vector.load %arg7[%c0_17, %c0_18] : memref<128x128xbf16, #tpu.memory_space<vmem>>, vector<128x128xbf16>
      tpu.vector_store %arg7[%c0_17, %c0_18], %23 {strides = array<i32>} : memref<128x128xbf16, #tpu.memory_space<vmem>>, vector<128x128xbf16>,
    } else {
    }
    return
  }
  func.func @transform_0(%arg0: i32, %arg1: i32, %arg2: i32) -> (i32, i32) {
    %c0_i32 = arith.constant 0 : i32
    return %arg0, %arg2 : i32, i32
  }
  func.func @transform_1(%arg0: i32, %arg1: i32, %arg2: i32) -> (i32, i32) {
    %c0_i32 = arith.constant 0 : i32
    %c0_i32_0 = arith.constant 0 : i32
    return %c0_i32, %arg2 : i32, i32
  }
  func.func @transform_2(%arg0: i32, %arg1: i32, %arg2: i32) -> (i32, i32) {
    %c0_i32 = arith.constant 0 : i32
    %c0_i32_0 = arith.constant 0 : i32
    return %c0_i32, %arg2 : i32, i32
  }
  func.func @transform_3(%arg0: i32, %arg1: i32, %arg2: i32) -> (i32, i32) {
    %c0_i32 = arith.constant 0 : i32
    return %arg2, %arg1 : i32, i32
  }
  func.func @transform_4(%arg0: i32, %arg1: i32, %arg2: i32) -> (i32, i32) {
    %c0_i32 = arith.constant 0 : i32
    return %arg0, %arg1 : i32, i32
  }
}

module attributes {stable_mosaic.version = 11 : i64} {
  func.func @_stats_kernel(%arg0: i32, %arg1: memref<2x64x128xbf16, #tpu.memory_space<vmem>>, %arg2: memref<2x128xf32, #tpu.memory_space<vmem>>, %arg3: memref<2x128xf32, #tpu.memory_space<vmem>>) attributes {dimension_semantics = [#tpu.dimension_semantics<arbitrary>], iteration_bounds = array<i64: 1>, scalar_prefetch = 0 : i64, scratch_operands = 0 : i64, tpu.core_type = #tpu.core_type<tc>, window_params = [{transform_indices = @transform_0, window_bounds = array<i64: 2, 64, 128>}, {pipeline_mode = #tpu.pipeline_mode<synchronous>, transform_indices = @transform_1, window_bounds = array<i64: 2, 128>}, {pipeline_mode = #tpu.pipeline_mode<synchronous>, transform_indices = @transform_2, window_bounds = array<i64: 2, 128>}]} {
    %c0_i32 = arith.constant 0 : i32
    %0 = arith.cmpi eq, %arg0, %c0_i32 : i32
    %1 = arith.extui %0 : i1 to i32
    %c0_i32_0 = arith.constant 0 : i32
    %2 = arith.cmpi ne, %1, %c0_i32_0 : i32
    scf.if %2 {
      %cst_12 = arith.constant 0.000000e+00 : f32
      %14 = vector.broadcast %cst_12 : f32 to vector<2x128xf32>
      %c0_13 = arith.constant 0 : index
      %c0_14 = arith.constant 0 : index
      %15 = vector.load %arg2[%c0_13, %c0_14] : memref<2x128xf32, #tpu.memory_space<vmem>>, vector<2x128xf32>
      tpu.vector_store %arg2[%c0_13, %c0_14], %14 {strides = array<i32>} : memref<2x128xf32, #tpu.memory_space<vmem>>, vector<2x128xf32>,
      %cst_15 = arith.constant 0.000000e+00 : f32
      %16 = vector.broadcast %cst_15 : f32 to vector<2x128xf32>
      %c0_16 = arith.constant 0 : index
      %c0_17 = arith.constant 0 : index
      %17 = vector.load %arg3[%c0_16, %c0_17] : memref<2x128xf32, #tpu.memory_space<vmem>>, vector<2x128xf32>
      tpu.vector_store %arg3[%c0_16, %c0_17], %16 {strides = array<i32>} : memref<2x128xf32, #tpu.memory_space<vmem>>, vector<2x128xf32>,
    } else {
    }
    %c0 = arith.constant 0 : index
    %c0_1 = arith.constant 0 : index
    %c0_2 = arith.constant 0 : index
    %3 = vector.load %arg1[%c0, %c0_1, %c0_2] : memref<2x64x128xbf16, #tpu.memory_space<vmem>>, vector<2x64x128xbf16>
    %4 = arith.extf %3 : vector<2x64x128xbf16> to vector<2x64x128xf32>
    %c0_3 = arith.constant 0 : index
    %c0_4 = arith.constant 0 : index
    %5 = vector.load %arg2[%c0_3, %c0_4] : memref<2x128xf32, #tpu.memory_space<vmem>>, vector<2x128xf32>
    %cst = arith.constant dense<0.000000e+00> : vector<2x128xf32>
    %6 = vector.multi_reduction <add>, %4, %cst [1] : vector<2x64x128xf32> to vector<2x128xf32>
    %7 = arith.addf %5, %6 : vector<2x128xf32>
    %c0_5 = arith.constant 0 : index
    %c0_6 = arith.constant 0 : index
    %8 = vector.load %arg2[%c0_5, %c0_6] : memref<2x128xf32, #tpu.memory_space<vmem>>, vector<2x128xf32>
    tpu.vector_store %arg2[%c0_5, %c0_6], %7 {strides = array<i32>} : memref<2x128xf32, #tpu.memory_space<vmem>>, vector<2x128xf32>,
    %c0_7 = arith.constant 0 : index
    %c0_8 = arith.constant 0 : index
    %9 = vector.load %arg3[%c0_7, %c0_8] : memref<2x128xf32, #tpu.memory_space<vmem>>, vector<2x128xf32>
    %10 = arith.mulf %4, %4 : vector<2x64x128xf32>
    %cst_9 = arith.constant dense<0.000000e+00> : vector<2x128xf32>
    %11 = vector.multi_reduction <add>, %10, %cst_9 [1] : vector<2x64x128xf32> to vector<2x128xf32>
    %12 = arith.addf %9, %11 : vector<2x128xf32>
    %c0_10 = arith.constant 0 : index
    %c0_11 = arith.constant 0 : index
    %13 = vector.load %arg3[%c0_10, %c0_11] : memref<2x128xf32, #tpu.memory_space<vmem>>, vector<2x128xf32>
    tpu.vector_store %arg3[%c0_10, %c0_11], %12 {strides = array<i32>} : memref<2x128xf32, #tpu.memory_space<vmem>>, vector<2x128xf32>,
    return
  }
  func.func @transform_0(%arg0: i32) -> (i32, i32, i32) {
    %c0_i32 = arith.constant 0 : i32
    %c0_i32_0 = arith.constant 0 : i32
    %c0_i32_1 = arith.constant 0 : i32
    return %c0_i32, %arg0, %c0_i32_0 : i32, i32, i32
  }
  func.func @transform_1(%arg0: i32) -> (i32, i32) {
    %c0_i32 = arith.constant 0 : i32
    %c0_i32_0 = arith.constant 0 : i32
    %c0_i32_1 = arith.constant 0 : i32
    return %c0_i32, %c0_i32_0 : i32, i32
  }
  func.func @transform_2(%arg0: i32) -> (i32, i32) {
    %c0_i32 = arith.constant 0 : i32
    %c0_i32_0 = arith.constant 0 : i32
    %c0_i32_1 = arith.constant 0 : i32
    return %c0_i32, %c0_i32_0 : i32, i32
  }
}

module attributes {stable_mosaic.version = 11 : i64} {
  func.func @_tail_kernel(%arg0: i32, %arg1: i32, %arg2: memref<1x64x128xbf16, #tpu.memory_space<vmem>>, %arg3: memref<1x64x128xbf16, #tpu.memory_space<vmem>>, %arg4: memref<1x1x128xf32, #tpu.memory_space<vmem>>, %arg5: memref<1x1x128xf32, #tpu.memory_space<vmem>>, %arg6: memref<1x1x128xf32, #tpu.memory_space<vmem>>, %arg7: memref<1x1x128xf32, #tpu.memory_space<vmem>>, %arg8: memref<1x1x128xf32, #tpu.memory_space<vmem>>, %arg9: memref<1x64x128xf32, #tpu.memory_space<vmem>>) attributes {dimension_semantics = [#tpu.dimension_semantics<parallel>, #tpu.dimension_semantics<parallel>], iteration_bounds = array<i64: 2, 1>, scalar_prefetch = 0 : i64, scratch_operands = 0 : i64, tpu.core_type = #tpu.core_type<tc>, window_params = [{transform_indices = @transform_0, window_bounds = array<i64: 1, 64, 128>}, {transform_indices = @transform_1, window_bounds = array<i64: 1, 64, 128>}, {transform_indices = @transform_2, window_bounds = array<i64: 1, 1, 128>}, {pipeline_mode = #tpu.pipeline_mode<synchronous>, transform_indices = @transform_3, window_bounds = array<i64: 1, 1, 128>}, {pipeline_mode = #tpu.pipeline_mode<synchronous>, transform_indices = @transform_4, window_bounds = array<i64: 1, 1, 128>}, {pipeline_mode = #tpu.pipeline_mode<synchronous>, transform_indices = @transform_5, window_bounds = array<i64: 1, 1, 128>}, {pipeline_mode = #tpu.pipeline_mode<synchronous>, transform_indices = @transform_6, window_bounds = array<i64: 1, 1, 128>}, {transform_indices = @transform_7, window_bounds = array<i64: 1, 64, 128>}]} {
    %c0 = arith.constant 0 : index
    %c0_0 = arith.constant 0 : index
    %c0_1 = arith.constant 0 : index
    %0 = vector.load %arg2[%c0, %c0_0, %c0_1] : memref<1x64x128xbf16, #tpu.memory_space<vmem>>, vector<1x64x128xbf16>
    %1 = arith.extf %0 : vector<1x64x128xbf16> to vector<1x64x128xf32>
    %c0_2 = arith.constant 0 : index
    %c0_3 = arith.constant 0 : index
    %c0_4 = arith.constant 0 : index
    %2 = vector.load %arg3[%c0_2, %c0_3, %c0_4] : memref<1x64x128xbf16, #tpu.memory_space<vmem>>, vector<1x64x128xbf16>
    %3 = arith.extf %2 : vector<1x64x128xbf16> to vector<1x64x128xf32>
    %c0_5 = arith.constant 0 : index
    %c0_6 = arith.constant 0 : index
    %c0_7 = arith.constant 0 : index
    %4 = vector.load %arg5[%c0_5, %c0_6, %c0_7] : memref<1x1x128xf32, #tpu.memory_space<vmem>>, vector<1x1x128xf32>
    %5 = vector.broadcast %4 : vector<1x1x128xf32> to vector<1x64x128xf32>
    %6 = arith.mulf %1, %5 : vector<1x64x128xf32>
    %c0_8 = arith.constant 0 : index
    %c0_9 = arith.constant 0 : index
    %c0_10 = arith.constant 0 : index
    %7 = vector.load %arg6[%c0_8, %c0_9, %c0_10] : memref<1x1x128xf32, #tpu.memory_space<vmem>>, vector<1x1x128xf32>
    %8 = vector.broadcast %7 : vector<1x1x128xf32> to vector<1x64x128xf32>
    %9 = arith.addf %6, %8 : vector<1x64x128xf32>
    %c0_11 = arith.constant 0 : index
    %c0_12 = arith.constant 0 : index
    %c0_13 = arith.constant 0 : index
    %10 = vector.load %arg4[%c0_11, %c0_12, %c0_13] : memref<1x1x128xf32, #tpu.memory_space<vmem>>, vector<1x1x128xf32>
    %11 = vector.broadcast %10 : vector<1x1x128xf32> to vector<1x64x128xf32>
    %12 = arith.mulf %9, %11 : vector<1x64x128xf32>
    %c0_14 = arith.constant 0 : index
    %c0_15 = arith.constant 0 : index
    %c0_16 = arith.constant 0 : index
    %13 = vector.load %arg7[%c0_14, %c0_15, %c0_16] : memref<1x1x128xf32, #tpu.memory_space<vmem>>, vector<1x1x128xf32>
    %14 = vector.broadcast %13 : vector<1x1x128xf32> to vector<1x64x128xf32>
    %15 = arith.mulf %3, %14 : vector<1x64x128xf32>
    %c0_17 = arith.constant 0 : index
    %c0_18 = arith.constant 0 : index
    %c0_19 = arith.constant 0 : index
    %16 = vector.load %arg8[%c0_17, %c0_18, %c0_19] : memref<1x1x128xf32, #tpu.memory_space<vmem>>, vector<1x1x128xf32>
    %17 = vector.broadcast %16 : vector<1x1x128xf32> to vector<1x64x128xf32>
    %18 = arith.addf %15, %17 : vector<1x64x128xf32>
    %19 = arith.addf %12, %18 : vector<1x64x128xf32>
    %cst = arith.constant 0.000000e+00 : f32
    %20 = vector.broadcast %cst : f32 to vector<1x64x128xf32>
    %21 = arith.maximumf %19, %20 : vector<1x64x128xf32>
    %c0_20 = arith.constant 0 : index
    %c0_21 = arith.constant 0 : index
    %c0_22 = arith.constant 0 : index
    %22 = vector.load %arg9[%c0_20, %c0_21, %c0_22] : memref<1x64x128xf32, #tpu.memory_space<vmem>>, vector<1x64x128xf32>
    tpu.vector_store %arg9[%c0_20, %c0_21, %c0_22], %21 {strides = array<i32>} : memref<1x64x128xf32, #tpu.memory_space<vmem>>, vector<1x64x128xf32>,
    return
  }
  func.func @transform_0(%arg0: i32, %arg1: i32) -> (i32, i32, i32) {
    %c0_i32 = arith.constant 0 : i32
    %c0_i32_0 = arith.constant 0 : i32
    return %arg0, %arg1, %c0_i32 : i32, i32, i32
  }
  func.func @transform_1(%arg0: i32, %arg1: i32) -> (i32, i32, i32) {
    %c0_i32 = arith.constant 0 : i32
    %c0_i32_0 = arith.constant 0 : i32
    return %arg0, %arg1, %c0_i32 : i32, i32, i32
  }
  func.func @transform_2(%arg0: i32, %arg1: i32) -> (i32, i32, i32) {
    %c0_i32 = arith.constant 0 : i32
    %c0_i32_0 = arith.constant 0 : i32
    %c0_i32_1 = arith.constant 0 : i32
    return %arg0, %c0_i32, %c0_i32_0 : i32, i32, i32
  }
  func.func @transform_3(%arg0: i32, %arg1: i32) -> (i32, i32, i32) {
    %c0_i32 = arith.constant 0 : i32
    %c0_i32_0 = arith.constant 0 : i32
    %c0_i32_1 = arith.constant 0 : i32
    %c0_i32_2 = arith.constant 0 : i32
    return %c0_i32, %c0_i32_0, %c0_i32_1 : i32, i32, i32
  }
  func.func @transform_4(%arg0: i32, %arg1: i32) -> (i32, i32, i32) {
    %c0_i32 = arith.constant 0 : i32
    %c0_i32_0 = arith.constant 0 : i32
    %c0_i32_1 = arith.constant 0 : i32
    %c0_i32_2 = arith.constant 0 : i32
    return %c0_i32, %c0_i32_0, %c0_i32_1 : i32, i32, i32
  }
  func.func @transform_5(%arg0: i32, %arg1: i32) -> (i32, i32, i32) {
    %c0_i32 = arith.constant 0 : i32
    %c0_i32_0 = arith.constant 0 : i32
    %c0_i32_1 = arith.constant 0 : i32
    %c0_i32_2 = arith.constant 0 : i32
    return %c0_i32, %c0_i32_0, %c0_i32_1 : i32, i32, i32
  }
  func.func @transform_6(%arg0: i32, %arg1: i32) -> (i32, i32, i32) {
    %c0_i32 = arith.constant 0 : i32
    %c0_i32_0 = arith.constant 0 : i32
    %c0_i32_1 = arith.constant 0 : i32
    %c0_i32_2 = arith.constant 0 : i32
    return %c0_i32, %c0_i32_0, %c0_i32_1 : i32, i32, i32
  }
  func.func @transform_7(%arg0: i32, %arg1: i32) -> (i32, i32, i32) {
    %c0_i32 = arith.constant 0 : i32
    %c0_i32_0 = arith.constant 0 : i32
    return %arg0, %arg1, %c0_i32 : i32, i32, i32
  }
}

</mosaic_0001>

<llo_original>
// kernel: bottleneck_forward.11
$region0: #{bottleneck_forward.11}
  #allocation0 [shape = 'u32[]', space=smem, size = 0x4, offset = 0x4, fixed_abs, tag = 'smem constant byte address 0x4 - core index']
  #allocation1 [shape = 'u32[144,128]{1,0:T(1,128)}', space=vmem, size = 0x12000, scoped, tag = 'internal scratch']
  %s0 = inlined_call_operand.vmem [shape: bf16[1,128,128], index: 0, kind: input, shape index: {}]
  %s1 = inlined_call_operand.vmem [shape: f32[1,128], index: 1, kind: output, shape index: {0}]
  %s2 = inlined_call_operand.vmem [shape: f32[1,128], index: 2, kind: output, shape index: {1}]
  %3 = xla_tuple %s1, %s2
  %s4 = sld [smem:[#allocation0]]
  $region26: #{bottleneck_forward.11} parent=0
    _
  %s6 = ssub.s32 1, %s4
  %s7 = scalar_select 0, %s6, %s4
  // Predicated region
  $region2: #{bottleneck_forward.11} parent=0 // pred_check
    _
  $region3: #{bottleneck_forward.11} parent=0 // pred_check_branch
    %9 = sbr.rel (0) target = $region5
  $region4: #{bottleneck_forward.11} parent=0 // pred_region
    _
  $region5: #{bottleneck_forward.11} parent=0 // pred_fallthru
    _
  %p10 = scmp.eq.s32.totalorder 0, 0
  // Predicated region
  $region6: #{bottleneck_forward.11} parent=0 // pred_check
    %p11 = pneg %p10
  $region7: #{bottleneck_forward.11} parent=0 // pred_check_branch
    %13 = sbr.rel (%p11) target = $region9
  $region8: #{bottleneck_forward.11} parent=0 // pred_region
    %14 = vst [vmem:[%s1] sm:$0x1] 0.0
    %15 = vst [vmem:[%s2] sm:$0x1] 0.0
  $region9: #{bottleneck_forward.11} parent=0 // pred_fallthru
    _
  %v16 = vld [vmem:[%s0] sm:$0xf]
  %v17 = vld [vmem:[%s0 + $0x4] sm:$0xf]
  %v18 = vld [vmem:[%s0 + $0x8] sm:$0xf]
  %v19 = vld [vmem:[%s0 + $0xc] sm:$0xf]
  %v20 = vld [vmem:[%s0 + $0x10] sm:$0xf]
  %v21 = vld [vmem:[%s0 + $0x14] sm:$0xf]
  %v22 = vld [vmem:[%s0 + $0x18] sm:$0xf]
  %v23 = vld [vmem:[%s0 + $0x1c] sm:$0xf]
  %v24 = vld [vmem:[%s0 + $0x20] sm:$0xf]
  %v25 = vld [vmem:[%s0 + $0x24] sm:$0xf]
  %v26 = vld [vmem:[%s0 + $0x28] sm:$0xf]
  %v27 = vld [vmem:[%s0 + $0x2c] sm:$0xf]
  %v28 = vld [vmem:[%s0 + $0x30] sm:$0xf]
  %v29 = vld [vmem:[%s0 + $0x34] sm:$0xf]
  %v30 = vld [vmem:[%s0 + $0x38] sm:$0xf]
  %v31 = vld [vmem:[%s0 + $0x3c] sm:$0xf]
  %v32 = vunpack.c.l.bf16 %v16
  %v33 = vunpack.c.l.bf16 %v17
  %v34 = vunpack.c.l.bf16 %v18
  %v35 = vunpack.c.l.bf16 %v19
  %v36 = vunpack.c.l.bf16 %v20
  %v37 = vunpack.c.l.bf16 %v21
  %v38 = vunpack.c.l.bf16 %v22
  %v39 = vunpack.c.l.bf16 %v23
  %v40 = vunpack.c.l.bf16 %v24
  %v41 = vunpack.c.l.bf16 %v25
  %v42 = vunpack.c.l.bf16 %v26
  %v43 = vunpack.c.l.bf16 %v27
  %v44 = vunpack.c.l.bf16 %v28
  %v45 = vunpack.c.l.bf16 %v29
  %v46 = vunpack.c.l.bf16 %v30
  %v47 = vunpack.c.l.bf16 %v31
  %v48 = vld [vmem:[%s1] sm:$0x1]
  %v49 = vadd.f32 %v32, %v33
  %v50 = vadd.f32 %v49, %v34
  %v51 = vadd.f32 %v50, %v35
  %v52 = vadd.f32 %v51, %v36
  %v53 = vadd.f32 %v52, %v37
  %v54 = vadd.f32 %v53, %v38
  %v55 = vadd.f32 %v54, %v39
  %v56 = vadd.f32 %v55, %v40
  %v57 = vadd.f32 %v56, %v41
  %v58 = vadd.f32 %v57, %v42
  %v59 = vadd.f32 %v58, %v43
  %v60 = vadd.f32 %v59, %v44
  %v61 = vadd.f32 %v60, %v45
  %v62 = vadd.f32 %v61, %v46
  %v63 = vadd.f32 %v62, %v47
  %v64 = vrot.slane %v63, 4
  %v65 = vadd.f32 %v63, %v64
  %v66 = vrot.slane %v65, 2
  %v67 = vadd.f32 %v65, %v66
  %v68 = vrot.slane %v67, 1
  %v69 = vadd.f32 %v67, %v68
  %v70 = vadd.f32 %v48, %v69
  %71 = vst [vmem:[%s1] sm:$0x1] %v70
  %v72 = vld [vmem:[%s2] sm:$0x1]
  %v73 = vmul.f32 %v32, %v32
  %v74 = vmul.f32 %v33, %v33
  %v75 = vmul.f32 %v34, %v34
  %v76 = vmul.f32 %v35, %v35
  %v77 = vmul.f32 %v36, %v36
  %v78 = vmul.f32 %v37, %v37
  %v79 = vmul.f32 %v38, %v38
  %v80 = vmul.f32 %v39, %v39
  %v81 = vmul.f32 %v40, %v40
  %v82 = vmul.f32 %v41, %v41
  %v83 = vmul.f32 %v42, %v42
  %v84 = vmul.f32 %v43, %v43
  %v85 = vmul.f32 %v44, %v44
  %v86 = vmul.f32 %v45, %v45
  %v87 = vmul.f32 %v46, %v46
  %v88 = vmul.f32 %v47, %v47
  %v89 = vadd.f32 %v73, %v74
  %v90 = vadd.f32 %v89, %v75
  %v91 = vadd.f32 %v90, %v76
  %v92 = vadd.f32 %v91, %v77
  %v93 = vadd.f32 %v92, %v78
  %v94 = vadd.f32 %v93, %v79
  %v95 = vadd.f32 %v94, %v80
  %v96 = vadd.f32 %v95, %v81
  %v97 = vadd.f32 %v96, %v82
  %v98 = vadd.f32 %v97, %v83
  %v99 = vadd.f32 %v98, %v84
  %v100 = vadd.f32 %v99, %v85
  %v101 = vadd.f32 %v100, %v86
  %v102 = vadd.f32 %v101, %v87
  %v103 = vadd.f32 %v102, %v88
  %v104 = vrot.slane %v103, 4
  %v105 = vadd.f32 %v103, %v104
  %v106 = vrot.slane %v105, 2
  %v107 = vadd.f32 %v105, %v106
  %v108 = vrot.slane %v107, 1
  %v109 = vadd.f32 %v107, %v108
  %v110 = vadd.f32 %v72, %v109
  %111 = vst [vmem:[%s2] sm:$0x1] %v110
  // Predicated region
  $region10: #{bottleneck_forward.11} parent=0 // pred_check
    _
  $region11: #{bottleneck_forward.11} parent=0 // pred_check_branch
    %113 = sbr.rel (0) target = $region13
  $region12: #{bottleneck_forward.11} parent=0 // pred_region
    _
  $region13: #{bottleneck_forward.11} parent=0 // pred_fallthru
    _
  // Predicated region
  $region14: #{bottleneck_forward.11} parent=0 // pred_check
    _
  $region15: #{bottleneck_forward.11} parent=0 // pred_check_branch
    %115 = sbr.rel (0) target = $region17
  $region16: #{bottleneck_forward.11} parent=0 // pred_region
    _
  $region17: #{bottleneck_forward.11} parent=0 // pred_fallthru
    _
  // Predicated region
  $region18: #{bottleneck_forward.11} parent=0 // pred_check
    _
  $region19: #{bottleneck_forward.11} parent=0 // pred_check_branch
    %117 = sbr.rel (0) target = $region21
  $region20: #{bottleneck_forward.11} parent=0 // pred_region
    _
  $region21: #{bottleneck_forward.11} parent=0 // pred_fallthru
    _
  // Predicated region
  $region22: #{bottleneck_forward.11} parent=0 // pred_check
    _
  $region23: #{bottleneck_forward.11} parent=0 // pred_check_branch
    %119 = sbr.rel (0) target = $region25
  $region24: #{bottleneck_forward.11} parent=0 // pred_region
    _
  $region25: #{bottleneck_forward.11} parent=0 // pred_fallthru
    _

// kernel: bottleneck_forward.10
$region0: #{bottleneck_forward.10}
  #allocation0 [shape = 'u32[]', space=smem, size = 0x4, offset = 0x4, fixed_abs, tag = 'smem constant byte address 0x4 - core index']
  #allocation1 [shape = 'u32[144,128]{1,0:T(1,128)}', space=vmem, size = 0x12000, scoped, tag = 'internal scratch']
  #allocation2 [shape = 'f32[128,128]{1,0:T(8,128)}', space=vmem, size = 0x10000, scoped, tag = 'scratch operand']
  %s0 = inlined_call_operand.vmem [shape: bf16[128,128], index: 0, kind: input, shape index: {}]
  %s1 = inlined_call_operand.vmem [shape: bf16[128,128], index: 1, kind: input, shape index: {}]
  %s2 = inlined_call_operand.vmem [shape: bf16[128,128], index: 2, kind: output, shape index: {}]
  %s3 = sld [smem:[#allocation0]]
  $region26: #{bottleneck_forward.10} parent=0
    _
  %s5 = ssub.s32 1, %s3
  %s6 = scalar_select 0, %s5, %s3
  // Predicated region
  $region2: #{bottleneck_forward.10} parent=0 // pred_check
    _
  $region3: #{bottleneck_forward.10} parent=0 // pred_check_branch
    %8 = sbr.rel (0) target = $region5
  $region4: #{bottleneck_forward.10} parent=0 // pred_region
    _
  $region5: #{bottleneck_forward.10} parent=0 // pred_fallthru
    _
  // Predicated region
  $region6: #{bottleneck_forward.10} parent=0 // pred_check
    _
  $region7: #{bottleneck_forward.10} parent=0 // pred_check_branch
    %10 = sbr.rel (0) target = $region9
  $region8: #{bottleneck_forward.10} parent=0 // pred_region
    _
  $region9: #{bottleneck_forward.10} parent=0 // pred_fallthru
    _
  %p12 = scmp.eq.s32.totalorder 0, 0
  // Predicated region
  $region10: #{bottleneck_forward.10} parent=0 // pred_check
    %p13 = pneg %p12
  $region11: #{bottleneck_forward.10} parent=0 // pred_check_branch
    %15 = sbr.rel (%p13) target = $region13
  $region12: #{bottleneck_forward.10} parent=0 // pred_region
    %16 = vst [vmem:[#allocation2] sm:$0xff] 0.0
    %17 = vst [vmem:[#allocation2 + $0x8] sm:$0xff] 0.0
    %18 = vst [vmem:[#allocation2 + $0x10] sm:$0xff] 0.0
    %19 = vst [vmem:[#allocation2 + $0x18] sm:$0xff] 0.0
    %20 = vst [vmem:[#allocation2 + $0x20] sm:$0xff] 0.0
    %21 = vst [vmem:[#allocation2 + $0x28] sm:$0xff] 0.0
    %22 = vst [vmem:[#allocation2 + $0x30] sm:$0xff] 0.0
    %23 = vst [vmem:[#allocation2 + $0x38] sm:$0xff] 0.0
    %24 = vst [vmem:[#allocation2 + $0x40] sm:$0xff] 0.0
    %25 = vst [vmem:[#allocation2 + $0x48] sm:$0xff] 0.0
    %26 = vst [vmem:[#allocation2 + $0x50] sm:$0xff] 0.0
    %27 = vst [vmem:[#allocation2 + $0x58] sm:$0xff] 0.0
    %28 = vst [vmem:[#allocation2 + $0x60] sm:$0xff] 0.0
    %29 = vst [vmem:[#allocation2 + $0x68] sm:$0xff] 0.0
    %30 = vst [vmem:[#allocation2 + $0x70] sm:$0xff] 0.0
    %31 = vst [vmem:[#allocation2 + $0x78] sm:$0xff] 0.0
  $region13: #{bottleneck_forward.10} parent=0 // pred_fallthru
    _
  %v32 = vld [vmem:[#allocation2] sm:$0xff]
  %v33 = vld [vmem:[#allocation2 + $0x8] sm:$0xff]
  %v34 = vld [vmem:[#allocation2 + $0x10] sm:$0xff]
  %v35 = vld [vmem:[#allocation2 + $0x18] sm:$0xff]
  %v36 = vld [vmem:[#allocation2 + $0x20] sm:$0xff]
  %v37 = vld [vmem:[#allocation2 + $0x28] sm:$0xff]
  %v38 = vld [vmem:[#allocation2 + $0x30] sm:$0xff]
  %v39 = vld [vmem:[#allocation2 + $0x38] sm:$0xff]
  %v40 = vld [vmem:[#allocation2 + $0x40] sm:$0xff]
  %v41 = vld [vmem:[#allocation2 + $0x48] sm:$0xff]
  %v42 = vld [vmem:[#allocation2 + $0x50] sm:$0xff]
  %v43 = vld [vmem:[#allocation2 + $0x58] sm:$0xff]
  %v44 = vld [vmem:[#allocation2 + $0x60] sm:$0xff]
  %v45 = vld [vmem:[#allocation2 + $0x68] sm:$0xff]
  %v46 = vld [vmem:[#allocation2 + $0x70] sm:$0xff]
  %v47 = vld [vmem:[#allocation2 + $0x78] sm:$0xff]
  %v48 = vld [vmem:[%s0] sm:$0xf]
  %v49 = vld [vmem:[%s0 + $0x4] sm:$0xf]
  %v50 = vld [vmem:[%s0 + $0x8] sm:$0xf]
  %v51 = vld [vmem:[%s0 + $0xc] sm:$0xf]
  %v52 = vld [vmem:[%s0 + $0x10] sm:$0xf]
  %v53 = vld [vmem:[%s0 + $0x14] sm:$0xf]
  %v54 = vld [vmem:[%s0 + $0x18] sm:$0xf]
  %v55 = vld [vmem:[%s0 + $0x1c] sm:$0xf]
  %v56 = vld [vmem:[%s0 + $0x20] sm:$0xf]
  %v57 = vld [vmem:[%s0 + $0x24] sm:$0xf]
  %v58 = vld [vmem:[%s0 + $0x28] sm:$0xf]
  %v59 = vld [vmem:[%s0 + $0x2c] sm:$0xf]
  %v60 = vld [vmem:[%s0 + $0x30] sm:$0xf]
  %v61 = vld [vmem:[%s0 + $0x34] sm:$0xf]
  %v62 = vld [vmem:[%s0 + $0x38] sm:$0xf]
  %v63 = vld [vmem:[%s0 + $0x3c] sm:$0xf]
  %v64 = vld [vmem:[%s1] sm:$0xf]
  %v65 = vld [vmem:[%s1 + $0x4] sm:$0xf]
  %v66 = vld [vmem:[%s1 + $0x8] sm:$0xf]
  %v67 = vld [vmem:[%s1 + $0xc] sm:$0xf]
  %v68 = vld [vmem:[%s1 + $0x10] sm:$0xf]
  %v69 = vld [vmem:[%s1 + $0x14] sm:$0xf]
  %v70 = vld [vmem:[%s1 + $0x18] sm:$0xf]
  %v71 = vld [vmem:[%s1 + $0x1c] sm:$0xf]
  %v72 = vld [vmem:[%s1 + $0x20] sm:$0xf]
  %v73 = vld [vmem:[%s1 + $0x24] sm:$0xf]
  %v74 = vld [vmem:[%s1 + $0x28] sm:$0xf]
  %v75 = vld [vmem:[%s1 + $0x2c] sm:$0xf]
  %v76 = vld [vmem:[%s1 + $0x30] sm:$0xf]
  %v77 = vld [vmem:[%s1 + $0x34] sm:$0xf]
  %v78 = vld [vmem:[%s1 + $0x38] sm:$0xf]
  %v79 = vld [vmem:[%s1 + $0x3c] sm:$0xf]
  %v96 = vunpack.c.l.b16 %v48
  %v97 = vunpack.c.l.b16 %v49
  %v98 = vunpack.c.l.b16 %v50
  %v99 = vunpack.c.l.b16 %v51
  %v100 = vunpack.c.l.b16 %v52
  %v101 = vunpack.c.l.b16 %v53
  %v102 = vunpack.c.l.b16 %v54
  %v103 = vunpack.c.l.b16 %v55
  %v104 = vunpack.c.l.b16 %v56
  %v105 = vunpack.c.l.b16 %v57
  %v106 = vunpack.c.l.b16 %v58
  %v107 = vunpack.c.l.b16 %v59
  %v108 = vunpack.c.l.b16 %v60
  %v109 = vunpack.c.l.b16 %v61
  %v110 = vunpack.c.l.b16 %v62
  %v111 = vunpack.c.l.b16 %v63
  %v112 = vpack.c.b16 %v97, %v96
  %v113 = vpack.c.b16 %v99, %v98
  %v114 = vpack.c.b16 %v101, %v100
  %v115 = vpack.c.b16 %v103, %v102
  %v116 = vpack.c.b16 %v105, %v104
  %v117 = vpack.c.b16 %v107, %v106
  %v118 = vpack.c.b16 %v109, %v108
  %v119 = vpack.c.b16 %v111, %v110
  %v144 = vunpack.c.l.b16 %v64
  %v145 = vunpack.c.l.b16 %v65
  %v146 = vunpack.c.l.b16 %v66
  %v147 = vunpack.c.l.b16 %v67
  %v148 = vunpack.c.l.b16 %v68
  %v149 = vunpack.c.l.b16 %v69
  %v150 = vunpack.c.l.b16 %v70
  %v151 = vunpack.c.l.b16 %v71
  %v152 = vunpack.c.l.b16 %v72
  %v153 = vunpack.c.l.b16 %v73
  %v154 = vunpack.c.l.b16 %v74
  %v155 = vunpack.c.l.b16 %v75
  %v156 = vunpack.c.l.b16 %v76
  %v157 = vunpack.c.l.b16 %v77
  %v158 = vunpack.c.l.b16 %v78
  %v159 = vunpack.c.l.b16 %v79
  %v160 = vpack.c.b16 %v145, %v144
  %v161 = vpack.c.b16 %v147, %v146
  %v162 = vpack.c.b16 %v149, %v148
  %v163 = vpack.c.b16 %v151, %v150
  %v164 = vpack.c.b16 %v153, %v152
  %v165 = vpack.c.b16 %v155, %v154
  %v166 = vpack.c.b16 %v157, %v156
  %v167 = vpack.c.b16 %v159, %v158
  %176 = vmatprep.subr.bf16.mxu0 0
  %177 = vmatpush1.bf16.msra.mxu0 %v160
  %178 = vmatprep.subr.bf16.mxu0 0
  %179 = vmatpush1.bf16.msra.mxu0 %v161
  %180 = vmatprep.subr.bf16.mxu0 0
  %181 = vmatpush1.bf16.msra.mxu0 %v162
  %182 = vmatprep.subr.bf16.mxu0 0
  %183 = vmatpush1.bf16.msra.mxu0 %v163
  %184 = vmatprep.subr.bf16.mxu0 0
  %185 = vmatpush1.bf16.msra.mxu0 %v164
  %186 = vmatprep.subr.bf16.mxu0 0
  %187 = vmatpush1.bf16.msra.mxu0 %v165
  %188 = vmatprep.subr.bf16.mxu0 0
  %189 = vmatpush1.bf16.msra.mxu0 %v166
  %190 = vmatprep.subr.bf16.mxu0 0
  %191 = vmatpush1.bf16.msra.mxu0 %v167
  %192 = vmatprep.subr.bf16.mxu0 0
  %193 = vmatpush1.bf16.msra.mxu0 0
  %194 = vmatprep.subr.bf16.mxu0 0
  %195 = vmatpush1.bf16.msra.mxu0 0
  %196 = vmatprep.subr.bf16.mxu0 0
  %197 = vmatpush1.bf16.msra.mxu0 0
  %198 = vmatprep.subr.bf16.mxu0 0
  %199 = vmatpush1.bf16.msra.mxu0 0
  %200 = vmatprep.subr.bf16.mxu0 0
  %201 = vmatpush1.bf16.msra.mxu0 0
  %202 = vmatprep.subr.bf16.mxu0 0
  %203 = vmatpush1.bf16.msra.mxu0 0
  %204 = vmatprep.subr.bf16.mxu0 0
  %205 = vmatpush1.bf16.msra.mxu0 0
  %206 = vmatprep.subr.bf16.mxu0 0
  %207 = vmatpush1.bf16.msra.mxu0 0
  %208 = vmatprep.mubr.bf16.mxu0 0
  %209 = vmatmul.mubr.bf16.gmra.mrb[0].mxu0 %v112
  %v210 = vpop.f32.mrb[0].mxu0
  %v211 = vadd.f32 0.0, %v210
  %v212 = vpop.f32.mrb[0].mxu0
  %v213 = vpop.f32.mrb[0].mxu0
  %v214 = vadd.f32 0.0, %v213
  %v215 = vpop.f32.mrb[0].mxu0
  %216 = vmatprep.mubr.bf16.mxu0 0
  %217 = vmatmul.mubr.bf16.gmra.mrb[0].mxu0 %v113
  %v218 = vpop.f32.mrb[0].mxu0
  %v219 = vadd.f32 0.0, %v218
  %v220 = vpop.f32.mrb[0].mxu0
  %v221 = vpop.f32.mrb[0].mxu0
  %v222 = vadd.f32 0.0, %v221
  %v223 = vpop.f32.mrb[0].mxu0
  %224 = vmatprep.mubr.bf16.mxu0 0
  %225 = vmatmul.mubr.bf16.gmra.mrb[0].mxu0 %v114
  %v226 = vpop.f32.mrb[0].mxu0
  %v227 = vadd.f32 0.0, %v226
  %v228 = vpop.f32.mrb[0].mxu0
  %v229 = vpop.f32.mrb[0].mxu0
  %v230 = vadd.f32 0.0, %v229
  %v231 = vpop.f32.mrb[0].mxu0
  %232 = vmatprep.mubr.bf16.mxu0 0
  %233 = vmatmul.mubr.bf16.gmra.mrb[0].mxu0 %v115
  %v234 = vpop.f32.mrb[0].mxu0
  %v235 = vadd.f32 0.0, %v234
  %v236 = vpop.f32.mrb[0].mxu0
  %v237 = vpop.f32.mrb[0].mxu0
  %v238 = vadd.f32 0.0, %v237
  %v239 = vpop.f32.mrb[0].mxu0
  %240 = vmatprep.mubr.bf16.mxu0 0
  %241 = vmatmul.mubr.bf16.gmra.mrb[0].mxu0 %v116
  %v242 = vpop.f32.mrb[0].mxu0
  %v243 = vadd.f32 0.0, %v242
  %v244 = vpop.f32.mrb[0].mxu0
  %v245 = vpop.f32.mrb[0].mxu0
  %v246 = vadd.f32 0.0, %v245
  %v247 = vpop.f32.mrb[0].mxu0
  %248 = vmatprep.mubr.bf16.mxu0 0
  %249 = vmatmul.mubr.bf16.gmra.mrb[0].mxu0 %v117
  %v250 = vpop.f32.mrb[0].mxu0
  %v251 = vadd.f32 0.0, %v250
  %v252 = vpop.f32.mrb[0].mxu0
  %v253 = vpop.f32.mrb[0].mxu0
  %v254 = vadd.f32 0.0, %v253
  %v255 = vpop.f32.mrb[0].mxu0
  %256 = vmatprep.mubr.bf16.mxu0 0
  %257 = vmatmul.mubr.bf16.gmra.mrb[0].mxu0 %v118
  %v258 = vpop.f32.mrb[0].mxu0
  %v259 = vadd.f32 0.0, %v258
  %v260 = vpop.f32.mrb[0].mxu0
  %v261 = vpop.f32.mrb[0].mxu0
  %v262 = vadd.f32 0.0, %v261
  %v263 = vpop.f32.mrb[0].mxu0
  %264 = vmatprep.mubr.bf16.mxu0 0
  %265 = vmatmul.mubr.bf16.gmra.mrb[0].mxu0 %v119
  %v266 = vpop.f32.mrb[0].mxu0
  %v267 = vadd.f32 0.0, %v266
  %v268 = vpop.f32.mrb[0].mxu0
  %v269 = vpop.f32.mrb[0].mxu0
  %v270 = vadd.f32 0.0, %v269
  %v271 = vpop.f32.mrb[0].mxu0
  %272 = vdwg.mxu0
  %v273 = vadd.f32 %v32, %v211
  %v274 = vadd.f32 %v33, %v214
  %v275 = vadd.f32 %v34, %v219
  %v276 = vadd.f32 %v35, %v222
  %v277 = vadd.f32 %v36, %v227
  %v278 = vadd.f32 %v37, %v230
  %v279 = vadd.f32 %v38, %v235
  %v280 = vadd.f32 %v39, %v238
  %v281 = vadd.f32 %v40, %v243
  %v282 = vadd.f32 %v41, %v246
  %v283 = vadd.f32 %v42, %v251
  %v284 = vadd.f32 %v43, %v254
  %v285 = vadd.f32 %v44, %v259
  %v286 = vadd.f32 %v45, %v262
  %v287 = vadd.f32 %v46, %v267
  %v288 = vadd.f32 %v47, %v270
  %289 = vst [vmem:[#allocation2] sm:$0xff] %v273
  %290 = vst [vmem:[#allocation2 + $0x8] sm:$0xff] %v274
  %291 = vst [vmem:[#allocation2 + $0x10] sm:$0xff] %v275
  %292 = vst [vmem:[#allocation2 + $0x18] sm:$0xff] %v276
  %293 = vst [vmem:[#allocation2 + $0x20] sm:$0xff] %v277
  %294 = vst [vmem:[#allocation2 + $0x28] sm:$0xff] %v278
  %295 = vst [vmem:[#allocation2 + $0x30] sm:$0xff] %v279
  %296 = vst [vmem:[#allocation2 + $0x38] sm:$0xff] %v280
  %297 = vst [vmem:[#allocation2 + $0x40] sm:$0xff] %v281
  %298 = vst [vmem:[#allocation2 + $0x48] sm:$0xff] %v282
  %299 = vst [vmem:[#allocation2 + $0x50] sm:$0xff] %v283
  %300 = vst [vmem:[#allocation2 + $0x58] sm:$0xff] %v284
  %301 = vst [vmem:[#allocation2 + $0x60] sm:$0xff] %v285
  %302 = vst [vmem:[#allocation2 + $0x68] sm:$0xff] %v286
  %303 = vst [vmem:[#allocation2 + $0x70] sm:$0xff] %v287
  %304 = vst [vmem:[#allocation2 + $0x78] sm:$0xff] %v288
  // Predicated region
  $region14: #{bottleneck_forward.10} parent=0 // pred_check
    %p305 = pneg %p12
  $region15: #{bottleneck_forward.10} parent=0 // pred_check_branch
    %307 = sbr.rel (%p305) target = $region17
  $region16: #{bottleneck_forward.10} parent=0 // pred_region
    %v308 = vld [vmem:[#allocation2] sm:$0xff]
    %v309 = vld [vmem:[#allocation2 + $0x8] sm:$0xff]
    %v310 = vld [vmem:[#allocation2 + $0x10] sm:$0xff]
    %v311 = vld [vmem:[#allocation2 + $0x18] sm:$0xff]
    %v312 = vld [vmem:[#allocation2 + $0x20] sm:$0xff]
    %v313 = vld [vmem:[#allocation2 + $0x28] sm:$0xff]
    %v314 = vld [vmem:[#allocation2 + $0x30] sm:$0xff]
    %v315 = vld [vmem:[#allocation2 + $0x38] sm:$0xff]
    %v316 = vld [vmem:[#allocation2 + $0x40] sm:$0xff]
    %v317 = vld [vmem:[#allocation2 + $0x48] sm:$0xff]
    %v318 = vld [vmem:[#allocation2 + $0x50] sm:$0xff]
    %v319 = vld [vmem:[#allocation2 + $0x58] sm:$0xff]
    %v320 = vld [vmem:[#allocation2 + $0x60] sm:$0xff]
    %v321 = vld [vmem:[#allocation2 + $0x68] sm:$0xff]
    %v322 = vld [vmem:[#allocation2 + $0x70] sm:$0xff]
    %v323 = vld [vmem:[#allocation2 + $0x78] sm:$0xff]
    %v324 = vpack.c.bf16 %v309, %v308
    %v325 = vpack.c.bf16 %v311, %v310
    %v326 = vpack.c.bf16 %v313, %v312
    %v327 = vpack.c.bf16 %v315, %v314
    %v328 = vpack.c.bf16 %v317, %v316
    %v329 = vpack.c.bf16 %v319, %v318
    %v330 = vpack.c.bf16 %v321, %v320
    %v331 = vpack.c.bf16 %v323, %v322
    %v340 = vunpack.c.l.b16 %v324
    %v341 = vunpack.c.h.b16 %v324
    %v342 = vunpack.c.l.b16 %v325
    %v343 = vunpack.c.h.b16 %v325
    %v344 = vunpack.c.l.b16 %v326
    %v345 = vunpack.c.h.b16 %v326
    %v346 = vunpack.c.l.b16 %v327
    %v347 = vunpack.c.h.b16 %v327
    %v348 = vunpack.c.l.b16 %v328
    %v349 = vunpack.c.h.b16 %v328
    %v350 = vunpack.c.l.b16 %v329
    %v351 = vunpack.c.h.b16 %v329
    %v352 = vunpack.c.l.b16 %v330
    %v353 = vunpack.c.h.b16 %v330
    %v354 = vunpack.c.l.b16 %v331
    %v355 = vunpack.c.h.b16 %v331
    %v356 = vpack.c.b16 %v340, %v340
    %v357 = vpack.c.b16 %v341, %v341
    %v358 = vpack.c.b16 %v342, %v342
    %v359 = vpack.c.b16 %v343, %v343
    %v360 = vpack.c.b16 %v344, %v344
    %v361 = vpack.c.b16 %v345, %v345
    %v362 = vpack.c.b16 %v346, %v346
    %v363 = vpack.c.b16 %v347, %v347
    %v364 = vpack.c.b16 %v348, %v348
    %v365 = vpack.c.b16 %v349, %v349
    %v366 = vpack.c.b16 %v350, %v350
    %v367 = vpack.c.b16 %v351, %v351
    %v368 = vpack.c.b16 %v352, %v352
    %v369 = vpack.c.b16 %v353, %v353
    %v370 = vpack.c.b16 %v354, %v354
    %v371 = vpack.c.b16 %v355, %v355
    %388 = vst [vmem:[%s2] sm:$0xf] %v356
    %389 = vst [vmem:[%s2 + $0x4] sm:$0xf] %v357
    %390 = vst [vmem:[%s2 + $0x8] sm:$0xf] %v358
    %391 = vst [vmem:[%s2 + $0xc] sm:$0xf] %v359
    %392 = vst [vmem:[%s2 + $0x10] sm:$0xf] %v360
    %393 = vst [vmem:[%s2 + $0x14] sm:$0xf] %v361
    %394 = vst [vmem:[%s2 + $0x18] sm:$0xf] %v362
    %395 = vst [vmem:[%s2 + $0x1c] sm:$0xf] %v363
    %396 = vst [vmem:[%s2 + $0x20] sm:$0xf] %v364
    %397 = vst [vmem:[%s2 + $0x24] sm:$0xf] %v365
    %398 = vst [vmem:[%s2 + $0x28] sm:$0xf] %v366
    %399 = vst [vmem:[%s2 + $0x2c] sm:$0xf] %v367
    %400 = vst [vmem:[%s2 + $0x30] sm:$0xf] %v368
    %401 = vst [vmem:[%s2 + $0x34] sm:$0xf] %v369
    %402 = vst [vmem:[%s2 + $0x38] sm:$0xf] %v370
    %403 = vst [vmem:[%s2 + $0x3c] sm:$0xf] %v371
  $region17: #{bottleneck_forward.10} parent=0 // pred_fallthru
    _
  // Predicated region
  $region18: #{bottleneck_forward.10} parent=0 // pred_check
    _
  $region19: #{bottleneck_forward.10} parent=0 // pred_check_branch
    %405 = sbr.rel (0) target = $region21
  $region20: #{bottleneck_forward.10} parent=0 // pred_region
    _
  $region21: #{bottleneck_forward.10} parent=0 // pred_fallthru
    _
  // Predicated region
  $region22: #{bottleneck_forward.10} parent=0 // pred_check
    _
  $region23: #{bottleneck_forward.10} parent=0 // pred_check_branch
    %407 = sbr.rel (0) target = $region25
  $region24: #{bottleneck_forward.10} parent=0 // pred_region
    _
  $region25: #{bottleneck_forward.10} parent=0 // pred_fallthru
    _

// kernel: bottleneck_forward.12
$region0: #{bottleneck_forward.12}
  #allocation0 [shape = 'u32[]', space=smem, size = 0x4, offset = 0x4, fixed_abs, tag = 'smem constant byte address 0x4 - core index']
  #allocation1 [shape = 'u32[144,128]{1,0:T(1,128)}', space=vmem, size = 0x12000, scoped, tag = 'internal scratch']
  %s0 = inlined_call_operand.vmem [shape: bf16[128,128], index: 0, kind: input, shape index: {}]
  %s1 = inlined_call_operand.vmem [shape: f32[1,128], index: 1, kind: input, shape index: {}]
  %s2 = inlined_call_operand.vmem [shape: f32[1,128], index: 2, kind: input, shape index: {}]
  %s3 = inlined_call_operand.vmem [shape: bf16[128,128], index: 3, kind: output, shape index: {}]
  %s4 = sld [smem:[#allocation0]]
  $region22: #{bottleneck_forward.12} parent=0
    _
  %s6 = ssub.s32 1, %s4
  %s7 = scalar_select 0, %s6, %s4
  // Predicated region
  $region2: #{bottleneck_forward.12} parent=0 // pred_check
    _
  $region3: #{bottleneck_forward.12} parent=0 // pred_check_branch
    %9 = sbr.rel (0) target = $region5
  $region4: #{bottleneck_forward.12} parent=0 // pred_region
    _
  $region5: #{bottleneck_forward.12} parent=0 // pred_fallthru
    _
  // Predicated region
  $region6: #{bottleneck_forward.12} parent=0 // pred_check
    _
  $region7: #{bottleneck_forward.12} parent=0 // pred_check_branch
    %11 = sbr.rel (0) target = $region9
  $region8: #{bottleneck_forward.12} parent=0 // pred_region
    _
  $region9: #{bottleneck_forward.12} parent=0 // pred_fallthru
    _
  // Predicated region
  $region10: #{bottleneck_forward.12} parent=0 // pred_check
    _
  $region11: #{bottleneck_forward.12} parent=0 // pred_check_branch
    %13 = sbr.rel (0) target = $region13
  $region12: #{bottleneck_forward.12} parent=0 // pred_region
    _
  $region13: #{bottleneck_forward.12} parent=0 // pred_fallthru
    _
  %v14 = vld [vmem:[%s0] sm:$0xf]
  %v15 = vld [vmem:[%s0 + $0x4] sm:$0xf]
  %v16 = vld [vmem:[%s0 + $0x8] sm:$0xf]
  %v17 = vld [vmem:[%s0 + $0xc] sm:$0xf]
  %v18 = vld [vmem:[%s0 + $0x10] sm:$0xf]
  %v19 = vld [vmem:[%s0 + $0x14] sm:$0xf]
  %v20 = vld [vmem:[%s0 + $0x18] sm:$0xf]
  %v21 = vld [vmem:[%s0 + $0x1c] sm:$0xf]
  %v22 = vld [vmem:[%s0 + $0x20] sm:$0xf]
  %v23 = vld [vmem:[%s0 + $0x24] sm:$0xf]
  %v24 = vld [vmem:[%s0 + $0x28] sm:$0xf]
  %v25 = vld [vmem:[%s0 + $0x2c] sm:$0xf]
  %v26 = vld [vmem:[%s0 + $0x30] sm:$0xf]
  %v27 = vld [vmem:[%s0 + $0x34] sm:$0xf]
  %v28 = vld [vmem:[%s0 + $0x38] sm:$0xf]
  %v29 = vld [vmem:[%s0 + $0x3c] sm:$0xf]
  %v30 = vunpack.c.l.bf16 %v14
  %v31 = vunpack.c.l.bf16 %v15
  %v32 = vunpack.c.l.bf16 %v16
  %v33 = vunpack.c.l.bf16 %v17
  %v34 = vunpack.c.l.bf16 %v18
  %v35 = vunpack.c.l.bf16 %v19
  %v36 = vunpack.c.l.bf16 %v20
  %v37 = vunpack.c.l.bf16 %v21
  %v38 = vunpack.c.l.bf16 %v22
  %v39 = vunpack.c.l.bf16 %v23
  %v40 = vunpack.c.l.bf16 %v24
  %v41 = vunpack.c.l.bf16 %v25
  %v42 = vunpack.c.l.bf16 %v26
  %v43 = vunpack.c.l.bf16 %v27
  %v44 = vunpack.c.l.bf16 %v28
  %v45 = vunpack.c.l.bf16 %v29
  %v46 = vld [vmem:[%s1] sm:$0x1]
  %v48 = vlaneseq
  %v49 = vshrl.u32 %v48, 7
  %v50 = vsub.s32 0, %v49
  %v51 = vrot.slane %v46, %v50
  %v53 = vmul.f32 %v30, %v51
  %v54 = vmul.f32 %v31, %v51
  %v55 = vmul.f32 %v32, %v51
  %v56 = vmul.f32 %v33, %v51
  %v57 = vmul.f32 %v34, %v51
  %v58 = vmul.f32 %v35, %v51
  %v59 = vmul.f32 %v36, %v51
  %v60 = vmul.f32 %v37, %v51
  %v61 = vmul.f32 %v38, %v51
  %v62 = vmul.f32 %v39, %v51
  %v63 = vmul.f32 %v40, %v51
  %v64 = vmul.f32 %v41, %v51
  %v65 = vmul.f32 %v42, %v51
  %v66 = vmul.f32 %v43, %v51
  %v67 = vmul.f32 %v44, %v51
  %v68 = vmul.f32 %v45, %v51
  %v69 = vld [vmem:[%s2] sm:$0x1]
  %v71 = vlaneseq
  %v72 = vshrl.u32 %v71, 7
  %v73 = vsub.s32 0, %v72
  %v74 = vrot.slane %v69, %v73
  %v76 = vadd.f32 %v53, %v74
  %v77 = vadd.f32 %v54, %v74
  %v78 = vadd.f32 %v55, %v74
  %v79 = vadd.f32 %v56, %v74
  %v80 = vadd.f32 %v57, %v74
  %v81 = vadd.f32 %v58, %v74
  %v82 = vadd.f32 %v59, %v74
  %v83 = vadd.f32 %v60, %v74
  %v84 = vadd.f32 %v61, %v74
  %v85 = vadd.f32 %v62, %v74
  %v86 = vadd.f32 %v63, %v74
  %v87 = vadd.f32 %v64, %v74
  %v88 = vadd.f32 %v65, %v74
  %v89 = vadd.f32 %v66, %v74
  %v90 = vadd.f32 %v67, %v74
  %v91 = vadd.f32 %v68, %v74
  %v92 = vmax.f32 %v76, 0.0
  %v93 = vmax.f32 %v77, 0.0
  %v94 = vmax.f32 %v78, 0.0
  %v95 = vmax.f32 %v79, 0.0
  %v96 = vmax.f32 %v80, 0.0
  %v97 = vmax.f32 %v81, 0.0
  %v98 = vmax.f32 %v82, 0.0
  %v99 = vmax.f32 %v83, 0.0
  %v100 = vmax.f32 %v84, 0.0
  %v101 = vmax.f32 %v85, 0.0
  %v102 = vmax.f32 %v86, 0.0
  %v103 = vmax.f32 %v87, 0.0
  %v104 = vmax.f32 %v88, 0.0
  %v105 = vmax.f32 %v89, 0.0
  %v106 = vmax.f32 %v90, 0.0
  %v107 = vmax.f32 %v91, 0.0
  %v108 = vpack.c.bf16 %v93, %v92
  %v109 = vpack.c.bf16 %v95, %v94
  %v110 = vpack.c.bf16 %v97, %v96
  %v111 = vpack.c.bf16 %v99, %v98
  %v112 = vpack.c.bf16 %v101, %v100
  %v113 = vpack.c.bf16 %v103, %v102
  %v114 = vpack.c.bf16 %v105, %v104
  %v115 = vpack.c.bf16 %v107, %v106
  %v124 = vunpack.c.l.b16 %v108
  %v125 = vunpack.c.h.b16 %v108
  %v126 = vunpack.c.l.b16 %v109
  %v127 = vunpack.c.h.b16 %v109
  %v128 = vunpack.c.l.b16 %v110
  %v129 = vunpack.c.h.b16 %v110
  %v130 = vunpack.c.l.b16 %v111
  %v131 = vunpack.c.h.b16 %v111
  %v132 = vunpack.c.l.b16 %v112
  %v133 = vunpack.c.h.b16 %v112
  %v134 = vunpack.c.l.b16 %v113
  %v135 = vunpack.c.h.b16 %v113
  %v136 = vunpack.c.l.b16 %v114
  %v137 = vunpack.c.h.b16 %v114
  %v138 = vunpack.c.l.b16 %v115
  %v139 = vunpack.c.h.b16 %v115
  %v140 = vpack.c.b16 %v124, %v124
  %v141 = vpack.c.b16 %v125, %v125
  %v142 = vpack.c.b16 %v126, %v126
  %v143 = vpack.c.b16 %v127, %v127
  %v144 = vpack.c.b16 %v128, %v128
  %v145 = vpack.c.b16 %v129, %v129
  %v146 = vpack.c.b16 %v130, %v130
  %v147 = vpack.c.b16 %v131, %v131
  %v148 = vpack.c.b16 %v132, %v132
  %v149 = vpack.c.b16 %v133, %v133
  %v150 = vpack.c.b16 %v134, %v134
  %v151 = vpack.c.b16 %v135, %v135
  %v152 = vpack.c.b16 %v136, %v136
  %v153 = vpack.c.b16 %v137, %v137
  %v154 = vpack.c.b16 %v138, %v138
  %v155 = vpack.c.b16 %v139, %v139
  %172 = vst [vmem:[%s3] sm:$0xf] %v140
  %173 = vst [vmem:[%s3 + $0x4] sm:$0xf] %v141
  %174 = vst [vmem:[%s3 + $0x8] sm:$0xf] %v142
  %175 = vst [vmem:[%s3 + $0xc] sm:$0xf] %v143
  %176 = vst [vmem:[%s3 + $0x10] sm:$0xf] %v144
  %177 = vst [vmem:[%s3 + $0x14] sm:$0xf] %v145
  %178 = vst [vmem:[%s3 + $0x18] sm:$0xf] %v146
  %179 = vst [vmem:[%s3 + $0x1c] sm:$0xf] %v147
  %180 = vst [vmem:[%s3 + $0x20] sm:$0xf] %v148
  %181 = vst [vmem:[%s3 + $0x24] sm:$0xf] %v149
  %182 = vst [vmem:[%s3 + $0x28] sm:$0xf] %v150
  %183 = vst [vmem:[%s3 + $0x2c] sm:$0xf] %v151
  %184 = vst [vmem:[%s3 + $0x30] sm:$0xf] %v152
  %185 = vst [vmem:[%s3 + $0x34] sm:$0xf] %v153
  %186 = vst [vmem:[%s3 + $0x38] sm:$0xf] %v154
  %187 = vst [vmem:[%s3 + $0x3c] sm:$0xf] %v155
  // Predicated region
  $region14: #{bottleneck_forward.12} parent=0 // pred_check
    _
  $region15: #{bottleneck_forward.12} parent=0 // pred_check_branch
    %189 = sbr.rel (0) target = $region17
  $region16: #{bottleneck_forward.12} parent=0 // pred_region
    _
  $region17: #{bottleneck_forward.12} parent=0 // pred_fallthru
    _
  // Predicated region
  $region18: #{bottleneck_forward.12} parent=0 // pred_check
    _
  $region19: #{bottleneck_forward.12} parent=0 // pred_check_branch
    %191 = sbr.rel (0) target = $region21
  $region20: #{bottleneck_forward.12} parent=0 // pred_region
    _
  $region21: #{bottleneck_forward.12} parent=0 // pred_fallthru
    _

// kernel: bottleneck_forward.13
$region0: #{bottleneck_forward.13}
  #allocation0 [shape = 'u32[]', space=smem, size = 0x4, offset = 0x4, fixed_abs, tag = 'smem constant byte address 0x4 - core index']
  #allocation1 [shape = 'u32[144,128]{1,0:T(1,128)}', space=vmem, size = 0x12000, scoped, tag = 'internal scratch']
  #allocation2 [shape = 'f32[512,128]{1,0:T(8,128)}', space=vmem, size = 0x40000, scoped, tag = 'scratch operand']
  %s0 = inlined_call_operand.vmem [shape: bf16[512,256], index: 0, kind: input, shape index: {}]
  %s1 = inlined_call_operand.vmem [shape: bf16[256,128], index: 1, kind: input, shape index: {}]
  %s2 = inlined_call_operand.vmem [shape: bf16[512,128], index: 2, kind: output, shape index: {}]
  %s3 = sld [smem:[#allocation0]]
  $region26: #{bottleneck_forward.13} parent=0
    _
  %s5 = ssub.s32 1, %s3
  %s6 = scalar_select 0, %s5, %s3
  // Predicated region
  $region2: #{bottleneck_forward.13} parent=0 // pred_check
    _
  $region3: #{bottleneck_forward.13} parent=0 // pred_check_branch
    %8 = sbr.rel (0) target = $region5
  $region4: #{bottleneck_forward.13} parent=0 // pred_region
    _
  $region5: #{bottleneck_forward.13} parent=0 // pred_fallthru
    _
  // Predicated region
  $region6: #{bottleneck_forward.13} parent=0 // pred_check
    _
  $region7: #{bottleneck_forward.13} parent=0 // pred_check_branch
    %10 = sbr.rel (0) target = $region9
  $region8: #{bottleneck_forward.13} parent=0 // pred_region
    _
  $region9: #{bottleneck_forward.13} parent=0 // pred_fallthru
    _
  %p12 = scmp.eq.s32.totalorder 0, 0
  // Predicated region
  $region10: #{bottleneck_forward.13} parent=0 // pred_check
    %p13 = pneg %p12
  $region11: #{bottleneck_forward.13} parent=0 // pred_check_branch
    %15 = sbr.rel (%p13) target = $region13
  $region12: #{bottleneck_forward.13} parent=0 // pred_region
    %16 = vst [vmem:[#allocation2] sm:$0xff] 0.0
    %17 = vst [vmem:[#allocation2 + $0x8] sm:$0xff] 0.0
    %18 = vst [vmem:[#allocation2 + $0x10] sm:$0xff] 0.0
    %19 = vst [vmem:[#allocation2 + $0x18] sm:$0xff] 0.0
    %20 = vst [vmem:[#allocation2 + $0x20] sm:$0xff] 0.0
    %21 = vst [vmem:[#allocation2 + $0x28] sm:$0xff] 0.0
    %22 = vst [vmem:[#allocation2 + $0x30] sm:$0xff] 0.0
    %23 = vst [vmem:[#allocation2 + $0x38] sm:$0xff] 0.0
    %24 = vst [vmem:[#allocation2 + $0x40] sm:$0xff] 0.0
    %25 = vst [vmem:[#allocation2 + $0x48] sm:$0xff] 0.0
    %26 = vst [vmem:[#allocation2 + $0x50] sm:$0xff] 0.0
    %27 = vst [vmem:[#allocation2 + $0x58] sm:$0xff] 0.0
    %28 = vst [vmem:[#allocation2 + $0x60] sm:$0xff] 0.0
    %29 = vst [vmem:[#allocation2 + $0x68] sm:$0xff] 0.0
    %30 = vst [vmem:[#allocation2 + $0x70] sm:$0xff] 0.0
    %31 = vst [vmem:[#allocation2 + $0x78] sm:$0xff] 0.0
    %32 = vst [vmem:[#allocation2 + $0x80] sm:$0xff] 0.0
    %33 = vst [vmem:[#allocation2 + $0x88] sm:$0xff] 0.0
    %34 = vst [vmem:[#allocation2 + $0x90] sm:$0xff] 0.0
    %35 = vst [vmem:[#allocation2 + $0x98] sm:$0xff] 0.0
    %36 = vst [vmem:[#allocation2 + $0xa0] sm:$0xff] 0.0
    %37 = vst [vmem:[#allocation2 + $0xa8] sm:$0xff] 0.0
    %38 = vst [vmem:[#allocation2 + $0xb0] sm:$0xff] 0.0
    %39 = vst [vmem:[#allocation2 + $0xb8] sm:$0xff] 0.0
    %40 = vst [vmem:[#allocation2 + $0xc0] sm:$0xff] 0.0
    %41 = vst [vmem:[#allocation2 + $0xc8] sm:$0xff] 0.0
    %42 = vst [vmem:[#allocation2 + $0xd0] sm:$0xff] 0.0
    %43 = vst [vmem:[#allocation2 + $0xd8] sm:$0xff] 0.0
    %44 = vst [vmem:[#allocation2 + $0xe0] sm:$0xff] 0.0
    %45 = vst [vmem:[#allocation2 + $0xe8] sm:$0xff] 0.0
    %46 = vst [vmem:[#allocation2 + $0xf0] sm:$0xff] 0.0
    %47 = vst [vmem:[#allocation2 + $0xf8] sm:$0xff] 0.0
    %48 = vst [vmem:[#allocation2 + $0x100] sm:$0xff] 0.0
    %49 = vst [vmem:[#allocation2 + $0x108] sm:$0xff] 0.0
    %50 = vst [vmem:[#allocation2 + $0x110] sm:$0xff] 0.0
    %51 = vst [vmem:[#allocation2 + $0x118] sm:$0xff] 0.0
    %52 = vst [vmem:[#allocation2 + $0x120] sm:$0xff] 0.0
    %53 = vst [vmem:[#allocation2 + $0x128] sm:$0xff] 0.0
    %54 = vst [vmem:[#allocation2 + $0x130] sm:$0xff] 0.0
    %55 = vst [vmem:[#allocation2 + $0x138] sm:$0xff] 0.0
    %56 = vst [vmem:[#allocation2 + $0x140] sm:$0xff] 0.0
    %57 = vst [vmem:[#allocation2 + $0x148] sm:$0xff] 0.0
    %58 = vst [vmem:[#allocation2 + $0x150] sm:$0xff] 0.0
    %59 = vst [vmem:[#allocation2 + $0x158] sm:$0xff] 0.0
    %60 = vst [vmem:[#allocation2 + $0x160] sm:$0xff] 0.0
    %61 = vst [vmem:[#allocation2 + $0x168] sm:$0xff] 0.0
    %62 = vst [vmem:[#allocation2 + $0x170] sm:$0xff] 0.0
    %63 = vst [vmem:[#allocation2 + $0x178] sm:$0xff] 0.0
    %64 = vst [vmem:[#allocation2 + $0x180] sm:$0xff] 0.0
    %65 = vst [vmem:[#allocation2 + $0x188] sm:$0xff] 0.0
    %66 = vst [vmem:[#allocation2 + $0x190] sm:$0xff] 0.0
    %67 = vst [vmem:[#allocation2 + $0x198] sm:$0xff] 0.0
    %68 = vst [vmem:[#allocation2 + $0x1a0] sm:$0xff] 0.0
    %69 = vst [vmem:[#allocation2 + $0x1a8] sm:$0xff] 0.0
    %70 = vst [vmem:[#allocation2 + $0x1b0] sm:$0xff] 0.0
    %71 = vst [vmem:[#allocation2 + $0x1b8] sm:$0xff] 0.0
    %72 = vst [vmem:[#allocation2 + $0x1c0] sm:$0xff] 0.0
    %73 = vst [vmem:[#allocation2 + $0x1c8] sm:$0xff] 0.0
    %74 = vst [vmem:[#allocation2 + $0x1d0] sm:$0xff] 0.0
    %75 = vst [vmem:[#allocation2 + $0x1d8] sm:$0xff] 0.0
    %76 = vst [vmem:[#allocation2 + $0x1e0] sm:$0xff] 0.0
    %77 = vst [vmem:[#allocation2 + $0x1e8] sm:$0xff] 0.0
    %78 = vst [vmem:[#allocation2 + $0x1f0] sm:$0xff] 0.0
    %79 = vst [vmem:[#allocation2 + $0x1f8] sm:$0xff] 0.0
  $region13: #{bottleneck_forward.13} parent=0 // pred_fallthru
    _
  %v80 = vld [vmem:[#allocation2] sm:$0xff]
  %v81 = vld [vmem:[#allocation2 + $0x8] sm:$0xff]
  %v82 = vld [vmem:[#allocation2 + $0x10] sm:$0xff]
  %v83 = vld [vmem:[#allocation2 + $0x18] sm:$0xff]
  %v84 = vld [vmem:[#allocation2 + $0x20] sm:$0xff]
  %v85 = vld [vmem:[#allocation2 + $0x28] sm:$0xff]
  %v86 = vld [vmem:[#allocation2 + $0x30] sm:$0xff]
  %v87 = vld [vmem:[#allocation2 + $0x38] sm:$0xff]
  %v88 = vld [vmem:[#allocation2 + $0x40] sm:$0xff]
  %v89 = vld [vmem:[#allocation2 + $0x48] sm:$0xff]
  %v90 = vld [vmem:[#allocation2 + $0x50] sm:$0xff]
  %v91 = vld [vmem:[#allocation2 + $0x58] sm:$0xff]
  %v92 = vld [vmem:[#allocation2 + $0x60] sm:$0xff]
  %v93 = vld [vmem:[#allocation2 + $0x68] sm:$0xff]
  %v94 = vld [vmem:[#allocation2 + $0x70] sm:$0xff]
  %v95 = vld [vmem:[#allocation2 + $0x78] sm:$0xff]
  %v96 = vld [vmem:[#allocation2 + $0x80] sm:$0xff]
  %v97 = vld [vmem:[#allocation2 + $0x88] sm:$0xff]
  %v98 = vld [vmem:[#allocation2 + $0x90] sm:$0xff]
  %v99 = vld [vmem:[#allocation2 + $0x98] sm:$0xff]
  %v100 = vld [vmem:[#allocation2 + $0xa0] sm:$0xff]
  %v101 = vld [vmem:[#allocation2 + $0xa8] sm:$0xff]
  %v102 = vld [vmem:[#allocation2 + $0xb0] sm:$0xff]
  %v103 = vld [vmem:[#allocation2 + $0xb8] sm:$0xff]
  %v104 = vld [vmem:[#allocation2 + $0xc0] sm:$0xff]
  %v105 = vld [vmem:[#allocation2 + $0xc8] sm:$0xff]
  %v106 = vld [vmem:[#allocation2 + $0xd0] sm:$0xff]
  %v107 = vld [vmem:[#allocation2 + $0xd8] sm:$0xff]
  %v108 = vld [vmem:[#allocation2 + $0xe0] sm:$0xff]
  %v109 = vld [vmem:[#allocation2 + $0xe8] sm:$0xff]
  %v110 = vld [vmem:[#allocation2 + $0xf0] sm:$0xff]
  %v111 = vld [vmem:[#allocation2 + $0xf8] sm:$0xff]
  %v112 = vld [vmem:[#allocation2 + $0x100] sm:$0xff]
  %v113 = vld [vmem:[#allocation2 + $0x108] sm:$0xff]
  %v114 = vld [vmem:[#allocation2 + $0x110] sm:$0xff]
  %v115 = vld [vmem:[#allocation2 + $0x118] sm:$0xff]
  %v116 = vld [vmem:[#allocation2 + $0x120] sm:$0xff]
  %v117 = vld [vmem:[#allocation2 + $0x128] sm:$0xff]
  %v118 = vld [vmem:[#allocation2 + $0x130] sm:$0xff]
  %v119 = vld [vmem:[#allocation2 + $0x138] sm:$0xff]
  %v120 = vld [vmem:[#allocation2 + $0x140] sm:$0xff]
  %v121 = vld [vmem:[#allocation2 + $0x148] sm:$0xff]
  %v122 = vld [vmem:[#allocation2 + $0x150] sm:$0xff]
  %v123 = vld [vmem:[#allocation2 + $0x158] sm:$0xff]
  %v124 = vld [vmem:[#allocation2 + $0x160] sm:$0xff]
  %v125 = vld [vmem:[#allocation2 + $0x168] sm:$0xff]
  %v126 = vld [vmem:[#allocation2 + $0x170] sm:$0xff]
  %v127 = vld [vmem:[#allocation2 + $0x178] sm:$0xff]
  %v128 = vld [vmem:[#allocation2 + $0x180] sm:$0xff]
  %v129 = vld [vmem:[#allocation2 + $0x188] sm:$0xff]
  %v130 = vld [vmem:[#allocation2 + $0x190] sm:$0xff]
  %v131 = vld [vmem:[#allocation2 + $0x198] sm:$0xff]
  %v132 = vld [vmem:[#allocation2 + $0x1a0] sm:$0xff]
  %v133 = vld [vmem:[#allocation2 + $0x1a8] sm:$0xff]
  %v134 = vld [vmem:[#allocation2 + $0x1b0] sm:$0xff]
  %v135 = vld [vmem:[#allocation2 + $0x1b8] sm:$0xff]
  %v136 = vld [vmem:[#allocation2 + $0x1c0] sm:$0xff]
  %v137 = vld [vmem:[#allocation2 + $0x1c8] sm:$0xff]
  %v138 = vld [vmem:[#allocation2 + $0x1d0] sm:$0xff]
  %v139 = vld [vmem:[#allocation2 + $0x1d8] sm:$0xff]
  %v140 = vld [vmem:[#allocation2 + $0x1e0] sm:$0xff]
  %v141 = vld [vmem:[#allocation2 + $0x1e8] sm:$0xff]
  %v142 = vld [vmem:[#allocation2 + $0x1f0] sm:$0xff]
  %v143 = vld [vmem:[#allocation2 + $0x1f8] sm:$0xff]
  %v144 = vld [vmem:[%s0] sm:$0xff]
  %v145 = vld [vmem:[%s0 + $0x8] sm:$0xff]
  %v146 = vld [vmem:[%s0 + $0x10] sm:$0xff]
  %v147 = vld [vmem:[%s0 + $0x18] sm:$0xff]
  %v148 = vld [vmem:[%s0 + $0x20] sm:$0xff]
  %v149 = vld [vmem:[%s0 + $0x28] sm:$0xff]
  %v150 = vld [vmem:[%s0 + $0x30] sm:$0xff]
  %v151 = vld [vmem:[%s0 + $0x38] sm:$0xff]
  %v152 = vld [vmem:[%s0 + $0x40] sm:$0xff]
  %v153 = vld [vmem:[%s0 + $0x48] sm:$0xff]
  %v154 = vld [vmem:[%s0 + $0x50] sm:$0xff]
  %v155 = vld [vmem:[%s0 + $0x58] sm:$0xff]
  %v156 = vld [vmem:[%s0 + $0x60] sm:$0xff]
  %v157 = vld [vmem:[%s0 + $0x68] sm:$0xff]
  %v158 = vld [vmem:[%s0 + $0x70] sm:$0xff]
  %v159 = vld [vmem:[%s0 + $0x78] sm:$0xff]
  %v160 = vld [vmem:[%s0 + $0x80] sm:$0xff]
  %v161 = vld [vmem:[%s0 + $0x88] sm:$0xff]
  %v162 = vld [vmem:[%s0 + $0x90] sm:$0xff]
  %v163 = vld [vmem:[%s0 + $0x98] sm:$0xff]
  %v164 = vld [vmem:[%s0 + $0xa0] sm:$0xff]
  %v165 = vld [vmem:[%s0 + $0xa8] sm:$0xff]
  %v166 = vld [vmem:[%s0 + $0xb0] sm:$0xff]
  %v167 = vld [vmem:[%s0 + $0xb8] sm:$0xff]
  %v168 = vld [vmem:[%s0 + $0xc0] sm:$0xff]
  %v169 = vld [vmem:[%s0 + $0xc8] sm:$0xff]
  %v170 = vld [vmem:[%s0 + $0xd0] sm:$0xff]
  %v171 = vld [vmem:[%s0 + $0xd8] sm:$0xff]
  %v172 = vld [vmem:[%s0 + $0xe0] sm:$0xff]
  %v173 = vld [vmem:[%s0 + $0xe8] sm:$0xff]
  %v174 = vld [vmem:[%s0 + $0xf0] sm:$0xff]
  %v175 = vld [vmem:[%s0 + $0xf8] sm:$0xff]
  %v176 = vld [vmem:[%s0 + $0x100] sm:$0xff]
  %v177 = vld [vmem:[%s0 + $0x108] sm:$0xff]
  %v178 = vld [vmem:[%s0 + $0x110] sm:$0xff]
  %v179 = vld [vmem:[%s0 + $0x118] sm:$0xff]
  %v180 = vld [vmem:[%s0 + $0x120] sm:$0xff]
  %v181 = vld [vmem:[%s0 + $0x128] sm:$0xff]
  %v182 = vld [vmem:[%s0 + $0x130] sm:$0xff]
  %v183 = vld [vmem:[%s0 + $0x138] sm:$0xff]
  %v184 = vld [vmem:[%s0 + $0x140] sm:$0xff]
  %v185 = vld [vmem:[%s0 + $0x148] sm:$0xff]
  %v186 = vld [vmem:[%s0 + $0x150] sm:$0xff]
  %v187 = vld [vmem:[%s0 + $0x158] sm:$0xff]
  %v188 = vld [vmem:[%s0 + $0x160] sm:$0xff]
  %v189 = vld [vmem:[%s0 + $0x168] sm:$0xff]
  %v190 = vld [vmem:[%s0 + $0x170] sm:$0xff]
  %v191 = vld [vmem:[%s0 + $0x178] sm:$0xff]
  %v192 = vld [vmem:[%s0 + $0x180] sm:$0xff]
  %v193 = vld [vmem:[%s0 + $0x188] sm:$0xff]
  %v194 = vld [vmem:[%s0 + $0x190] sm:$0xff]
  %v195 = vld [vmem:[%s0 + $0x198] sm:$0xff]
  %v196 = vld [vmem:[%s0 + $0x1a0] sm:$0xff]
  %v197 = vld [vmem:[%s0 + $0x1a8] sm:$0xff]
  %v198 = vld [vmem:[%s0 + $0x1b0] sm:$0xff]
  %v199 = vld [vmem:[%s0 + $0x1b8] sm:$0xff]
  %v200 = vld [vmem:[%s0 + $0x1c0] sm:$0xff]
  %v201 = vld [vmem:[%s0 + $0x1c8] sm:$0xff]
  %v202 = vld [vmem:[%s0 + $0x1d0] sm:$0xff]
  %v203 = vld [vmem:[%s0 + $0x1d8] sm:$0xff]
  %v204 = vld [vmem:[%s0 + $0x1e0] sm:$0xff]
  %v205 = vld [vmem:[%s0 + $0x1e8] sm:$0xff]
  %v206 = vld [vmem:[%s0 + $0x1f0] sm:$0xff]
  %v207 = vld [vmem:[%s0 + $0x1f8] sm:$0xff]
  %v208 = vld [vmem:[%s1] sm:$0xf]
  %v209 = vld [vmem:[%s1 + $0x4] sm:$0xf]
  %v210 = vld [vmem:[%s1 + $0x8] sm:$0xf]
  %v211 = vld [vmem:[%s1 + $0xc] sm:$0xf]
  %v212 = vld [vmem:[%s1 + $0x10] sm:$0xf]
  %v213 = vld [vmem:[%s1 + $0x14] sm:$0xf]
  %v214 = vld [vmem:[%s1 + $0x18] sm:$0xf]
  %v215 = vld [vmem:[%s1 + $0x1c] sm:$0xf]
  %v216 = vld [vmem:[%s1 + $0x20] sm:$0xf]
  %v217 = vld [vmem:[%s1 + $0x24] sm:$0xf]
  %v218 = vld [vmem:[%s1 + $0x28] sm:$0xf]
  %v219 = vld [vmem:[%s1 + $0x2c] sm:$0xf]
  %v220 = vld [vmem:[%s1 + $0x30] sm:$0xf]
  %v221 = vld [vmem:[%s1 + $0x34] sm:$0xf]
  %v222 = vld [vmem:[%s1 + $0x38] sm:$0xf]
  %v223 = vld [vmem:[%s1 + $0x3c] sm:$0xf]
  %v224 = vld [vmem:[%s1 + $0x40] sm:$0xf]
  %v225 = vld [vmem:[%s1 + $0x44] sm:$0xf]
  %v226 = vld [vmem:[%s1 + $0x48] sm:$0xf]
  %v227 = vld [vmem:[%s1 + $0x4c] sm:$0xf]
  %v228 = vld [vmem:[%s1 + $0x50] sm:$0xf]
  %v229 = vld [vmem:[%s1 + $0x54] sm:$0xf]
  %v230 = vld [vmem:[%s1 + $0x58] sm:$0xf]
  %v231 = vld [vmem:[%s1 + $0x5c] sm:$0xf]
  %v232 = vld [vmem:[%s1 + $0x60] sm:$0xf]
  %v233 = vld [vmem:[%s1 + $0x64] sm:$0xf]
  %v234 = vld [vmem:[%s1 + $0x68] sm:$0xf]
  %v235 = vld [vmem:[%s1 + $0x6c] sm:$0xf]
  %v236 = vld [vmem:[%s1 + $0x70] sm:$0xf]
  %v237 = vld [vmem:[%s1 + $0x74] sm:$0xf]
  %v238 = vld [vmem:[%s1 + $0x78] sm:$0xf]
  %v239 = vld [vmem:[%s1 + $0x7c] sm:$0xf]
  %v304 = vunpack.c.l.b16 %v144
  %v305 = vunpack.c.h.b16 %v144
  %v306 = vunpack.c.l.b16 %v145
  %v307 = vunpack.c.h.b16 %v145
  %v308 = vunpack.c.l.b16 %v146
  %v309 = vunpack.c.h.b16 %v146
  %v310 = vunpack.c.l.b16 %v147
  %v311 = vunpack.c.h.b16 %v147
  %v312 = vunpack.c.l.b16 %v148
  %v313 = vunpack.c.h.b16 %v148
  %v314 = vunpack.c.l.b16 %v149
  %v315 = vunpack.c.h.b16 %v149
  %v316 = vunpack.c.l.b16 %v150
  %v317 = vunpack.c.h.b16 %v150
  %v318 = vunpack.c.l.b16 %v151
  %v319 = vunpack.c.h.b16 %v151
  %v320 = vunpack.c.l.b16 %v152
  %v321 = vunpack.c.h.b16 %v152
  %v322 = vunpack.c.l.b16 %v153
  %v323 = vunpack.c.h.b16 %v153
  %v324 = vunpack.c.l.b16 %v154
  %v325 = vunpack.c.h.b16 %v154
  %v326 = vunpack.c.l.b16 %v155
  %v327 = vunpack.c.h.b16 %v155
  %v328 = vunpack.c.l.b16 %v156
  %v329 = vunpack.c.h.b16 %v156
  %v330 = vunpack.c.l.b16 %v157
  %v331 = vunpack.c.h.b16 %v157
  %v332 = vunpack.c.l.b16 %v158
  %v333 = vunpack.c.h.b16 %v158
  %v334 = vunpack.c.l.b16 %v159
  %v335 = vunpack.c.h.b16 %v159
  %v336 = vunpack.c.l.b16 %v160
  %v337 = vunpack.c.h.b16 %v160
  %v338 = vunpack.c.l.b16 %v161
  %v339 = vunpack.c.h.b16 %v161
  %v340 = vunpack.c.l.b16 %v162
  %v341 = vunpack.c.h.b16 %v162
  %v342 = vunpack.c.l.b16 %v163
  %v343 = vunpack.c.h.b16 %v163
  %v344 = vunpack.c.l.b16 %v164
  %v345 = vunpack.c.h.b16 %v164
  %v346 = vunpack.c.l.b16 %v165
  %v347 = vunpack.c.h.b16 %v165
  %v348 = vunpack.c.l.b16 %v166
  %v349 = vunpack.c.h.b16 %v166
  %v350 = vunpack.c.l.b16 %v167
  %v351 = vunpack.c.h.b16 %v167
  %v352 = vunpack.c.l.b16 %v168
  %v353 = vunpack.c.h.b16 %v168
  %v354 = vunpack.c.l.b16 %v169
  %v355 = vunpack.c.h.b16 %v169
  %v356 = vunpack.c.l.b16 %v170
  %v357 = vunpack.c.h.b16 %v170
  %v358 = vunpack.c.l.b16 %v171
  %v359 = vunpack.c.h.b16 %v171
  %v360 = vunpack.c.l.b16 %v172
  %v361 = vunpack.c.h.b16 %v172
  %v362 = vunpack.c.l.b16 %v173
  %v363 = vunpack.c.h.b16 %v173
  %v364 = vunpack.c.l.b16 %v174
  %v365 = vunpack.c.h.b16 %v174
  %v366 = vunpack.c.l.b16 %v175
  %v367 = vunpack.c.h.b16 %v175
  %v368 = vunpack.c.l.b16 %v176
  %v369 = vunpack.c.h.b16 %v176
  %v370 = vunpack.c.l.b16 %v177
  %v371 = vunpack.c.h.b16 %v177
  %v372 = vunpack.c.l.b16 %v178
  %v373 = vunpack.c.h.b16 %v178
  %v374 = vunpack.c.l.b16 %v179
  %v375 = vunpack.c.h.b16 %v179
  %v376 = vunpack.c.l.b16 %v180
  %v377 = vunpack.c.h.b16 %v180
  %v378 = vunpack.c.l.b16 %v181
  %v379 = vunpack.c.h.b16 %v181
  %v380 = vunpack.c.l.b16 %v182
  %v381 = vunpack.c.h.b16 %v182
  %v382 = vunpack.c.l.b16 %v183
  %v383 = vunpack.c.h.b16 %v183
  %v384 = vunpack.c.l.b16 %v184
  %v385 = vunpack.c.h.b16 %v184
  %v386 = vunpack.c.l.b16 %v185
  %v387 = vunpack.c.h.b16 %v185
  %v388 = vunpack.c.l.b16 %v186
  %v389 = vunpack.c.h.b16 %v186
  %v390 = vunpack.c.l.b16 %v187
  %v391 = vunpack.c.h.b16 %v187
  %v392 = vunpack.c.l.b16 %v188
  %v393 = vunpack.c.h.b16 %v188
  %v394 = vunpack.c.l.b16 %v189
  %v395 = vunpack.c.h.b16 %v189
  %v396 = vunpack.c.l.b16 %v190
  %v397 = vunpack.c.h.b16 %v190
  %v398 = vunpack.c.l.b16 %v191
  %v399 = vunpack.c.h.b16 %v191
  %v400 = vunpack.c.l.b16 %v192
  %v401 = vunpack.c.h.b16 %v192
  %v402 = vunpack.c.l.b16 %v193
  %v403 = vunpack.c.h.b16 %v193
  %v404 = vunpack.c.l.b16 %v194
  %v405 = vunpack.c.h.b16 %v194
  %v406 = vunpack.c.l.b16 %v195
  %v407 = vunpack.c.h.b16 %v195
  %v408 = vunpack.c.l.b16 %v196
  %v409 = vunpack.c.h.b16 %v196
  %v410 = vunpack.c.l.b16 %v197
  %v411 = vunpack.c.h.b16 %v197
  %v412 = vunpack.c.l.b16 %v198
  %v413 = vunpack.c.h.b16 %v198
  %v414 = vunpack.c.l.b16 %v199
  %v415 = vunpack.c.h.b16 %v199
  %v416 = vunpack.c.l.b16 %v200
  %v417 = vunpack.c.h.b16 %v200
  %v418 = vunpack.c.l.b16 %v201
  %v419 = vunpack.c.h.b16 %v201
  %v420 = vunpack.c.l.b16 %v202
  %v421 = vunpack.c.h.b16 %v202
  %v422 = vunpack.c.l.b16 %v203
  %v423 = vunpack.c.h.b16 %v203
  %v424 = vunpack.c.l.b16 %v204
  %v425 = vunpack.c.h.b16 %v204
  %v426 = vunpack.c.l.b16 %v205
  %v427 = vunpack.c.h.b16 %v205
  %v428 = vunpack.c.l.b16 %v206
  %v429 = vunpack.c.h.b16 %v206
  %v430 = vunpack.c.l.b16 %v207
  %v431 = vunpack.c.h.b16 %v207
  %v432 = vpack.c.b16 %v306, %v304
  %v433 = vpack.c.b16 %v307, %v305
  %v434 = vpack.c.b16 %v310, %v308
  %v435 = vpack.c.b16 %v311, %v309
  %v436 = vpack.c.b16 %v314, %v312
  %v437 = vpack.c.b16 %v315, %v313
  %v438 = vpack.c.b16 %v318, %v316
  %v439 = vpack.c.b16 %v319, %v317
  %v440 = vpack.c.b16 %v322, %v320
  %v441 = vpack.c.b16 %v323, %v321
  %v442 = vpack.c.b16 %v326, %v324
  %v443 = vpack.c.b16 %v327, %v325
  %v444 = vpack.c.b16 %v330, %v328
  %v445 = vpack.c.b16 %v331, %v329
  %v446 = vpack.c.b16 %v334, %v332
  %v447 = vpack.c.b16 %v335, %v333
  %v448 = vpack.c.b16 %v338, %v336
  %v449 = vpack.c.b16 %v339, %v337
  %v450 = vpack.c.b16 %v342, %v340
  %v451 = vpack.c.b16 %v343, %v341
  %v452 = vpack.c.b16 %v346, %v344
  %v453 = vpack.c.b16 %v347, %v345
  %v454 = vpack.c.b16 %v350, %v348
  %v455 = vpack.c.b16 %v351, %v349
  %v456 = vpack.c.b16 %v354, %v352
  %v457 = vpack.c.b16 %v355, %v353
  %v458 = vpack.c.b16 %v358, %v356
  %v459 = vpack.c.b16 %v359, %v357
  %v460 = vpack.c.b16 %v362, %v360
  %v461 = vpack.c.b16 %v363, %v361
  %v462 = vpack.c.b16 %v366, %v364
  %v463 = vpack.c.b16 %v367, %v365
  %v464 = vpack.c.b16 %v370, %v368
  %v465 = vpack.c.b16 %v371, %v369
  %v466 = vpack.c.b16 %v374, %v372
  %v467 = vpack.c.b16 %v375, %v373
  %v468 = vpack.c.b16 %v378, %v376
  %v469 = vpack.c.b16 %v379, %v377
  %v470 = vpack.c.b16 %v382, %v380
  %v471 = vpack.c.b16 %v383, %v381
  %v472 = vpack.c.b16 %v386, %v384
  %v473 = vpack.c.b16 %v387, %v385
  %v474 = vpack.c.b16 %v390, %v388
  %v475 = vpack.c.b16 %v391, %v389
  %v476 = vpack.c.b16 %v394, %v392
  %v477 = vpack.c.b16 %v395, %v393
  %v478 = vpack.c.b16 %v398, %v396
  %v479 = vpack.c.b16 %v399, %v397
  %v480 = vpack.c.b16 %v402, %v400
  %v481 = vpack.c.b16 %v403, %v401
  %v482 = vpack.c.b16 %v406, %v404
  %v483 = vpack.c.b16 %v407, %v405
  %v484 = vpack.c.b16 %v410, %v408
  %v485 = vpack.c.b16 %v411, %v409
  %v486 = vpack.c.b16 %v414, %v412
  %v487 = vpack.c.b16 %v415, %v413
  %v488 = vpack.c.b16 %v418, %v416
  %v489 = vpack.c.b16 %v419, %v417
  %v490 = vpack.c.b16 %v422, %v420
  %v491 = vpack.c.b16 %v423, %v421
  %v492 = vpack.c.b16 %v426, %v424
  %v493 = vpack.c.b16 %v427, %v425
  %v494 = vpack.c.b16 %v430, %v428
  %v495 = vpack.c.b16 %v431, %v429
  %v592 = vunpack.c.l.b16 %v208
  %v593 = vunpack.c.l.b16 %v209
  %v594 = vunpack.c.l.b16 %v210
  %v595 = vunpack.c.l.b16 %v211
  %v596 = vunpack.c.l.b16 %v212
  %v597 = vunpack.c.l.b16 %v213
  %v598 = vunpack.c.l.b16 %v214
  %v599 = vunpack.c.l.b16 %v215
  %v600 = vunpack.c.l.b16 %v216
  %v601 = vunpack.c.l.b16 %v217
  %v602 = vunpack.c.l.b16 %v218
  %v603 = vunpack.c.l.b16 %v219
  %v604 = vunpack.c.l.b16 %v220
  %v605 = vunpack.c.l.b16 %v221
  %v606 = vunpack.c.l.b16 %v222
  %v607 = vunpack.c.l.b16 %v223
  %v608 = vunpack.c.l.b16 %v224
  %v609 = vunpack.c.l.b16 %v225
  %v610 = vunpack.c.l.b16 %v226
  %v611 = vunpack.c.l.b16 %v227
  %v612 = vunpack.c.l.b16 %v228
  %v613 = vunpack.c.l.b16 %v229
  %v614 = vunpack.c.l.b16 %v230
  %v615 = vunpack.c.l.b16 %v231
  %v616 = vunpack.c.l.b16 %v232
  %v617 = vunpack.c.l.b16 %v233
  %v618 = vunpack.c.l.b16 %v234
  %v619 = vunpack.c.l.b16 %v235
  %v620 = vunpack.c.l.b16 %v236
  %v621 = vunpack.c.l.b16 %v237
  %v622 = vunpack.c.l.b16 %v238
  %v623 = vunpack.c.l.b16 %v239
  %v624 = vpack.c.b16 %v593, %v592
  %v625 = vpack.c.b16 %v595, %v594
  %v626 = vpack.c.b16 %v597, %v596
  %v627 = vpack.c.b16 %v599, %v598
  %v628 = vpack.c.b16 %v601, %v600
  %v629 = vpack.c.b16 %v603, %v602
  %v630 = vpack.c.b16 %v605, %v604
  %v631 = vpack.c.b16 %v607, %v606
  %v632 = vpack.c.b16 %v609, %v608
  %v633 = vpack.c.b16 %v611, %v610
  %v634 = vpack.c.b16 %v613, %v612
  %v635 = vpack.c.b16 %v615, %v614
  %v636 = vpack.c.b16 %v617, %v616
  %v637 = vpack.c.b16 %v619, %v618
  %v638 = vpack.c.b16 %v621, %v620
  %v639 = vpack.c.b16 %v623, %v622
  %656 = vmatprep.subr.bf16.mxu0 0
  %657 = vmatpush1.bf16.msra.mxu0 %v624
  %658 = vmatprep.subr.bf16.mxu0 0
  %659 = vmatpush1.bf16.msra.mxu0 %v625
  %660 = vmatprep.subr.bf16.mxu0 0
  %661 = vmatpush1.bf16.msra.mxu0 %v626
  %662 = vmatprep.subr.bf16.mxu0 0
  %663 = vmatpush1.bf16.msra.mxu0 %v627
  %664 = vmatprep.subr.bf16.mxu0 0
  %665 = vmatpush1.bf16.msra.mxu0 %v628
  %666 = vmatprep.subr.bf16.mxu0 0
  %667 = vmatpush1.bf16.msra.mxu0 %v629
  %668 = vmatprep.subr.bf16.mxu0 0
  %669 = vmatpush1.bf16.msra.mxu0 %v630
  %670 = vmatprep.subr.bf16.mxu0 0
  %671 = vmatpush1.bf16.msra.mxu0 %v631
  %672 = vmatprep.subr.bf16.mxu0 0
  %673 = vmatpush1.bf16.msra.mxu0 %v632
  %674 = vmatprep.subr.bf16.mxu0 0
  %675 = vmatpush1.bf16.msra.mxu0 %v633
  %676 = vmatprep.subr.bf16.mxu0 0
  %677 = vmatpush1.bf16.msra.mxu0 %v634
  %678 = vmatprep.subr.bf16.mxu0 0
  %679 = vmatpush1.bf16.msra.mxu0 %v635
  %680 = vmatprep.subr.bf16.mxu0 0
  %681 = vmatpush1.bf16.msra.mxu0 %v636
  %682 = vmatprep.subr.bf16.mxu0 0
  %683 = vmatpush1.bf16.msra.mxu0 %v637
  %684 = vmatprep.subr.bf16.mxu0 0
  %685 = vmatpush1.bf16.msra.mxu0 %v638
  %686 = vmatprep.subr.bf16.mxu0 0
  %687 = vmatpush1.bf16.msra.mxu0 %v639
  %688 = vmatprep.mubr.bf16.mxu0 %v433
  %689 = vmatmul.mubr.bf16.gmra.mrb[0].mxu0 %v432
  %v690 = vpop.f32.mrb[0].mxu0
  %v691 = vadd.f32 0.0, %v690
  %v692 = vpop.f32.mrb[0].mxu0
  %v693 = vpop.f32.mrb[0].mxu0
  %v694 = vadd.f32 0.0, %v693
  %v695 = vpop.f32.mrb[0].mxu0
  %696 = vmatprep.mubr.bf16.mxu0 %v435
  %697 = vmatmul.mubr.bf16.gmra.mrb[0].mxu0 %v434
  %v698 = vpop.f32.mrb[0].mxu0
  %v699 = vadd.f32 0.0, %v698
  %v700 = vpop.f32.mrb[0].mxu0
  %v701 = vpop.f32.mrb[0].mxu0
  %v702 = vadd.f32 0.0, %v701
  %v703 = vpop.f32.mrb[0].mxu0
  %704 = vmatprep.mubr.bf16.mxu0 %v437
  %705 = vmatmul.mubr.bf16.gmra.mrb[0].mxu0 %v436
  %v706 = vpop.f32.mrb[0].mxu0
  %v707 = vadd.f32 0.0, %v706
  %v708 = vpop.f32.mrb[0].mxu0
  %v709 = vpop.f32.mrb[0].mxu0
  %v710 = vadd.f32 0.0, %v709
  %v711 = vpop.f32.mrb[0].mxu0
  %712 = vmatprep.mubr.bf16.mxu0 %v439
  %713 = vmatmul.mubr.bf16.gmra.mrb[0].mxu0 %v438
  %v714 = vpop.f32.mrb[0].mxu0
  %v715 = vadd.f32 0.0, %v714
  %v716 = vpop.f32.mrb[0].mxu0
  %v717 = vpop.f32.mrb[0].mxu0
  %v718 = vadd.f32 0.0, %v717
  %v719 = vpop.f32.mrb[0].mxu0
  %720 = vmatprep.mubr.bf16.mxu0 %v441
  %721 = vmatmul.mubr.bf16.gmra.mrb[0].mxu0 %v440
  %v722 = vpop.f32.mrb[0].mxu0
  %v723 = vadd.f32 0.0, %v722
  %v724 = vpop.f32.mrb[0].mxu0
  %v725 = vpop.f32.mrb[0].mxu0
  %v726 = vadd.f32 0.0, %v725
  %v727 = vpop.f32.mrb[0].mxu0
  %728 = vmatprep.mubr.bf16.mxu0 %v443
  %729 = vmatmul.mubr.bf16.gmra.mrb[0].mxu0 %v442
  %v730 = vpop.f32.mrb[0].mxu0
  %v731 = vadd.f32 0.0, %v730
  %v732 = vpop.f32.mrb[0].mxu0
  %v733 = vpop.f32.mrb[0].mxu0
  %v734 = vadd.f32 0.0, %v733
  %v735 = vpop.f32.mrb[0].mxu0
  %736 = vmatprep.mubr.bf16.mxu0 %v445
  %737 = vmatmul.mubr.bf16.gmra.mrb[0].mxu0 %v444
  %v738 = vpop.f32.mrb[0].mxu0
  %v739 = vadd.f32 0.0, %v738
  %v740 = vpop.f32.mrb[0].mxu0
  %v741 = vpop.f32.mrb[0].mxu0
  %v742 = vadd.f32 0.0, %v741
  %v743 = vpop.f32.mrb[0].mxu0
  %744 = vmatprep.mubr.bf16.mxu0 %v447
  %745 = vmatmul.mubr.bf16.gmra.mrb[0].mxu0 %v446
  %v746 = vpop.f32.mrb[0].mxu0
  %v747 = vadd.f32 0.0, %v746
  %v748 = vpop.f32.mrb[0].mxu0
  %v749 = vpop.f32.mrb[0].mxu0
  %v750 = vadd.f32 0.0, %v749
  %v751 = vpop.f32.mrb[0].mxu0
  %752 = vmatprep.mubr.bf16.mxu0 %v449
  %753 = vmatmul.mubr.bf16.gmra.mrb[0].mxu0 %v448
  %v754 = vpop.f32.mrb[0].mxu0
  %v755 = vadd.f32 0.0, %v754
  %v756 = vpop.f32.mrb[0].mxu0
  %v757 = vpop.f32.mrb[0].mxu0
  %v758 = vadd.f32 0.0, %v757
  %v759 = vpop.f32.mrb[0].mxu0
  %760 = vmatprep.mubr.bf16.mxu0 %v451
  %761 = vmatmul.mubr.bf16.gmra.mrb[0].mxu0 %v450
  %v762 = vpop.f32.mrb[0].mxu0
  %v763 = vadd.f32 0.0, %v762
  %v764 = vpop.f32.mrb[0].mxu0
  %v765 = vpop.f32.mrb[0].mxu0
  %v766 = vadd.f32 0.0, %v765
  %v767 = vpop.f32.mrb[0].mxu0
  %768 = vmatprep.mubr.bf16.mxu0 %v453
  %769 = vmatmul.mubr.bf16.gmra.mrb[0].mxu0 %v452
  %v770 = vpop.f32.mrb[0].mxu0
  %v771 = vadd.f32 0.0, %v770
  %v772 = vpop.f32.mrb[0].mxu0
  %v773 = vpop.f32.mrb[0].mxu0
  %v774 = vadd.f32 0.0, %v773
  %v775 = vpop.f32.mrb[0].mxu0
  %776 = vmatprep.mubr.bf16.mxu0 %v455
  %777 = vmatmul.mubr.bf16.gmra.mrb[0].mxu0 %v454
  %v778 = vpop.f32.mrb[0].mxu0
  %v779 = vadd.f32 0.0, %v778
  %v780 = vpop.f32.mrb[0].mxu0
  %v781 = vpop.f32.mrb[0].mxu0
  %v782 = vadd.f32 0.0, %v781
  %v783 = vpop.f32.mrb[0].mxu0
  %784 = vmatprep.mubr.bf16.mxu0 %v457
  %785 = vmatmul.mubr.bf16.gmra.mrb[0].mxu0 %v456
  %v786 = vpop.f32.mrb[0].mxu0
  %v787 = vadd.f32 0.0, %v786
  %v788 = vpop.f32.mrb[0].mxu0
  %v789 = vpop.f32.mrb[0].mxu0
  %v790 = vadd.f32 0.0, %v789
  %v791 = vpop.f32.mrb[0].mxu0
  %792 = vmatprep.mubr.bf16.mxu0 %v459
  %793 = vmatmul.mubr.bf16.gmra.mrb[0].mxu0 %v458
  %v794 = vpop.f32.mrb[0].mxu0
  %v795 = vadd.f32 0.0, %v794
  %v796 = vpop.f32.mrb[0].mxu0
  %v797 = vpop.f32.mrb[0].mxu0
  %v798 = vadd.f32 0.0, %v797
  %v799 = vpop.f32.mrb[0].mxu0
  %800 = vmatprep.mubr.bf16.mxu0 %v461
  %801 = vmatmul.mubr.bf16.gmra.mrb[0].mxu0 %v460
  %v802 = vpop.f32.mrb[0].mxu0
  %v803 = vadd.f32 0.0, %v802
  %v804 = vpop.f32.mrb[0].mxu0
  %v805 = vpop.f32.mrb[0].mxu0
  %v806 = vadd.f32 0.0, %v805
  %v807 = vpop.f32.mrb[0].mxu0
  %808 = vmatprep.mubr.bf16.mxu0 %v463
  %809 = vmatmul.mubr.bf16.gmra.mrb[0].mxu0 %v462
  %v810 = vpop.f32.mrb[0].mxu0
  %v811 = vadd.f32 0.0, %v810
  %v812 = vpop.f32.mrb[0].mxu0
  %v813 = vpop.f32.mrb[0].mxu0
  %v814 = vadd.f32 0.0, %v813
  %v815 = vpop.f32.mrb[0].mxu0
  %816 = vmatprep.mubr.bf16.mxu0 %v465
  %817 = vmatmul.mubr.bf16.gmra.mrb[0].mxu0 %v464
  %v818 = vpop.f32.mrb[0].mxu0
  %v819 = vadd.f32 0.0, %v818
  %v820 = vpop.f32.mrb[0].mxu0
  %v821 = vpop.f32.mrb[0].mxu0
  %v822 = vadd.f32 0.0, %v821
  %v823 = vpop.f32.mrb[0].mxu0
  %824 = vmatprep.mubr.bf16.mxu0 %v467
  %825 = vmatmul.mubr.bf16.gmra.mrb[0].mxu0 %v466
  %v826 = vpop.f32.mrb[0].mxu0
  %v827 = vadd.f32 0.0, %v826
  %v828 = vpop.f32.mrb[0].mxu0
  %v829 = vpop.f32.mrb[0].mxu0
  %v830 = vadd.f32 0.0, %v829
  %v831 = vpop.f32.mrb[0].mxu0
  %832 = vmatprep.mubr.bf16.mxu0 %v469
  %833 = vmatmul.mubr.bf16.gmra.mrb[0].mxu0 %v468
  %v834 = vpop.f32.mrb[0].mxu0
  %v835 = vadd.f32 0.0, %v834
  %v836 = vpop.f32.mrb[0].mxu0
  %v837 = vpop.f32.mrb[0].mxu0
  %v838 = vadd.f32 0.0, %v837
  %v839 = vpop.f32.mrb[0].mxu0
  %840 = vmatprep.mubr.bf16.mxu0 %v471
  %841 = vmatmul.mubr.bf16.gmra.mrb[0].mxu0 %v470
  %v842 = vpop.f32.mrb[0].mxu0
  %v843 = vadd.f32 0.0, %v842
  %v844 = vpop.f32.mrb[0].mxu0
  %v845 = vpop.f32.mrb[0].mxu0
  %v846 = vadd.f32 0.0, %v845
  %v847 = vpop.f32.mrb[0].mxu0
  %848 = vmatprep.mubr.bf16.mxu0 %v473
  %849 = vmatmul.mubr.bf16.gmra.mrb[0].mxu0 %v472
  %v850 = vpop.f32.mrb[0].mxu0
  %v851 = vadd.f32 0.0, %v850
  %v852 = vpop.f32.mrb[0].mxu0
  %v853 = vpop.f32.mrb[0].mxu0
  %v854 = vadd.f32 0.0, %v853
  %v855 = vpop.f32.mrb[0].mxu0
  %856 = vmatprep.mubr.bf16.mxu0 %v475
  %857 = vmatmul.mubr.bf16.gmra.mrb[0].mxu0 %v474
  %v858 = vpop.f32.mrb[0].mxu0
  %v859 = vadd.f32 0.0, %v858
  %v860 = vpop.f32.mrb[0].mxu0
  %v861 = vpop.f32.mrb[0].mxu0
  %v862 = vadd.f32 0.0, %v861
  %v863 = vpop.f32.mrb[0].mxu0
  %864 = vmatprep.mubr.bf16.mxu0 %v477
  %865 = vmatmul.mubr.bf16.gmra.mrb[0].mxu0 %v476
  %v866 = vpop.f32.mrb[0].mxu0
  %v867 = vadd.f32 0.0, %v866
  %v868 = vpop.f32.mrb[0].mxu0
  %v869 = vpop.f32.mrb[0].mxu0
  %v870 = vadd.f32 0.0, %v869
  %v871 = vpop.f32.mrb[0].mxu0
  %872 = vmatprep.mubr.bf16.mxu0 %v479
  %873 = vmatmul.mubr.bf16.gmra.mrb[0].mxu0 %v478
  %v874 = vpop.f32.mrb[0].mxu0
  %v875 = vadd.f32 0.0, %v874
  %v876 = vpop.f32.mrb[0].mxu0
  %v877 = vpop.f32.mrb[0].mxu0
  %v878 = vadd.f32 0.0, %v877
  %v879 = vpop.f32.mrb[0].mxu0
  %880 = vmatprep.mubr.bf16.mxu0 %v481
  %881 = vmatmul.mubr.bf16.gmra.mrb[0].mxu0 %v480
  %v882 = vpop.f32.mrb[0].mxu0
  %v883 = vadd.f32 0.0, %v882
  %v884 = vpop.f32.mrb[0].mxu0
  %v885 = vpop.f32.mrb[0].mxu0
  %v886 = vadd.f32 0.0, %v885
  %v887 = vpop.f32.mrb[0].mxu0
  %888 = vmatprep.mubr.bf16.mxu0 %v483
  %889 = vmatmul.mubr.bf16.gmra.mrb[0].mxu0 %v482
  %v890 = vpop.f32.mrb[0].mxu0
  %v891 = vadd.f32 0.0, %v890
  %v892 = vpop.f32.mrb[0].mxu0
  %v893 = vpop.f32.mrb[0].mxu0
  %v894 = vadd.f32 0.0, %v893
  %v895 = vpop.f32.mrb[0].mxu0
  %896 = vmatprep.mubr.bf16.mxu0 %v485
  %897 = vmatmul.mubr.bf16.gmra.mrb[0].mxu0 %v484
  %v898 = vpop.f32.mrb[0].mxu0
  %v899 = vadd.f32 0.0, %v898
  %v900 = vpop.f32.mrb[0].mxu0
  %v901 = vpop.f32.mrb[0].mxu0
  %v902 = vadd.f32 0.0, %v901
  %v903 = vpop.f32.mrb[0].mxu0
  %904 = vmatprep.mubr.bf16.mxu0 %v487
  %905 = vmatmul.mubr.bf16.gmra.mrb[0].mxu0 %v486
  %v906 = vpop.f32.mrb[0].mxu0
  %v907 = vadd.f32 0.0, %v906
  %v908 = vpop.f32.mrb[0].mxu0
  %v909 = vpop.f32.mrb[0].mxu0
  %v910 = vadd.f32 0.0, %v909
  %v911 = vpop.f32.mrb[0].mxu0
  %912 = vmatprep.mubr.bf16.mxu0 %v489
  %913 = vmatmul.mubr.bf16.gmra.mrb[0].mxu0 %v488
  %v914 = vpop.f32.mrb[0].mxu0
  %v915 = vadd.f32 0.0, %v914
  %v916 = vpop.f32.mrb[0].mxu0
  %v917 = vpop.f32.mrb[0].mxu0
  %v918 = vadd.f32 0.0, %v917
  %v919 = vpop.f32.mrb[0].mxu0
  %920 = vmatprep.mubr.bf16.mxu0 %v491
  %921 = vmatmul.mubr.bf16.gmra.mrb[0].mxu0 %v490
  %v922 = vpop.f32.mrb[0].mxu0
  %v923 = vadd.f32 0.0, %v922
  %v924 = vpop.f32.mrb[0].mxu0
  %v925 = vpop.f32.mrb[0].mxu0
  %v926 = vadd.f32 0.0, %v925
  %v927 = vpop.f32.mrb[0].mxu0
  %928 = vmatprep.mubr.bf16.mxu0 %v493
  %929 = vmatmul.mubr.bf16.gmra.mrb[0].mxu0 %v492
  %v930 = vpop.f32.mrb[0].mxu0
  %v931 = vadd.f32 0.0, %v930
  %v932 = vpop.f32.mrb[0].mxu0
  %v933 = vpop.f32.mrb[0].mxu0
  %v934 = vadd.f32 0.0, %v933
  %v935 = vpop.f32.mrb[0].mxu0
  %936 = vmatprep.mubr.bf16.mxu0 %v495
  %937 = vmatmul.mubr.bf16.gmra.mrb[0].mxu0 %v494
  %v938 = vpop.f32.mrb[0].mxu0
  %v939 = vadd.f32 0.0, %v938
  %v940 = vpop.f32.mrb[0].mxu0
  %v941 = vpop.f32.mrb[0].mxu0
  %v942 = vadd.f32 0.0, %v941
  %v943 = vpop.f32.mrb[0].mxu0
  %944 = vdwg.mxu0
  %v945 = vadd.f32 %v80, %v691
  %v946 = vadd.f32 %v81, %v694
  %v947 = vadd.f32 %v82, %v699
  %v948 = vadd.f32 %v83, %v702
  %v949 = vadd.f32 %v84, %v707
  %v950 = vadd.f32 %v85, %v710
  %v951 = vadd.f32 %v86, %v715
  %v952 = vadd.f32 %v87, %v718
  %v953 = vadd.f32 %v88, %v723
  %v954 = vadd.f32 %v89, %v726
  %v955 = vadd.f32 %v90, %v731
  %v956 = vadd.f32 %v91, %v734
  %v957 = vadd.f32 %v92, %v739
  %v958 = vadd.f32 %v93, %v742
  %v959 = vadd.f32 %v94, %v747
  %v960 = vadd.f32 %v95, %v750
  %v961 = vadd.f32 %v96, %v755
  %v962 = vadd.f32 %v97, %v758
  %v963 = vadd.f32 %v98, %v763
  %v964 = vadd.f32 %v99, %v766
  %v965 = vadd.f32 %v100, %v771
  %v966 = vadd.f32 %v101, %v774
  %v967 = vadd.f32 %v102, %v779
  %v968 = vadd.f32 %v103, %v782
  %v969 = vadd.f32 %v104, %v787
  %v970 = vadd.f32 %v105, %v790
  %v971 = vadd.f32 %v106, %v795
  %v972 = vadd.f32 %v107, %v798
  %v973 = vadd.f32 %v108, %v803
  %v974 = vadd.f32 %v109, %v806
  %v975 = vadd.f32 %v110, %v811
  %v976 = vadd.f32 %v111, %v814
  %v977 = vadd.f32 %v112, %v819
  %v978 = vadd.f32 %v113, %v822
  %v979 = vadd.f32 %v114, %v827
  %v980 = vadd.f32 %v115, %v830
  %v981 = vadd.f32 %v116, %v835
  %v982 = vadd.f32 %v117, %v838
  %v983 = vadd.f32 %v118, %v843
  %v984 = vadd.f32 %v119, %v846
  %v985 = vadd.f32 %v120, %v851
  %v986 = vadd.f32 %v121, %v854
  %v987 = vadd.f32 %v122, %v859
  %v988 = vadd.f32 %v123, %v862
  %v989 = vadd.f32 %v124, %v867
  %v990 = vadd.f32 %v125, %v870
  %v991 = vadd.f32 %v126, %v875
  %v992 = vadd.f32 %v127, %v878
  %v993 = vadd.f32 %v128, %v883
  %v994 = vadd.f32 %v129, %v886
  %v995 = vadd.f32 %v130, %v891
  %v996 = vadd.f32 %v131, %v894
  %v997 = vadd.f32 %v132, %v899
  %v998 = vadd.f32 %v133, %v902
  %v999 = vadd.f32 %v134, %v907
  %v1000 = vadd.f32 %v135, %v910
  %v1001 = vadd.f32 %v136, %v915
  %v1002 = vadd.f32 %v137, %v918
  %v1003 = vadd.f32 %v138, %v923
  %v1004 = vadd.f32 %v139, %v926
  %v1005 = vadd.f32 %v140, %v931
  %v1006 = vadd.f32 %v141, %v934
  %v1007 = vadd.f32 %v142, %v939
  %v1008 = vadd.f32 %v143, %v942
  %1009 = vst [vmem:[#allocation2] sm:$0xff] %v945
  %1010 = vst [vmem:[#allocation2 + $0x8] sm:$0xff] %v946
  %1011 = vst [vmem:[#allocation2 + $0x10] sm:$0xff] %v947
  %1012 = vst [vmem:[#allocation2 + $0x18] sm:$0xff] %v948
  %1013 = vst [vmem:[#allocation2 + $0x20] sm:$0xff] %v949
  %1014 = vst [vmem:[#allocation2 + $0x28] sm:$0xff] %v950
  %1015 = vst [vmem:[#allocation2 + $0x30] sm:$0xff] %v951
  %1016 = vst [vmem:[#allocation2 + $0x38] sm:$0xff] %v952
  %1017 = vst [vmem:[#allocation2 + $0x40] sm:$0xff] %v953
  %1018 = vst [vmem:[#allocation2 + $0x48] sm:$0xff] %v954
  %1019 = vst [vmem:[#allocation2 + $0x50] sm:$0xff] %v955
  %1020 = vst [vmem:[#allocation2 + $0x58] sm:$0xff] %v956
  %1021 = vst [vmem:[#allocation2 + $0x60] sm:$0xff] %v957
  %1022 = vst [vmem:[#allocation2 + $0x68] sm:$0xff] %v958
  %1023 = vst [vmem:[#allocation2 + $0x70] sm:$0xff] %v959
  %1024 = vst [vmem:[#allocation2 + $0x78] sm:$0xff] %v960
  %1025 = vst [vmem:[#allocation2 + $0x80] sm:$0xff] %v961
  %1026 = vst [vmem:[#allocation2 + $0x88] sm:$0xff] %v962
  %1027 = vst [vmem:[#allocation2 + $0x90] sm:$0xff] %v963
  %1028 = vst [vmem:[#allocation2 + $0x98] sm:$0xff] %v964
  %1029 = vst [vmem:[#allocation2 + $0xa0] sm:$0xff] %v965
  %1030 = vst [vmem:[#allocation2 + $0xa8] sm:$0xff] %v966
  %1031 = vst [vmem:[#allocation2 + $0xb0] sm:$0xff] %v967
  %1032 = vst [vmem:[#allocation2 + $0xb8] sm:$0xff] %v968
  %1033 = vst [vmem:[#allocation2 + $0xc0] sm:$0xff] %v969
  %1034 = vst [vmem:[#allocation2 + $0xc8] sm:$0xff] %v970
  %1035 = vst [vmem:[#allocation2 + $0xd0] sm:$0xff] %v971
  %1036 = vst [vmem:[#allocation2 + $0xd8] sm:$0xff] %v972
  %1037 = vst [vmem:[#allocation2 + $0xe0] sm:$0xff] %v973
  %1038 = vst [vmem:[#allocation2 + $0xe8] sm:$0xff] %v974
  %1039 = vst [vmem:[#allocation2 + $0xf0] sm:$0xff] %v975
  %1040 = vst [vmem:[#allocation2 + $0xf8] sm:$0xff] %v976
  %1041 = vst [vmem:[#allocation2 + $0x100] sm:$0xff] %v977
  %1042 = vst [vmem:[#allocation2 + $0x108] sm:$0xff] %v978
  %1043 = vst [vmem:[#allocation2 + $0x110] sm:$0xff] %v979
  %1044 = vst [vmem:[#allocation2 + $0x118] sm:$0xff] %v980
  %1045 = vst [vmem:[#allocation2 + $0x120] sm:$0xff] %v981
  %1046 = vst [vmem:[#allocation2 + $0x128] sm:$0xff] %v982
  %1047 = vst [vmem:[#allocation2 + $0x130] sm:$0xff] %v983
  %1048 = vst [vmem:[#allocation2 + $0x138] sm:$0xff] %v984
  %1049 = vst [vmem:[#allocation2 + $0x140] sm:$0xff] %v985
  %1050 = vst [vmem:[#allocation2 + $0x148] sm:$0xff] %v986
  %1051 = vst [vmem:[#allocation2 + $0x150] sm:$0xff] %v987
  %1052 = vst [vmem:[#allocation2 + $0x158] sm:$0xff] %v988
  %1053 = vst [vmem:[#allocation2 + $0x160] sm:$0xff] %v989
  %1054 = vst [vmem:[#allocation2 + $0x168] sm:$0xff] %v990
  %1055 = vst [vmem:[#allocation2 + $0x170] sm:$0xff] %v991
  %1056 = vst [vmem:[#allocation2 + $0x178] sm:$0xff] %v992
  %1057 = vst [vmem:[#allocation2 + $0x180] sm:$0xff] %v993
  %1058 = vst [vmem:[#allocation2 + $0x188] sm:$0xff] %v994
  %1059 = vst [vmem:[#allocation2 + $0x190] sm:$0xff] %v995
  %1060 = vst [vmem:[#allocation2 + $0x198] sm:$0xff] %v996
  %1061 = vst [vmem:[#allocation2 + $0x1a0] sm:$0xff] %v997
  %1062 = vst [vmem:[#allocation2 + $0x1a8] sm:$0xff] %v998
  %1063 = vst [vmem:[#allocation2 + $0x1b0] sm:$0xff] %v999
  %1064 = vst [vmem:[#allocation2 + $0x1b8] sm:$0xff] %v1000
  %1065 = vst [vmem:[#allocation2 + $0x1c0] sm:$0xff] %v1001
  %1066 = vst [vmem:[#allocation2 + $0x1c8] sm:$0xff] %v1002
  %1067 = vst [vmem:[#allocation2 + $0x1d0] sm:$0xff] %v1003
  %1068 = vst [vmem:[#allocation2 + $0x1d8] sm:$0xff] %v1004
  %1069 = vst [vmem:[#allocation2 + $0x1e0] sm:$0xff] %v1005
  %1070 = vst [vmem:[#allocation2 + $0x1e8] sm:$0xff] %v1006
  %1071 = vst [vmem:[#allocation2 + $0x1f0] sm:$0xff] %v1007
  %1072 = vst [vmem:[#allocation2 + $0x1f8] sm:$0xff] %v1008
  // Predicated region
  $region14: #{bottleneck_forward.13} parent=0 // pred_check
    %p1073 = pneg %p12
  $region15: #{bottleneck_forward.13} parent=0 // pred_check_branch
    %1075 = sbr.rel (%p1073) target = $region17
  $region16: #{bottleneck_forward.13} parent=0 // pred_region
    %v1076 = vld [vmem:[#allocation2] sm:$0xff]
    %v1077 = vld [vmem:[#allocation2 + $0x8] sm:$0xff]
    %v1078 = vld [vmem:[#allocation2 + $0x10] sm:$0xff]
    %v1079 = vld [vmem:[#allocation2 + $0x18] sm:$0xff]
    %v1080 = vld [vmem:[#allocation2 + $0x20] sm:$0xff]
    %v1081 = vld [vmem:[#allocation2 + $0x28] sm:$0xff]
    %v1082 = vld [vmem:[#allocation2 + $0x30] sm:$0xff]
    %v1083 = vld [vmem:[#allocation2 + $0x38] sm:$0xff]
    %v1084 = vld [vmem:[#allocation2 + $0x40] sm:$0xff]
    %v1085 = vld [vmem:[#allocation2 + $0x48] sm:$0xff]
    %v1086 = vld [vmem:[#allocation2 + $0x50] sm:$0xff]
    %v1087 = vld [vmem:[#allocation2 + $0x58] sm:$0xff]
    %v1088 = vld [vmem:[#allocation2 + $0x60] sm:$0xff]
    %v1089 = vld [vmem:[#allocation2 + $0x68] sm:$0xff]
    %v1090 = vld [vmem:[#allocation2 + $0x70] sm:$0xff]
    %v1091 = vld [vmem:[#allocation2 + $0x78] sm:$0xff]
    %v1092 = vld [vmem:[#allocation2 + $0x80] sm:$0xff]
    %v1093 = vld [vmem:[#allocation2 + $0x88] sm:$0xff]
    %v1094 = vld [vmem:[#allocation2 + $0x90] sm:$0xff]
    %v1095 = vld [vmem:[#allocation2 + $0x98] sm:$0xff]
    %v1096 = vld [vmem:[#allocation2 + $0xa0] sm:$0xff]
    %v1097 = vld [vmem:[#allocation2 + $0xa8] sm:$0xff]
    %v1098 = vld [vmem:[#allocation2 + $0xb0] sm:$0xff]
    %v1099 = vld [vmem:[#allocation2 + $0xb8] sm:$0xff]
    %v1100 = vld [vmem:[#allocation2 + $0xc0] sm:$0xff]
    %v1101 = vld [vmem:[#allocation2 + $0xc8] sm:$0xff]
    %v1102 = vld [vmem:[#allocation2 + $0xd0] sm:$0xff]
    %v1103 = vld [vmem:[#allocation2 + $0xd8] sm:$0xff]
    %v1104 = vld [vmem:[#allocation2 + $0xe0] sm:$0xff]
    %v1105 = vld [vmem:[#allocation2 + $0xe8] sm:$0xff]
    %v1106 = vld [vmem:[#allocation2 + $0xf0] sm:$0xff]
    %v1107 = vld [vmem:[#allocation2 + $0xf8] sm:$0xff]
    %v1108 = vld [vmem:[#allocation2 + $0x100] sm:$0xff]
    %v1109 = vld [vmem:[#allocation2 + $0x108] sm:$0xff]
    %v1110 = vld [vmem:[#allocation2 + $0x110] sm:$0xff]
    %v1111 = vld [vmem:[#allocation2 + $0x118] sm:$0xff]
    %v1112 = vld [vmem:[#allocation2 + $0x120] sm:$0xff]
    %v1113 = vld [vmem:[#allocation2 + $0x128] sm:$0xff]
    %v1114 = vld [vmem:[#allocation2 + $0x130] sm:$0xff]
    %v1115 = vld [vmem:[#allocation2 + $0x138] sm:$0xff]
    %v1116 = vld [vmem:[#allocation2 + $0x140] sm:$0xff]
    %v1117 = vld [vmem:[#allocation2 + $0x148] sm:$0xff]
    %v1118 = vld [vmem:[#allocation2 + $0x150] sm:$0xff]
    %v1119 = vld [vmem:[#allocation2 + $0x158] sm:$0xff]
    %v1120 = vld [vmem:[#allocation2 + $0x160] sm:$0xff]
    %v1121 = vld [vmem:[#allocation2 + $0x168] sm:$0xff]
    %v1122 = vld [vmem:[#allocation2 + $0x170] sm:$0xff]
    %v1123 = vld [vmem:[#allocation2 + $0x178] sm:$0xff]
    %v1124 = vld [vmem:[#allocation2 + $0x180] sm:$0xff]
    %v1125 = vld [vmem:[#allocation2 + $0x188] sm:$0xff]
    %v1126 = vld [vmem:[#allocation2 + $0x190] sm:$0xff]
    %v1127 = vld [vmem:[#allocation2 + $0x198] sm:$0xff]
    %v1128 = vld [vmem:[#allocation2 + $0x1a0] sm:$0xff]
    %v1129 = vld [vmem:[#allocation2 + $0x1a8] sm:$0xff]
    %v1130 = vld [vmem:[#allocation2 + $0x1b0] sm:$0xff]
    %v1131 = vld [vmem:[#allocation2 + $0x1b8] sm:$0xff]
    %v1132 = vld [vmem:[#allocation2 + $0x1c0] sm:$0xff]
    %v1133 = vld [vmem:[#allocation2 + $0x1c8] sm:$0xff]
    %v1134 = vld [vmem:[#allocation2 + $0x1d0] sm:$0xff]
    %v1135 = vld [vmem:[#allocation2 + $0x1d8] sm:$0xff]
    %v1136 = vld [vmem:[#allocation2 + $0x1e0] sm:$0xff]
    %v1137 = vld [vmem:[#allocation2 + $0x1e8] sm:$0xff]
    %v1138 = vld [vmem:[#allocation2 + $0x1f0] sm:$0xff]
    %v1139 = vld [vmem:[#allocation2 + $0x1f8] sm:$0xff]
    %v1140 = vpack.c.bf16 %v1077, %v1076
    %v1141 = vpack.c.bf16 %v1079, %v1078
    %v1142 = vpack.c.bf16 %v1081, %v1080
    %v1143 = vpack.c.bf16 %v1083, %v1082
    %v1144 = vpack.c.bf16 %v1085, %v1084
    %v1145 = vpack.c.bf16 %v1087, %v1086
    %v1146 = vpack.c.bf16 %v1089, %v1088
    %v1147 = vpack.c.bf16 %v1091, %v1090
    %v1148 = vpack.c.bf16 %v1093, %v1092
    %v1149 = vpack.c.bf16 %v1095, %v1094
    %v1150 = vpack.c.bf16 %v1097, %v1096
    %v1151 = vpack.c.bf16 %v1099, %v1098
    %v1152 = vpack.c.bf16 %v1101, %v1100
    %v1153 = vpack.c.bf16 %v1103, %v1102
    %v1154 = vpack.c.bf16 %v1105, %v1104
    %v1155 = vpack.c.bf16 %v1107, %v1106
    %v1156 = vpack.c.bf16 %v1109, %v1108
    %v1157 = vpack.c.bf16 %v1111, %v1110
    %v1158 = vpack.c.bf16 %v1113, %v1112
    %v1159 = vpack.c.bf16 %v1115, %v1114
    %v1160 = vpack.c.bf16 %v1117, %v1116
    %v1161 = vpack.c.bf16 %v1119, %v1118
    %v1162 = vpack.c.bf16 %v1121, %v1120
    %v1163 = vpack.c.bf16 %v1123, %v1122
    %v1164 = vpack.c.bf16 %v1125, %v1124
    %v1165 = vpack.c.bf16 %v1127, %v1126
    %v1166 = vpack.c.bf16 %v1129, %v1128
    %v1167 = vpack.c.bf16 %v1131, %v1130
    %v1168 = vpack.c.bf16 %v1133, %v1132
    %v1169 = vpack.c.bf16 %v1135, %v1134
    %v1170 = vpack.c.bf16 %v1137, %v1136
    %v1171 = vpack.c.bf16 %v1139, %v1138
    %v1204 = vunpack.c.l.b16 %v1140
    %v1205 = vunpack.c.h.b16 %v1140
    %v1206 = vunpack.c.l.b16 %v1141
    %v1207 = vunpack.c.h.b16 %v1141
    %v1208 = vunpack.c.l.b16 %v1142
    %v1209 = vunpack.c.h.b16 %v1142
    %v1210 = vunpack.c.l.b16 %v1143
    %v1211 = vunpack.c.h.b16 %v1143
    %v1212 = vunpack.c.l.b16 %v1144
    %v1213 = vunpack.c.h.b16 %v1144
    %v1214 = vunpack.c.l.b16 %v1145
    %v1215 = vunpack.c.h.b16 %v1145
    %v1216 = vunpack.c.l.b16 %v1146
    %v1217 = vunpack.c.h.b16 %v1146
    %v1218 = vunpack.c.l.b16 %v1147
    %v1219 = vunpack.c.h.b16 %v1147
    %v1220 = vunpack.c.l.b16 %v1148
    %v1221 = vunpack.c.h.b16 %v1148
    %v1222 = vunpack.c.l.b16 %v1149
    %v1223 = vunpack.c.h.b16 %v1149
    %v1224 = vunpack.c.l.b16 %v1150
    %v1225 = vunpack.c.h.b16 %v1150
    %v1226 = vunpack.c.l.b16 %v1151
    %v1227 = vunpack.c.h.b16 %v1151
    %v1228 = vunpack.c.l.b16 %v1152
    %v1229 = vunpack.c.h.b16 %v1152
    %v1230 = vunpack.c.l.b16 %v1153
    %v1231 = vunpack.c.h.b16 %v1153
    %v1232 = vunpack.c.l.b16 %v1154
    %v1233 = vunpack.c.h.b16 %v1154
    %v1234 = vunpack.c.l.b16 %v1155
    %v1235 = vunpack.c.h.b16 %v1155
    %v1236 = vunpack.c.l.b16 %v1156
    %v1237 = vunpack.c.h.b16 %v1156
    %v1238 = vunpack.c.l.b16 %v1157
    %v1239 = vunpack.c.h.b16 %v1157
    %v1240 = vunpack.c.l.b16 %v1158
    %v1241 = vunpack.c.h.b16 %v1158
    %v1242 = vunpack.c.l.b16 %v1159
    %v1243 = vunpack.c.h.b16 %v1159
    %v1244 = vunpack.c.l.b16 %v1160
    %v1245 = vunpack.c.h.b16 %v1160
    %v1246 = vunpack.c.l.b16 %v1161
    %v1247 = vunpack.c.h.b16 %v1161
    %v1248 = vunpack.c.l.b16 %v1162
    %v1249 = vunpack.c.h.b16 %v1162
    %v1250 = vunpack.c.l.b16 %v1163
    %v1251 = vunpack.c.h.b16 %v1163
    %v1252 = vunpack.c.l.b16 %v1164
    %v1253 = vunpack.c.h.b16 %v1164
    %v1254 = vunpack.c.l.b16 %v1165
    %v1255 = vunpack.c.h.b16 %v1165
    %v1256 = vunpack.c.l.b16 %v1166
    %v1257 = vunpack.c.h.b16 %v1166
    %v1258 = vunpack.c.l.b16 %v1167
    %v1259 = vunpack.c.h.b16 %v1167
    %v1260 = vunpack.c.l.b16 %v1168
    %v1261 = vunpack.c.h.b16 %v1168
    %v1262 = vunpack.c.l.b16 %v1169
    %v1263 = vunpack.c.h.b16 %v1169
    %v1264 = vunpack.c.l.b16 %v1170
    %v1265 = vunpack.c.h.b16 %v1170
    %v1266 = vunpack.c.l.b16 %v1171
    %v1267 = vunpack.c.h.b16 %v1171
    %v1268 = vpack.c.b16 %v1204, %v1204
    %v1269 = vpack.c.b16 %v1205, %v1205
    %v1270 = vpack.c.b16 %v1206, %v1206
    %v1271 = vpack.c.b16 %v1207, %v1207
    %v1272 = vpack.c.b16 %v1208, %v1208
    %v1273 = vpack.c.b16 %v1209, %v1209
    %v1274 = vpack.c.b16 %v1210, %v1210
    %v1275 = vpack.c.b16 %v1211, %v1211
    %v1276 = vpack.c.b16 %v1212, %v1212
    %v1277 = vpack.c.b16 %v1213, %v1213
    %v1278 = vpack.c.b16 %v1214, %v1214
    %v1279 = vpack.c.b16 %v1215, %v1215
    %v1280 = vpack.c.b16 %v1216, %v1216
    %v1281 = vpack.c.b16 %v1217, %v1217
    %v1282 = vpack.c.b16 %v1218, %v1218
    %v1283 = vpack.c.b16 %v1219, %v1219
    %v1284 = vpack.c.b16 %v1220, %v1220
    %v1285 = vpack.c.b16 %v1221, %v1221
    %v1286 = vpack.c.b16 %v1222, %v1222
    %v1287 = vpack.c.b16 %v1223, %v1223
    %v1288 = vpack.c.b16 %v1224, %v1224
    %v1289 = vpack.c.b16 %v1225, %v1225
    %v1290 = vpack.c.b16 %v1226, %v1226
    %v1291 = vpack.c.b16 %v1227, %v1227
    %v1292 = vpack.c.b16 %v1228, %v1228
    %v1293 = vpack.c.b16 %v1229, %v1229
    %v1294 = vpack.c.b16 %v1230, %v1230
    %v1295 = vpack.c.b16 %v1231, %v1231
    %v1296 = vpack.c.b16 %v1232, %v1232
    %v1297 = vpack.c.b16 %v1233, %v1233
    %v1298 = vpack.c.b16 %v1234, %v1234
    %v1299 = vpack.c.b16 %v1235, %v1235
    %v1300 = vpack.c.b16 %v1236, %v1236
    %v1301 = vpack.c.b16 %v1237, %v1237
    %v1302 = vpack.c.b16 %v1238, %v1238
    %v1303 = vpack.c.b16 %v1239, %v1239
    %v1304 = vpack.c.b16 %v1240, %v1240
    %v1305 = vpack.c.b16 %v1241, %v1241
    %v1306 = vpack.c.b16 %v1242, %v1242
    %v1307 = vpack.c.b16 %v1243, %v1243
    %v1308 = vpack.c.b16 %v1244, %v1244
    %v1309 = vpack.c.b16 %v1245, %v1245
    %v1310 = vpack.c.b16 %v1246, %v1246
    %v1311 = vpack.c.b16 %v1247, %v1247
    %v1312 = vpack.c.b16 %v1248, %v1248
    %v1313 = vpack.c.b16 %v1249, %v1249
    %v1314 = vpack.c.b16 %v1250, %v1250
    %v1315 = vpack.c.b16 %v1251, %v1251
    %v1316 = vpack.c.b16 %v1252, %v1252
    %v1317 = vpack.c.b16 %v1253, %v1253
    %v1318 = vpack.c.b16 %v1254, %v1254
    %v1319 = vpack.c.b16 %v1255, %v1255
    %v1320 = vpack.c.b16 %v1256, %v1256
    %v1321 = vpack.c.b16 %v1257, %v1257
    %v1322 = vpack.c.b16 %v1258, %v1258
    %v1323 = vpack.c.b16 %v1259, %v1259
    %v1324 = vpack.c.b16 %v1260, %v1260
    %v1325 = vpack.c.b16 %v1261, %v1261
    %v1326 = vpack.c.b16 %v1262, %v1262
    %v1327 = vpack.c.b16 %v1263, %v1263
    %v1328 = vpack.c.b16 %v1264, %v1264
    %v1329 = vpack.c.b16 %v1265, %v1265
    %v1330 = vpack.c.b16 %v1266, %v1266
    %v1331 = vpack.c.b16 %v1267, %v1267
    %1396 = vst [vmem:[%s2] sm:$0xf] %v1268
    %1397 = vst [vmem:[%s2 + $0x4] sm:$0xf] %v1269
    %1398 = vst [vmem:[%s2 + $0x8] sm:$0xf] %v1270
    %1399 = vst [vmem:[%s2 + $0xc] sm:$0xf] %v1271
    %1400 = vst [vmem:[%s2 + $0x10] sm:$0xf] %v1272
    %1401 = vst [vmem:[%s2 + $0x14] sm:$0xf] %v1273
    %1402 = vst [vmem:[%s2 + $0x18] sm:$0xf] %v1274
    %1403 = vst [vmem:[%s2 + $0x1c] sm:$0xf] %v1275
    %1404 = vst [vmem:[%s2 + $0x20] sm:$0xf] %v1276
    %1405 = vst [vmem:[%s2 + $0x24] sm:$0xf] %v1277
    %1406 = vst [vmem:[%s2 + $0x28] sm:$0xf] %v1278
    %1407 = vst [vmem:[%s2 + $0x2c] sm:$0xf] %v1279
    %1408 = vst [vmem:[%s2 + $0x30] sm:$0xf] %v1280
    %1409 = vst [vmem:[%s2 + $0x34] sm:$0xf] %v1281
    %1410 = vst [vmem:[%s2 + $0x38] sm:$0xf] %v1282
    %1411 = vst [vmem:[%s2 + $0x3c] sm:$0xf] %v1283
    %1412 = vst [vmem:[%s2 + $0x40] sm:$0xf] %v1284
    %1413 = vst [vmem:[%s2 + $0x44] sm:$0xf] %v1285
    %1414 = vst [vmem:[%s2 + $0x48] sm:$0xf] %v1286
    %1415 = vst [vmem:[%s2 + $0x4c] sm:$0xf] %v1287
    %1416 = vst [vmem:[%s2 + $0x50] sm:$0xf] %v1288
    %1417 = vst [vmem:[%s2 + $0x54] sm:$0xf] %v1289
    %1418 = vst [vmem:[%s2 + $0x58] sm:$0xf] %v1290
    %1419 = vst [vmem:[%s2 + $0x5c] sm:$0xf] %v1291
    %1420 = vst [vmem:[%s2 + $0x60] sm:$0xf] %v1292
    %1421 = vst [vmem:[%s2 + $0x64] sm:$0xf] %v1293
    %1422 = vst [vmem:[%s2 + $0x68] sm:$0xf] %v1294
    %1423 = vst [vmem:[%s2 + $0x6c] sm:$0xf] %v1295
    %1424 = vst [vmem:[%s2 + $0x70] sm:$0xf] %v1296
    %1425 = vst [vmem:[%s2 + $0x74] sm:$0xf] %v1297
    %1426 = vst [vmem:[%s2 + $0x78] sm:$0xf] %v1298
    %1427 = vst [vmem:[%s2 + $0x7c] sm:$0xf] %v1299
    %1428 = vst [vmem:[%s2 + $0x80] sm:$0xf] %v1300
    %1429 = vst [vmem:[%s2 + $0x84] sm:$0xf] %v1301
    %1430 = vst [vmem:[%s2 + $0x88] sm:$0xf] %v1302
    %1431 = vst [vmem:[%s2 + $0x8c] sm:$0xf] %v1303
    %1432 = vst [vmem:[%s2 + $0x90] sm:$0xf] %v1304
    %1433 = vst [vmem:[%s2 + $0x94] sm:$0xf] %v1305
    %1434 = vst [vmem:[%s2 + $0x98] sm:$0xf] %v1306
    %1435 = vst [vmem:[%s2 + $0x9c] sm:$0xf] %v1307
    %1436 = vst [vmem:[%s2 + $0xa0] sm:$0xf] %v1308
    %1437 = vst [vmem:[%s2 + $0xa4] sm:$0xf] %v1309
    %1438 = vst [vmem:[%s2 + $0xa8] sm:$0xf] %v1310
    %1439 = vst [vmem:[%s2 + $0xac] sm:$0xf] %v1311
    %1440 = vst [vmem:[%s2 + $0xb0] sm:$0xf] %v1312
    %1441 = vst [vmem:[%s2 + $0xb4] sm:$0xf] %v1313
    %1442 = vst [vmem:[%s2 + $0xb8] sm:$0xf] %v1314
    %1443 = vst [vmem:[%s2 + $0xbc] sm:$0xf] %v1315
    %1444 = vst [vmem:[%s2 + $0xc0] sm:$0xf] %v1316
    %1445 = vst [vmem:[%s2 + $0xc4] sm:$0xf] %v1317
    %1446 = vst [vmem:[%s2 + $0xc8] sm:$0xf] %v1318
    %1447 = vst [vmem:[%s2 + $0xcc] sm:$0xf] %v1319
    %1448 = vst [vmem:[%s2 + $0xd0] sm:$0xf] %v1320
    %1449 = vst [vmem:[%s2 + $0xd4] sm:$0xf] %v1321
    %1450 = vst [vmem:[%s2 + $0xd8] sm:$0xf] %v1322
    %1451 = vst [vmem:[%s2 + $0xdc] sm:$0xf] %v1323
    %1452 = vst [vmem:[%s2 + $0xe0] sm:$0xf] %v1324
    %1453 = vst [vmem:[%s2 + $0xe4] sm:$0xf] %v1325
    %1454 = vst [vmem:[%s2 + $0xe8] sm:$0xf] %v1326
    %1455 = vst [vmem:[%s2 + $0xec] sm:$0xf] %v1327
    %1456 = vst [vmem:[%s2 + $0xf0] sm:$0xf] %v1328
    %1457 = vst [vmem:[%s2 + $0xf4] sm:$0xf] %v1329
    %1458 = vst [vmem:[%s2 + $0xf8] sm:$0xf] %v1330
    %1459 = vst [vmem:[%s2 + $0xfc] sm:$0xf] %v1331
  $region17: #{bottleneck_forward.13} parent=0 // pred_fallthru
    _
  // Predicated region
  $region18: #{bottleneck_forward.13} parent=0 // pred_check
    _
  $region19: #{bottleneck_forward.13} parent=0 // pred_check_branch
    %1461 = sbr.rel (0) target = $region21
  $region20: #{bottleneck_forward.13} parent=0 // pred_region
    _
  $region21: #{bottleneck_forward.13} parent=0 // pred_fallthru
    _
  // Predicated region
  $region22: #{bottleneck_forward.13} parent=0 // pred_check
    _
  $region23: #{bottleneck_forward.13} parent=0 // pred_check_branch
    %1463 = sbr.rel (0) target = $region25
  $region24: #{bottleneck_forward.13} parent=0 // pred_region
    _
  $region25: #{bottleneck_forward.13} parent=0 // pred_fallthru
    _

// kernel: bottleneck_forward.15
$region0: #{bottleneck_forward.15}
  #allocation0 [shape = 'u32[]', space=smem, size = 0x4, offset = 0x4, fixed_abs, tag = 'smem constant byte address 0x4 - core index']
  #allocation1 [shape = 'u32[144,128]{1,0:T(1,128)}', space=vmem, size = 0x12000, scoped, tag = 'internal scratch']
  #allocation2 [shape = 'f32[128,128]{1,0:T(8,128)}', space=vmem, size = 0x10000, scoped, tag = 'scratch operand']
  %s0 = inlined_call_operand.vmem [shape: bf16[128,128], index: 0, kind: input, shape index: {}]
  %s1 = inlined_call_operand.vmem [shape: f32[1,128], index: 1, kind: input, shape index: {}]
  %s2 = inlined_call_operand.vmem [shape: f32[1,128], index: 2, kind: input, shape index: {}]
  %s3 = inlined_call_operand.vmem [shape: bf16[128,128], index: 3, kind: input, shape index: {}]
  %s4 = inlined_call_operand.vmem [shape: bf16[128,128], index: 4, kind: output, shape index: {}]
  %s5 = sld [smem:[#allocation0]]
  $region34: #{bottleneck_forward.15} parent=0
    _
  %s7 = ssub.s32 1, %s5
  %s8 = scalar_select 0, %s7, %s5
  // Predicated region
  $region2: #{bottleneck_forward.15} parent=0 // pred_check
    _
  $region3: #{bottleneck_forward.15} parent=0 // pred_check_branch
    %10 = sbr.rel (0) target = $region5
  $region4: #{bottleneck_forward.15} parent=0 // pred_region
    _
  $region5: #{bottleneck_forward.15} parent=0 // pred_fallthru
    _
  // Predicated region
  $region6: #{bottleneck_forward.15} parent=0 // pred_check
    _
  $region7: #{bottleneck_forward.15} parent=0 // pred_check_branch
    %12 = sbr.rel (0) target = $region9
  $region8: #{bottleneck_forward.15} parent=0 // pred_region
    _
  $region9: #{bottleneck_forward.15} parent=0 // pred_fallthru
    _
  // Predicated region
  $region10: #{bottleneck_forward.15} parent=0 // pred_check
    _
  $region11: #{bottleneck_forward.15} parent=0 // pred_check_branch
    %14 = sbr.rel (0) target = $region13
  $region12: #{bottleneck_forward.15} parent=0 // pred_region
    _
  $region13: #{bottleneck_forward.15} parent=0 // pred_fallthru
    _
  // Predicated region
  $region14: #{bottleneck_forward.15} parent=0 // pred_check
    _
  $region15: #{bottleneck_forward.15} parent=0 // pred_check_branch
    %16 = sbr.rel (0) target = $region17
  $region16: #{bottleneck_forward.15} parent=0 // pred_region
    _
  $region17: #{bottleneck_forward.15} parent=0 // pred_fallthru
    _
  %p18 = scmp.eq.s32.totalorder 0, 0
  // Predicated region
  $region18: #{bottleneck_forward.15} parent=0 // pred_check
    %p19 = pneg %p18
  $region19: #{bottleneck_forward.15} parent=0 // pred_check_branch
    %21 = sbr.rel (%p19) target = $region21
  $region20: #{bottleneck_forward.15} parent=0 // pred_region
    %22 = vst [vmem:[#allocation2] sm:$0xff] 0.0
    %23 = vst [vmem:[#allocation2 + $0x8] sm:$0xff] 0.0
    %24 = vst [vmem:[#allocation2 + $0x10] sm:$0xff] 0.0
    %25 = vst [vmem:[#allocation2 + $0x18] sm:$0xff] 0.0
    %26 = vst [vmem:[#allocation2 + $0x20] sm:$0xff] 0.0
    %27 = vst [vmem:[#allocation2 + $0x28] sm:$0xff] 0.0
    %28 = vst [vmem:[#allocation2 + $0x30] sm:$0xff] 0.0
    %29 = vst [vmem:[#allocation2 + $0x38] sm:$0xff] 0.0
    %30 = vst [vmem:[#allocation2 + $0x40] sm:$0xff] 0.0
    %31 = vst [vmem:[#allocation2 + $0x48] sm:$0xff] 0.0
    %32 = vst [vmem:[#allocation2 + $0x50] sm:$0xff] 0.0
    %33 = vst [vmem:[#allocation2 + $0x58] sm:$0xff] 0.0
    %34 = vst [vmem:[#allocation2 + $0x60] sm:$0xff] 0.0
    %35 = vst [vmem:[#allocation2 + $0x68] sm:$0xff] 0.0
    %36 = vst [vmem:[#allocation2 + $0x70] sm:$0xff] 0.0
    %37 = vst [vmem:[#allocation2 + $0x78] sm:$0xff] 0.0
  $region21: #{bottleneck_forward.15} parent=0 // pred_fallthru
    _
  %v38 = vld [vmem:[%s0] sm:$0xf]
  %v39 = vld [vmem:[%s0 + $0x4] sm:$0xf]
  %v40 = vld [vmem:[%s0 + $0x8] sm:$0xf]
  %v41 = vld [vmem:[%s0 + $0xc] sm:$0xf]
  %v42 = vld [vmem:[%s0 + $0x10] sm:$0xf]
  %v43 = vld [vmem:[%s0 + $0x14] sm:$0xf]
  %v44 = vld [vmem:[%s0 + $0x18] sm:$0xf]
  %v45 = vld [vmem:[%s0 + $0x1c] sm:$0xf]
  %v46 = vld [vmem:[%s0 + $0x20] sm:$0xf]
  %v47 = vld [vmem:[%s0 + $0x24] sm:$0xf]
  %v48 = vld [vmem:[%s0 + $0x28] sm:$0xf]
  %v49 = vld [vmem:[%s0 + $0x2c] sm:$0xf]
  %v50 = vld [vmem:[%s0 + $0x30] sm:$0xf]
  %v51 = vld [vmem:[%s0 + $0x34] sm:$0xf]
  %v52 = vld [vmem:[%s0 + $0x38] sm:$0xf]
  %v53 = vld [vmem:[%s0 + $0x3c] sm:$0xf]
  %v54 = vunpack.c.l.bf16 %v38
  %v55 = vunpack.c.l.bf16 %v39
  %v56 = vunpack.c.l.bf16 %v40
  %v57 = vunpack.c.l.bf16 %v41
  %v58 = vunpack.c.l.bf16 %v42
  %v59 = vunpack.c.l.bf16 %v43
  %v60 = vunpack.c.l.bf16 %v44
  %v61 = vunpack.c.l.bf16 %v45
  %v62 = vunpack.c.l.bf16 %v46
  %v63 = vunpack.c.l.bf16 %v47
  %v64 = vunpack.c.l.bf16 %v48
  %v65 = vunpack.c.l.bf16 %v49
  %v66 = vunpack.c.l.bf16 %v50
  %v67 = vunpack.c.l.bf16 %v51
  %v68 = vunpack.c.l.bf16 %v52
  %v69 = vunpack.c.l.bf16 %v53
  %v70 = vld [vmem:[%s1] sm:$0x1]
  %v72 = vlaneseq
  %v73 = vshrl.u32 %v72, 7
  %v74 = vsub.s32 0, %v73
  %v75 = vrot.slane %v70, %v74
  %v77 = vmul.f32 %v54, %v75
  %v78 = vmul.f32 %v55, %v75
  %v79 = vmul.f32 %v56, %v75
  %v80 = vmul.f32 %v57, %v75
  %v81 = vmul.f32 %v58, %v75
  %v82 = vmul.f32 %v59, %v75
  %v83 = vmul.f32 %v60, %v75
  %v84 = vmul.f32 %v61, %v75
  %v85 = vmul.f32 %v62, %v75
  %v86 = vmul.f32 %v63, %v75
  %v87 = vmul.f32 %v64, %v75
  %v88 = vmul.f32 %v65, %v75
  %v89 = vmul.f32 %v66, %v75
  %v90 = vmul.f32 %v67, %v75
  %v91 = vmul.f32 %v68, %v75
  %v92 = vmul.f32 %v69, %v75
  %v93 = vld [vmem:[%s2] sm:$0x1]
  %v95 = vlaneseq
  %v96 = vshrl.u32 %v95, 7
  %v97 = vsub.s32 0, %v96
  %v98 = vrot.slane %v93, %v97
  %v100 = vadd.f32 %v77, %v98
  %v101 = vadd.f32 %v78, %v98
  %v102 = vadd.f32 %v79, %v98
  %v103 = vadd.f32 %v80, %v98
  %v104 = vadd.f32 %v81, %v98
  %v105 = vadd.f32 %v82, %v98
  %v106 = vadd.f32 %v83, %v98
  %v107 = vadd.f32 %v84, %v98
  %v108 = vadd.f32 %v85, %v98
  %v109 = vadd.f32 %v86, %v98
  %v110 = vadd.f32 %v87, %v98
  %v111 = vadd.f32 %v88, %v98
  %v112 = vadd.f32 %v89, %v98
  %v113 = vadd.f32 %v90, %v98
  %v114 = vadd.f32 %v91, %v98
  %v115 = vadd.f32 %v92, %v98
  %v116 = vmax.f32 %v100, 0.0
  %v117 = vmax.f32 %v101, 0.0
  %v118 = vmax.f32 %v102, 0.0
  %v119 = vmax.f32 %v103, 0.0
  %v120 = vmax.f32 %v104, 0.0
  %v121 = vmax.f32 %v105, 0.0
  %v122 = vmax.f32 %v106, 0.0
  %v123 = vmax.f32 %v107, 0.0
  %v124 = vmax.f32 %v108, 0.0
  %v125 = vmax.f32 %v109, 0.0
  %v126 = vmax.f32 %v110, 0.0
  %v127 = vmax.f32 %v111, 0.0
  %v128 = vmax.f32 %v112, 0.0
  %v129 = vmax.f32 %v113, 0.0
  %v130 = vmax.f32 %v114, 0.0
  %v131 = vmax.f32 %v115, 0.0
  %v132 = vld [vmem:[#allocation2] sm:$0xff]
  %v133 = vld [vmem:[#allocation2 + $0x8] sm:$0xff]
  %v134 = vld [vmem:[#allocation2 + $0x10] sm:$0xff]
  %v135 = vld [vmem:[#allocation2 + $0x18] sm:$0xff]
  %v136 = vld [vmem:[#allocation2 + $0x20] sm:$0xff]
  %v137 = vld [vmem:[#allocation2 + $0x28] sm:$0xff]
  %v138 = vld [vmem:[#allocation2 + $0x30] sm:$0xff]
  %v139 = vld [vmem:[#allocation2 + $0x38] sm:$0xff]
  %v140 = vld [vmem:[#allocation2 + $0x40] sm:$0xff]
  %v141 = vld [vmem:[#allocation2 + $0x48] sm:$0xff]
  %v142 = vld [vmem:[#allocation2 + $0x50] sm:$0xff]
  %v143 = vld [vmem:[#allocation2 + $0x58] sm:$0xff]
  %v144 = vld [vmem:[#allocation2 + $0x60] sm:$0xff]
  %v145 = vld [vmem:[#allocation2 + $0x68] sm:$0xff]
  %v146 = vld [vmem:[#allocation2 + $0x70] sm:$0xff]
  %v147 = vld [vmem:[#allocation2 + $0x78] sm:$0xff]
  %v148 = vpack.c.bf16 %v117, %v116
  %v149 = vpack.c.bf16 %v119, %v118
  %v150 = vpack.c.bf16 %v121, %v120
  %v151 = vpack.c.bf16 %v123, %v122
  %v152 = vpack.c.bf16 %v125, %v124
  %v153 = vpack.c.bf16 %v127, %v126
  %v154 = vpack.c.bf16 %v129, %v128
  %v155 = vpack.c.bf16 %v131, %v130
  %v156 = vld [vmem:[%s3] sm:$0xf]
  %v157 = vld [vmem:[%s3 + $0x4] sm:$0xf]
  %v158 = vld [vmem:[%s3 + $0x8] sm:$0xf]
  %v159 = vld [vmem:[%s3 + $0xc] sm:$0xf]
  %v160 = vld [vmem:[%s3 + $0x10] sm:$0xf]
  %v161 = vld [vmem:[%s3 + $0x14] sm:$0xf]
  %v162 = vld [vmem:[%s3 + $0x18] sm:$0xf]
  %v163 = vld [vmem:[%s3 + $0x1c] sm:$0xf]
  %v164 = vld [vmem:[%s3 + $0x20] sm:$0xf]
  %v165 = vld [vmem:[%s3 + $0x24] sm:$0xf]
  %v166 = vld [vmem:[%s3 + $0x28] sm:$0xf]
  %v167 = vld [vmem:[%s3 + $0x2c] sm:$0xf]
  %v168 = vld [vmem:[%s3 + $0x30] sm:$0xf]
  %v169 = vld [vmem:[%s3 + $0x34] sm:$0xf]
  %v170 = vld [vmem:[%s3 + $0x38] sm:$0xf]
  %v171 = vld [vmem:[%s3 + $0x3c] sm:$0xf]
  %v188 = vunpack.c.l.b16 %v156
  %v189 = vunpack.c.l.b16 %v157
  %v190 = vunpack.c.l.b16 %v158
  %v191 = vunpack.c.l.b16 %v159
  %v192 = vunpack.c.l.b16 %v160
  %v193 = vunpack.c.l.b16 %v161
  %v194 = vunpack.c.l.b16 %v162
  %v195 = vunpack.c.l.b16 %v163
  %v196 = vunpack.c.l.b16 %v164
  %v197 = vunpack.c.l.b16 %v165
  %v198 = vunpack.c.l.b16 %v166
  %v199 = vunpack.c.l.b16 %v167
  %v200 = vunpack.c.l.b16 %v168
  %v201 = vunpack.c.l.b16 %v169
  %v202 = vunpack.c.l.b16 %v170
  %v203 = vunpack.c.l.b16 %v171
  %v204 = vpack.c.b16 %v189, %v188
  %v205 = vpack.c.b16 %v191, %v190
  %v206 = vpack.c.b16 %v193, %v192
  %v207 = vpack.c.b16 %v195, %v194
  %v208 = vpack.c.b16 %v197, %v196
  %v209 = vpack.c.b16 %v199, %v198
  %v210 = vpack.c.b16 %v201, %v200
  %v211 = vpack.c.b16 %v203, %v202
  %220 = vmatprep.subr.bf16.mxu0 0
  %221 = vmatpush1.bf16.msra.mxu0 %v204
  %222 = vmatprep.subr.bf16.mxu0 0
  %223 = vmatpush1.bf16.msra.mxu0 %v205
  %224 = vmatprep.subr.bf16.mxu0 0
  %225 = vmatpush1.bf16.msra.mxu0 %v206
  %226 = vmatprep.subr.bf16.mxu0 0
  %227 = vmatpush1.bf16.msra.mxu0 %v207
  %228 = vmatprep.subr.bf16.mxu0 0
  %229 = vmatpush1.bf16.msra.mxu0 %v208
  %230 = vmatprep.subr.bf16.mxu0 0
  %231 = vmatpush1.bf16.msra.mxu0 %v209
  %232 = vmatprep.subr.bf16.mxu0 0
  %233 = vmatpush1.bf16.msra.mxu0 %v210
  %234 = vmatprep.subr.bf16.mxu0 0
  %235 = vmatpush1.bf16.msra.mxu0 %v211
  %236 = vmatprep.subr.bf16.mxu0 0
  %237 = vmatpush1.bf16.msra.mxu0 0
  %238 = vmatprep.subr.bf16.mxu0 0
  %239 = vmatpush1.bf16.msra.mxu0 0
  %240 = vmatprep.subr.bf16.mxu0 0
  %241 = vmatpush1.bf16.msra.mxu0 0
  %242 = vmatprep.subr.bf16.mxu0 0
  %243 = vmatpush1.bf16.msra.mxu0 0
  %244 = vmatprep.subr.bf16.mxu0 0
  %245 = vmatpush1.bf16.msra.mxu0 0
  %246 = vmatprep.subr.bf16.mxu0 0
  %247 = vmatpush1.bf16.msra.mxu0 0
  %248 = vmatprep.subr.bf16.mxu0 0
  %249 = vmatpush1.bf16.msra.mxu0 0
  %250 = vmatprep.subr.bf16.mxu0 0
  %251 = vmatpush1.bf16.msra.mxu0 0
  %252 = vmatprep.mubr.bf16.mxu0 0
  %253 = vmatmul.mubr.bf16.gmra.mrb[0].mxu0 %v148
  %v254 = vpop.f32.mrb[0].mxu0
  %v255 = vadd.f32 0.0, %v254
  %v256 = vpop.f32.mrb[0].mxu0
  %v257 = vpop.f32.mrb[0].mxu0
  %v258 = vadd.f32 0.0, %v257
  %v259 = vpop.f32.mrb[0].mxu0
  %260 = vmatprep.mubr.bf16.mxu0 0
  %261 = vmatmul.mubr.bf16.gmra.mrb[0].mxu0 %v149
  %v262 = vpop.f32.mrb[0].mxu0
  %v263 = vadd.f32 0.0, %v262
  %v264 = vpop.f32.mrb[0].mxu0
  %v265 = vpop.f32.mrb[0].mxu0
  %v266 = vadd.f32 0.0, %v265
  %v267 = vpop.f32.mrb[0].mxu0
  %268 = vmatprep.mubr.bf16.mxu0 0
  %269 = vmatmul.mubr.bf16.gmra.mrb[0].mxu0 %v150
  %v270 = vpop.f32.mrb[0].mxu0
  %v271 = vadd.f32 0.0, %v270
  %v272 = vpop.f32.mrb[0].mxu0
  %v273 = vpop.f32.mrb[0].mxu0
  %v274 = vadd.f32 0.0, %v273
  %v275 = vpop.f32.mrb[0].mxu0
  %276 = vmatprep.mubr.bf16.mxu0 0
  %277 = vmatmul.mubr.bf16.gmra.mrb[0].mxu0 %v151
  %v278 = vpop.f32.mrb[0].mxu0
  %v279 = vadd.f32 0.0, %v278
  %v280 = vpop.f32.mrb[0].mxu0
  %v281 = vpop.f32.mrb[0].mxu0
  %v282 = vadd.f32 0.0, %v281
  %v283 = vpop.f32.mrb[0].mxu0
  %284 = vmatprep.mubr.bf16.mxu0 0
  %285 = vmatmul.mubr.bf16.gmra.mrb[0].mxu0 %v152
  %v286 = vpop.f32.mrb[0].mxu0
  %v287 = vadd.f32 0.0, %v286
  %v288 = vpop.f32.mrb[0].mxu0
  %v289 = vpop.f32.mrb[0].mxu0
  %v290 = vadd.f32 0.0, %v289
  %v291 = vpop.f32.mrb[0].mxu0
  %292 = vmatprep.mubr.bf16.mxu0 0
  %293 = vmatmul.mubr.bf16.gmra.mrb[0].mxu0 %v153
  %v294 = vpop.f32.mrb[0].mxu0
  %v295 = vadd.f32 0.0, %v294
  %v296 = vpop.f32.mrb[0].mxu0
  %v297 = vpop.f32.mrb[0].mxu0
  %v298 = vadd.f32 0.0, %v297
  %v299 = vpop.f32.mrb[0].mxu0
  %300 = vmatprep.mubr.bf16.mxu0 0
  %301 = vmatmul.mubr.bf16.gmra.mrb[0].mxu0 %v154
  %v302 = vpop.f32.mrb[0].mxu0
  %v303 = vadd.f32 0.0, %v302
  %v304 = vpop.f32.mrb[0].mxu0
  %v305 = vpop.f32.mrb[0].mxu0
  %v306 = vadd.f32 0.0, %v305
  %v307 = vpop.f32.mrb[0].mxu0
  %308 = vmatprep.mubr.bf16.mxu0 0
  %309 = vmatmul.mubr.bf16.gmra.mrb[0].mxu0 %v155
  %v310 = vpop.f32.mrb[0].mxu0
  %v311 = vadd.f32 0.0, %v310
  %v312 = vpop.f32.mrb[0].mxu0
  %v313 = vpop.f32.mrb[0].mxu0
  %v314 = vadd.f32 0.0, %v313
  %v315 = vpop.f32.mrb[0].mxu0
  %316 = vdwg.mxu0
  %v317 = vadd.f32 %v132, %v255
  %v318 = vadd.f32 %v133, %v258
  %v319 = vadd.f32 %v134, %v263
  %v320 = vadd.f32 %v135, %v266
  %v321 = vadd.f32 %v136, %v271
  %v322 = vadd.f32 %v137, %v274
  %v323 = vadd.f32 %v138, %v279
  %v324 = vadd.f32 %v139, %v282
  %v325 = vadd.f32 %v140, %v287
  %v326 = vadd.f32 %v141, %v290
  %v327 = vadd.f32 %v142, %v295
  %v328 = vadd.f32 %v143, %v298
  %v329 = vadd.f32 %v144, %v303
  %v330 = vadd.f32 %v145, %v306
  %v331 = vadd.f32 %v146, %v311
  %v332 = vadd.f32 %v147, %v314
  %333 = vst [vmem:[#allocation2] sm:$0xff] %v317
  %334 = vst [vmem:[#allocation2 + $0x8] sm:$0xff] %v318
  %335 = vst [vmem:[#allocation2 + $0x10] sm:$0xff] %v319
  %336 = vst [vmem:[#allocation2 + $0x18] sm:$0xff] %v320
  %337 = vst [vmem:[#allocation2 + $0x20] sm:$0xff] %v321
  %338 = vst [vmem:[#allocation2 + $0x28] sm:$0xff] %v322
  %339 = vst [vmem:[#allocation2 + $0x30] sm:$0xff] %v323
  %340 = vst [vmem:[#allocation2 + $0x38] sm:$0xff] %v324
  %341 = vst [vmem:[#allocation2 + $0x40] sm:$0xff] %v325
  %342 = vst [vmem:[#allocation2 + $0x48] sm:$0xff] %v326
  %343 = vst [vmem:[#allocation2 + $0x50] sm:$0xff] %v327
  %344 = vst [vmem:[#allocation2 + $0x58] sm:$0xff] %v328
  %345 = vst [vmem:[#allocation2 + $0x60] sm:$0xff] %v329
  %346 = vst [vmem:[#allocation2 + $0x68] sm:$0xff] %v330
  %347 = vst [vmem:[#allocation2 + $0x70] sm:$0xff] %v331
  %348 = vst [vmem:[#allocation2 + $0x78] sm:$0xff] %v332
  // Predicated region
  $region22: #{bottleneck_forward.15} parent=0 // pred_check
    %p349 = pneg %p18
  $region23: #{bottleneck_forward.15} parent=0 // pred_check_branch
    %351 = sbr.rel (%p349) target = $region25
  $region24: #{bottleneck_forward.15} parent=0 // pred_region
    %v352 = vld [vmem:[#allocation2] sm:$0xff]
    %v353 = vld [vmem:[#allocation2 + $0x8] sm:$0xff]
    %v354 = vld [vmem:[#allocation2 + $0x10] sm:$0xff]
    %v355 = vld [vmem:[#allocation2 + $0x18] sm:$0xff]
    %v356 = vld [vmem:[#allocation2 + $0x20] sm:$0xff]
    %v357 = vld [vmem:[#allocation2 + $0x28] sm:$0xff]
    %v358 = vld [vmem:[#allocation2 + $0x30] sm:$0xff]
    %v359 = vld [vmem:[#allocation2 + $0x38] sm:$0xff]
    %v360 = vld [vmem:[#allocation2 + $0x40] sm:$0xff]
    %v361 = vld [vmem:[#allocation2 + $0x48] sm:$0xff]
    %v362 = vld [vmem:[#allocation2 + $0x50] sm:$0xff]
    %v363 = vld [vmem:[#allocation2 + $0x58] sm:$0xff]
    %v364 = vld [vmem:[#allocation2 + $0x60] sm:$0xff]
    %v365 = vld [vmem:[#allocation2 + $0x68] sm:$0xff]
    %v366 = vld [vmem:[#allocation2 + $0x70] sm:$0xff]
    %v367 = vld [vmem:[#allocation2 + $0x78] sm:$0xff]
    %v368 = vpack.c.bf16 %v353, %v352
    %v369 = vpack.c.bf16 %v355, %v354
    %v370 = vpack.c.bf16 %v357, %v356
    %v371 = vpack.c.bf16 %v359, %v358
    %v372 = vpack.c.bf16 %v361, %v360
    %v373 = vpack.c.bf16 %v363, %v362
    %v374 = vpack.c.bf16 %v365, %v364
    %v375 = vpack.c.bf16 %v367, %v366
    %v384 = vunpack.c.l.b16 %v368
    %v385 = vunpack.c.h.b16 %v368
    %v386 = vunpack.c.l.b16 %v369
    %v387 = vunpack.c.h.b16 %v369
    %v388 = vunpack.c.l.b16 %v370
    %v389 = vunpack.c.h.b16 %v370
    %v390 = vunpack.c.l.b16 %v371
    %v391 = vunpack.c.h.b16 %v371
    %v392 = vunpack.c.l.b16 %v372
    %v393 = vunpack.c.h.b16 %v372
    %v394 = vunpack.c.l.b16 %v373
    %v395 = vunpack.c.h.b16 %v373
    %v396 = vunpack.c.l.b16 %v374
    %v397 = vunpack.c.h.b16 %v374
    %v398 = vunpack.c.l.b16 %v375
    %v399 = vunpack.c.h.b16 %v375
    %v400 = vpack.c.b16 %v384, %v384
    %v401 = vpack.c.b16 %v385, %v385
    %v402 = vpack.c.b16 %v386, %v386
    %v403 = vpack.c.b16 %v387, %v387
    %v404 = vpack.c.b16 %v388, %v388
    %v405 = vpack.c.b16 %v389, %v389
    %v406 = vpack.c.b16 %v390, %v390
    %v407 = vpack.c.b16 %v391, %v391
    %v408 = vpack.c.b16 %v392, %v392
    %v409 = vpack.c.b16 %v393, %v393
    %v410 = vpack.c.b16 %v394, %v394
    %v411 = vpack.c.b16 %v395, %v395
    %v412 = vpack.c.b16 %v396, %v396
    %v413 = vpack.c.b16 %v397, %v397
    %v414 = vpack.c.b16 %v398, %v398
    %v415 = vpack.c.b16 %v399, %v399
    %432 = vst [vmem:[%s4] sm:$0xf] %v400
    %433 = vst [vmem:[%s4 + $0x4] sm:$0xf] %v401
    %434 = vst [vmem:[%s4 + $0x8] sm:$0xf] %v402
    %435 = vst [vmem:[%s4 + $0xc] sm:$0xf] %v403
    %436 = vst [vmem:[%s4 + $0x10] sm:$0xf] %v404
    %437 = vst [vmem:[%s4 + $0x14] sm:$0xf] %v405
    %438 = vst [vmem:[%s4 + $0x18] sm:$0xf] %v406
    %439 = vst [vmem:[%s4 + $0x1c] sm:$0xf] %v407
    %440 = vst [vmem:[%s4 + $0x20] sm:$0xf] %v408
    %441 = vst [vmem:[%s4 + $0x24] sm:$0xf] %v409
    %442 = vst [vmem:[%s4 + $0x28] sm:$0xf] %v410
    %443 = vst [vmem:[%s4 + $0x2c] sm:$0xf] %v411
    %444 = vst [vmem:[%s4 + $0x30] sm:$0xf] %v412
    %445 = vst [vmem:[%s4 + $0x34] sm:$0xf] %v413
    %446 = vst [vmem:[%s4 + $0x38] sm:$0xf] %v414
    %447 = vst [vmem:[%s4 + $0x3c] sm:$0xf] %v415
  $region25: #{bottleneck_forward.15} parent=0 // pred_fallthru
    _
  // Predicated region
  $region26: #{bottleneck_forward.15} parent=0 // pred_check
    _
  $region27: #{bottleneck_forward.15} parent=0 // pred_check_branch
    %449 = sbr.rel (0) target = $region29
  $region28: #{bottleneck_forward.15} parent=0 // pred_region
    _
  $region29: #{bottleneck_forward.15} parent=0 // pred_fallthru
    _
  // Predicated region
  $region30: #{bottleneck_forward.15} parent=0 // pred_check
    _
  $region31: #{bottleneck_forward.15} parent=0 // pred_check_branch
    %451 = sbr.rel (0) target = $region33
  $region32: #{bottleneck_forward.15} parent=0 // pred_region
    _
  $region33: #{bottleneck_forward.15} parent=0 // pred_fallthru
    _

// kernel: bottleneck_forward.17
$region0: #{bottleneck_forward.17}
  #allocation0 [shape = 'u32[]', space=smem, size = 0x4, offset = 0x4, fixed_abs, tag = 'smem constant byte address 0x4 - core index']
  #allocation1 [shape = 'u32[144,128]{1,0:T(1,128)}', space=vmem, size = 0x12000, scoped, tag = 'internal scratch']
  %s0 = inlined_call_operand.vmem [shape: bf16[2,64,128], index: 0, kind: input, shape index: {}]
  %s1 = inlined_call_operand.vmem [shape: f32[2,128], index: 1, kind: output, shape index: {0}]
  %s2 = inlined_call_operand.vmem [shape: f32[2,128], index: 2, kind: output, shape index: {1}]
  %3 = xla_tuple %s1, %s2
  %s4 = sld [smem:[#allocation0]]
  $region26: #{bottleneck_forward.17} parent=0
    _
  %s6 = ssub.s32 1, %s4
  %s7 = scalar_select 0, %s6, %s4
  // Predicated region
  $region2: #{bottleneck_forward.17} parent=0 // pred_check
    _
  $region3: #{bottleneck_forward.17} parent=0 // pred_check_branch
    %9 = sbr.rel (0) target = $region5
  $region4: #{bottleneck_forward.17} parent=0 // pred_region
    _
  $region5: #{bottleneck_forward.17} parent=0 // pred_fallthru
    _
  %p10 = scmp.eq.s32.totalorder 0, 0
  // Predicated region
  $region6: #{bottleneck_forward.17} parent=0 // pred_check
    %p11 = pneg %p10
  $region7: #{bottleneck_forward.17} parent=0 // pred_check_branch
    %13 = sbr.rel (%p11) target = $region9
  $region8: #{bottleneck_forward.17} parent=0 // pred_region
    %14 = vst [vmem:[%s1] sm:$0x3] 0.0
    %15 = vst [vmem:[%s2] sm:$0x3] 0.0
  $region9: #{bottleneck_forward.17} parent=0 // pred_fallthru
    _
  %v16 = vld [vmem:[%s0] sm:$0xf]
  %v17 = vld [vmem:[%s0 + $0x4] sm:$0xf]
  %v18 = vld [vmem:[%s0 + $0x8] sm:$0xf]
  %v19 = vld [vmem:[%s0 + $0xc] sm:$0xf]
  %v20 = vld [vmem:[%s0 + $0x10] sm:$0xf]
  %v21 = vld [vmem:[%s0 + $0x14] sm:$0xf]
  %v22 = vld [vmem:[%s0 + $0x18] sm:$0xf]
  %v23 = vld [vmem:[%s0 + $0x1c] sm:$0xf]
  %v24 = vld [vmem:[%s0 + $0x20] sm:$0xf]
  %v25 = vld [vmem:[%s0 + $0x24] sm:$0xf]
  %v26 = vld [vmem:[%s0 + $0x28] sm:$0xf]
  %v27 = vld [vmem:[%s0 + $0x2c] sm:$0xf]
  %v28 = vld [vmem:[%s0 + $0x30] sm:$0xf]
  %v29 = vld [vmem:[%s0 + $0x34] sm:$0xf]
  %v30 = vld [vmem:[%s0 + $0x38] sm:$0xf]
  %v31 = vld [vmem:[%s0 + $0x3c] sm:$0xf]
  %v32 = vunpack.c.l.bf16 %v16
  %v33 = vunpack.c.l.bf16 %v17
  %v34 = vunpack.c.l.bf16 %v18
  %v35 = vunpack.c.l.bf16 %v19
  %v36 = vunpack.c.l.bf16 %v20
  %v37 = vunpack.c.l.bf16 %v21
  %v38 = vunpack.c.l.bf16 %v22
  %v39 = vunpack.c.l.bf16 %v23
  %v40 = vunpack.c.l.bf16 %v24
  %v41 = vunpack.c.l.bf16 %v25
  %v42 = vunpack.c.l.bf16 %v26
  %v43 = vunpack.c.l.bf16 %v27
  %v44 = vunpack.c.l.bf16 %v28
  %v45 = vunpack.c.l.bf16 %v29
  %v46 = vunpack.c.l.bf16 %v30
  %v47 = vunpack.c.l.bf16 %v31
  %v48 = vld [vmem:[%s1] sm:$0x3]
  %v49 = vadd.f32 %v32, %v33
  %v50 = vadd.f32 %v49, %v34
  %v51 = vadd.f32 %v50, %v35
  %v52 = vadd.f32 %v51, %v36
  %v53 = vadd.f32 %v52, %v37
  %v54 = vadd.f32 %v53, %v38
  %v55 = vadd.f32 %v54, %v39
  %v56 = vrot.slane %v55, 4
  %v57 = vadd.f32 %v55, %v56
  %v58 = vrot.slane %v57, 2
  %v59 = vadd.f32 %v57, %v58
  %v60 = vrot.slane %v59, 1
  %v61 = vadd.f32 %v59, %v60
  %v62 = vadd.f32 %v40, %v41
  %v63 = vadd.f32 %v62, %v42
  %v64 = vadd.f32 %v63, %v43
  %v65 = vadd.f32 %v64, %v44
  %v66 = vadd.f32 %v65, %v45
  %v67 = vadd.f32 %v66, %v46
  %v68 = vadd.f32 %v67, %v47
  %v69 = vrot.slane %v68, 4
  %v70 = vadd.f32 %v68, %v69
  %v71 = vrot.slane %v70, 2
  %v72 = vadd.f32 %v70, %v71
  %v73 = vrot.slane %v72, 1
  %v74 = vadd.f32 %v72, %v73
  %vm77 = vcmask 1041409
  %v78 = vsel %vm77, %v74, %v61
  %v80 = vadd.f32 %v48, %v78
  %81 = vst [vmem:[%s1] sm:$0x3] %v80
  %v82 = vld [vmem:[%s2] sm:$0x3]
  %v83 = vmul.f32 %v32, %v32
  %v84 = vmul.f32 %v33, %v33
  %v85 = vmul.f32 %v34, %v34
  %v86 = vmul.f32 %v35, %v35
  %v87 = vmul.f32 %v36, %v36
  %v88 = vmul.f32 %v37, %v37
  %v89 = vmul.f32 %v38, %v38
  %v90 = vmul.f32 %v39, %v39
  %v91 = vmul.f32 %v40, %v40
  %v92 = vmul.f32 %v41, %v41
  %v93 = vmul.f32 %v42, %v42
  %v94 = vmul.f32 %v43, %v43
  %v95 = vmul.f32 %v44, %v44
  %v96 = vmul.f32 %v45, %v45
  %v97 = vmul.f32 %v46, %v46
  %v98 = vmul.f32 %v47, %v47
  %v99 = vadd.f32 %v83, %v84
  %v100 = vadd.f32 %v99, %v85
  %v101 = vadd.f32 %v100, %v86
  %v102 = vadd.f32 %v101, %v87
  %v103 = vadd.f32 %v102, %v88
  %v104 = vadd.f32 %v103, %v89
  %v105 = vadd.f32 %v104, %v90
  %v106 = vrot.slane %v105, 4
  %v107 = vadd.f32 %v105, %v106
  %v108 = vrot.slane %v107, 2
  %v109 = vadd.f32 %v107, %v108
  %v110 = vrot.slane %v109, 1
  %v111 = vadd.f32 %v109, %v110
  %v112 = vadd.f32 %v91, %v92
  %v113 = vadd.f32 %v112, %v93
  %v114 = vadd.f32 %v113, %v94
  %v115 = vadd.f32 %v114, %v95
  %v116 = vadd.f32 %v115, %v96
  %v117 = vadd.f32 %v116, %v97
  %v118 = vadd.f32 %v117, %v98
  %v119 = vrot.slane %v118, 4
  %v120 = vadd.f32 %v118, %v119
  %v121 = vrot.slane %v120, 2
  %v122 = vadd.f32 %v120, %v121
  %v123 = vrot.slane %v122, 1
  %v124 = vadd.f32 %v122, %v123
  %v127 = vsel %vm77, %v124, %v111
  %v129 = vadd.f32 %v82, %v127
  %130 = vst [vmem:[%s2] sm:$0x3] %v129
  // Predicated region
  $region10: #{bottleneck_forward.17} parent=0 // pred_check
    _
  $region11: #{bottleneck_forward.17} parent=0 // pred_check_branch
    %132 = sbr.rel (0) target = $region13
  $region12: #{bottleneck_forward.17} parent=0 // pred_region
    _
  $region13: #{bottleneck_forward.17} parent=0 // pred_fallthru
    _
  // Predicated region
  $region14: #{bottleneck_forward.17} parent=0 // pred_check
    _
  $region15: #{bottleneck_forward.17} parent=0 // pred_check_branch
    %134 = sbr.rel (0) target = $region17
  $region16: #{bottleneck_forward.17} parent=0 // pred_region
    _
  $region17: #{bottleneck_forward.17} parent=0 // pred_fallthru
    _
  // Predicated region
  $region18: #{bottleneck_forward.17} parent=0 // pred_check
    _
  $region19: #{bottleneck_forward.17} parent=0 // pred_check_branch
    %136 = sbr.rel (0) target = $region21
  $region20: #{bottleneck_forward.17} parent=0 // pred_region
    _
  $region21: #{bottleneck_forward.17} parent=0 // pred_fallthru
    _
  // Predicated region
  $region22: #{bottleneck_forward.17} parent=0 // pred_check
    _
  $region23: #{bottleneck_forward.17} parent=0 // pred_check_branch
    %138 = sbr.rel (0) target = $region25
  $region24: #{bottleneck_forward.17} parent=0 // pred_region
    _
  $region25: #{bottleneck_forward.17} parent=0 // pred_fallthru
    _

// kernel: bottleneck_forward.19
$region0: #{bottleneck_forward.19}
  #allocation0 [shape = 'u32[]', space=smem, size = 0x4, offset = 0x4, fixed_abs, tag = 'smem constant byte address 0x4 - core index']
  #allocation1 [shape = 'u32[144,128]{1,0:T(1,128)}', space=vmem, size = 0x12000, scoped, tag = 'internal scratch']
  %s0 = inlined_call_operand.vmem [shape: bf16[2,64,128], index: 0, kind: input, shape index: {}]
  %s1 = inlined_call_operand.vmem [shape: bf16[2,64,128], index: 1, kind: input, shape index: {}]
  %s2 = inlined_call_operand.vmem [shape: f32[2,1,128], index: 2, kind: input, shape index: {}]
  %s3 = inlined_call_operand.vmem [shape: f32[1,1,128], index: 3, kind: input, shape index: {}]
  %s4 = inlined_call_operand.vmem [shape: f32[1,1,128], index: 4, kind: input, shape index: {}]
  %s5 = inlined_call_operand.vmem [shape: f32[1,1,128], index: 5, kind: input, shape index: {}]
  %s6 = inlined_call_operand.vmem [shape: f32[1,1,128], index: 6, kind: input, shape index: {}]
  %s7 = inlined_call_operand.vmem [shape: f32[2,64,128], index: 7, kind: output, shape index: {}]
  %s8 = sld [smem:[#allocation0]]
  $region61: #{bottleneck_forward.19} parent=0
    _
  %s10 = ssub.s32 1, %s8
  %s11 = scalar_select 0, %s10, %s8
  loop: start=0, step=1, limit=4
  $region2: #{bottleneck_forward.19} parent=0 // loop_pre_header
    _
  $region3: #{bottleneck_forward.19} parent=0 // loop_header
    %s13 = sphi 0, %s17
    %p14 = scmp.ge.s32.totalorder %s13, 4
    %s20 = sphi 0, %s32
    %s21 = sphi 0, %s28
    %s22 = sphi 0, %s20
    %s23 = sphi 0, %s21
    %s24 = sphi 0, %s22
    %s25 = sphi 0, %s23
    %s37 = sphi 0, %s39
    %s40 = sphi 0, %s37
    %s41 = sphi 0, %s40
    %s57 = sphi 0, %s41
    %s65 = sphi 0, %s67
    %s68 = sphi 0, %s65
    %s69 = sphi 0, %s68
    %s85 = sphi 0, %s69
    %s91 = sphi 0, %s93
    %s94 = sphi 0, %s91
    %s95 = sphi 0, %s94
    %s111 = sphi 0, %s95
    %s115 = sphi 0, %s115
    %s117 = sphi 0, %s115
    %s118 = sphi 0, %s117
    %s132 = sphi 0, %s118
    %s136 = sphi 0, %s136
    %s138 = sphi 0, %s136
    %s139 = sphi 0, %s138
    %s153 = sphi 0, %s139
    %s157 = sphi 0, %s157
    %s159 = sphi 0, %s157
    %s160 = sphi 0, %s159
    %s174 = sphi 0, %s160
    %s178 = sphi 0, %s178
    %s180 = sphi 0, %s178
    %s181 = sphi 0, %s180
    %s195 = sphi 0, %s181
    %s203 = sphi 0, %s205
    %s206 = sphi 0, %s203
    %s207 = sphi 0, %s206
    %s223 = sphi 0, %s207
  $region4: #{bottleneck_forward.19} parent=0 // loop_header_branch
    %16 = sbr.rel (%p14) target = $region8
  $region5: #{bottleneck_forward.19} parent=0 // loop_body
    %s18 = ssub.s32 %s13, 1
    %s19 = ssub.s32 %s13, 2
    %s26 = sadd.s32 1, %s21
    %p27 = scmp.ge.s32.totalorder %s26, 1
    %s28 = scalar_select %p27, 0, %s26
    %s29 = sadd.s32 1, %s20
    %s30 = scalar_select %p27, %s29, %s20
    %p31 = scmp.ge.s32.totalorder %s30, 2
    %s32 = scalar_select %p31, 0, %s30
    %s33 = ssub.s32 %s20, %s32
    %s34 = ssub.s32 %s21, %s28
    %s35 = sor.u32 %s33, %s34
    %p36 = scmp.eq.s32.totalorder %s35, 0
    %s38 = sadd.s32 %s37, 1
    %s39 = scalar_select %p36, %s37, %s38
    %p42 = pneg %p36
    %p43 = scmp.eq.s32.totalorder %s13, 1
    %p44 = por %p42, %p43
    %p45 = scmp.ne.s32.totalorder %s37, %s40
    %p46 = scmp.eq.s32.totalorder %s13, 0
    %p47 = por %p45, %p46
    %p48 = scmp.ne.s32.totalorder %s37, %s40
    %p49 = scmp.eq.s32.totalorder %s18, 1
    %p50 = por %p48, %p49
    %p51 = scmp.ne.s32.totalorder %s40, %s41
    %p52 = scmp.eq.s32.totalorder %s18, 0
    %p53 = por %p51, %p52
    %p54 = scmp.ne.s32.totalorder %s40, %s41
    %p55 = scmp.eq.s32.totalorder %s19, 1
    %p56 = por %p54, %p55
    %p58 = scmp.ne.s32.totalorder %s41, %s57
    %p59 = scmp.eq.s32.totalorder %s19, 0
    %p60 = por %p58, %p59
    %s61 = ssub.s32 %s20, %s32
    %s62 = ssub.s32 %s21, %s28
    %s63 = sor.u32 %s61, %s62
    %p64 = scmp.eq.s32.totalorder %s63, 0
    %s66 = sadd.s32 %s65, 1
    %s67 = scalar_select %p64, %s65, %s66
    %p70 = pneg %p64
    %p71 = scmp.eq.s32.totalorder %s13, 1
    %p72 = por %p70, %p71
    %p73 = scmp.ne.s32.totalorder %s65, %s68
    %p74 = scmp.eq.s32.totalorder %s13, 0
    %p75 = por %p73, %p74
    %p76 = scmp.ne.s32.totalorder %s65, %s68
    %p77 = scmp.eq.s32.totalorder %s18, 1
    %p78 = por %p76, %p77
    %p79 = scmp.ne.s32.totalorder %s68, %s69
    %p80 = scmp.eq.s32.totalorder %s18, 0
    %p81 = por %p79, %p80
    %p82 = scmp.ne.s32.totalorder %s68, %s69
    %p83 = scmp.eq.s32.totalorder %s19, 1
    %p84 = por %p82, %p83
    %p86 = scmp.ne.s32.totalorder %s69, %s85
    %p87 = scmp.eq.s32.totalorder %s19, 0
    %p88 = por %p86, %p87
    %s89 = ssub.s32 %s20, %s32
    %p90 = scmp.eq.s32.totalorder %s89, 0
    %s92 = sadd.s32 %s91, 1
    %s93 = scalar_select %p90, %s91, %s92
    %p96 = pneg %p90
    %p97 = scmp.eq.s32.totalorder %s13, 1
    %p98 = por %p96, %p97
    %p99 = scmp.ne.s32.totalorder %s91, %s94
    %p100 = scmp.eq.s32.totalorder %s13, 0
    %p101 = por %p99, %p100
    %p102 = scmp.ne.s32.totalorder %s91, %s94
    %p103 = scmp.eq.s32.totalorder %s18, 1
    %p104 = por %p102, %p103
    %p105 = scmp.ne.s32.totalorder %s94, %s95
    %p106 = scmp.eq.s32.totalorder %s18, 0
    %p107 = por %p105, %p106
    %p108 = scmp.ne.s32.totalorder %s94, %s95
    %p109 = scmp.eq.s32.totalorder %s19, 1
    %p110 = por %p108, %p109
    %p112 = scmp.ne.s32.totalorder %s95, %s111
    %p113 = scmp.eq.s32.totalorder %s19, 0
    %p114 = por %p112, %p113
    %s116 = sadd.s32 %s115, 1
    %p119 = scmp.eq.s32.totalorder %s13, 1
    %p120 = scmp.ne.s32.totalorder %s115, %s117
    %p121 = scmp.eq.s32.totalorder %s13, 0
    %p122 = por %p120, %p121
    %p123 = scmp.ne.s32.totalorder %s115, %s117
    %p124 = scmp.eq.s32.totalorder %s18, 1
    %p125 = por %p123, %p124
    %p126 = scmp.ne.s32.totalorder %s117, %s118
    %p127 = scmp.eq.s32.totalorder %s18, 0
    %p128 = por %p126, %p127
    %p129 = scmp.ne.s32.totalorder %s117, %s118
    %p130 = scmp.eq.s32.totalorder %s19, 1
    %p131 = por %p129, %p130
    %p133 = scmp.ne.s32.totalorder %s118, %s132
    %p134 = scmp.eq.s32.totalorder %s19, 0
    %p135 = por %p133, %p134
    %s137 = sadd.s32 %s136, 1
    %p140 = scmp.eq.s32.totalorder %s13, 1
    %p141 = scmp.ne.s32.totalorder %s136, %s138
    %p142 = scmp.eq.s32.totalorder %s13, 0
    %p143 = por %p141, %p142
    %p144 = scmp.ne.s32.totalorder %s136, %s138
    %p145 = scmp.eq.s32.totalorder %s18, 1
    %p146 = por %p144, %p145
    %p147 = scmp.ne.s32.totalorder %s138, %s139
    %p148 = scmp.eq.s32.totalorder %s18, 0
    %p149 = por %p147, %p148
    %p150 = scmp.ne.s32.totalorder %s138, %s139
    %p151 = scmp.eq.s32.totalorder %s19, 1
    %p152 = por %p150, %p151
    %p154 = scmp.ne.s32.totalorder %s139, %s153
    %p155 = scmp.eq.s32.totalorder %s19, 0
    %p156 = por %p154, %p155
    %s158 = sadd.s32 %s157, 1
    %p161 = scmp.eq.s32.totalorder %s13, 1
    %p162 = scmp.ne.s32.totalorder %s157, %s159
    %p163 = scmp.eq.s32.totalorder %s13, 0
    %p164 = por %p162, %p163
    %p165 = scmp.ne.s32.totalorder %s157, %s159
    %p166 = scmp.eq.s32.totalorder %s18, 1
    %p167 = por %p165, %p166
    %p168 = scmp.ne.s32.totalorder %s159, %s160
    %p169 = scmp.eq.s32.totalorder %s18, 0
    %p170 = por %p168, %p169
    %p171 = scmp.ne.s32.totalorder %s159, %s160
    %p172 = scmp.eq.s32.totalorder %s19, 1
    %p173 = por %p171, %p172
    %p175 = scmp.ne.s32.totalorder %s160, %s174
    %p176 = scmp.eq.s32.totalorder %s19, 0
    %p177 = por %p175, %p176
    %s179 = sadd.s32 %s178, 1
    %p182 = scmp.eq.s32.totalorder %s13, 1
    %p183 = scmp.ne.s32.totalorder %s178, %s180
    %p184 = scmp.eq.s32.totalorder %s13, 0
    %p185 = por %p183, %p184
    %p186 = scmp.ne.s32.totalorder %s178, %s180
    %p187 = scmp.eq.s32.totalorder %s18, 1
    %p188 = por %p186, %p187
    %p189 = scmp.ne.s32.totalorder %s180, %s181
    %p190 = scmp.eq.s32.totalorder %s18, 0
    %p191 = por %p189, %p190
    %p192 = scmp.ne.s32.totalorder %s180, %s181
    %p193 = scmp.eq.s32.totalorder %s19, 1
    %p194 = por %p192, %p193
    %p196 = scmp.ne.s32.totalorder %s181, %s195
    %p197 = scmp.eq.s32.totalorder %s19, 0
    %p198 = por %p196, %p197
    %s199 = ssub.s32 %s20, %s32
    %s200 = ssub.s32 %s21, %s28
    %s201 = sor.u32 %s199, %s200
    %p202 = scmp.eq.s32.totalorder %s201, 0
    %s204 = sadd.s32 %s203, 1
    %s205 = scalar_select %p202, %s203, %s204
    %p208 = pneg %p202
    %p209 = scmp.eq.s32.totalorder %s13, 1
    %p210 = por %p208, %p209
    %p211 = scmp.ne.s32.totalorder %s203, %s206
    %p212 = scmp.eq.s32.totalorder %s13, 0
    %p213 = por %p211, %p212
    %p214 = scmp.ne.s32.totalorder %s203, %s206
    %p215 = scmp.eq.s32.totalorder %s18, 1
    %p216 = por %p214, %p215
    %p217 = scmp.ne.s32.totalorder %s206, %s207
    %p218 = scmp.eq.s32.totalorder %s18, 0
    %p219 = por %p217, %p218
    %p220 = scmp.ne.s32.totalorder %s206, %s207
    %p221 = scmp.eq.s32.totalorder %s19, 1
    %p222 = por %p220, %p221
    %p224 = scmp.ne.s32.totalorder %s207, %s223
    %p225 = scmp.eq.s32.totalorder %s19, 0
    %p226 = por %p224, %p225
    %p227 = scmp.le.s32.totalorder 1, %s13
    %p228 = scmp.lt.s32.totalorder %s13, 3
    %p229 = pnand %p227, %p228
    %p230 = pneg %p229
    // Predicated region
    $region9: #{bottleneck_forward.19} parent=5 // pred_check
      _
    $region10: #{bottleneck_forward.19} parent=5 // pred_check_branch
      %232 = sbr.rel (%p229) target = $region12
    $region11: #{bottleneck_forward.19} parent=5 // pred_region
      %s233 = ssub.s32 %s13, 1
      // Predicated region
      $region13: #{bottleneck_forward.19} parent=11 // pred_check
        %p234 = pneg %p128
      $region14: #{bottleneck_forward.19} parent=11 // pred_check_branch
        %236 = sbr.rel (%p234) target = $region16
      $region15: #{bottleneck_forward.19} parent=11 // pred_region
        _
      $region16: #{bottleneck_forward.19} parent=11 // pred_fallthru
        _
      // Predicated region
      $region17: #{bottleneck_forward.19} parent=11 // pred_check
        %p237 = pneg %p149
      $region18: #{bottleneck_forward.19} parent=11 // pred_check_branch
        %239 = sbr.rel (%p237) target = $region20
      $region19: #{bottleneck_forward.19} parent=11 // pred_region
        _
      $region20: #{bottleneck_forward.19} parent=11 // pred_fallthru
        _
      // Predicated region
      $region21: #{bottleneck_forward.19} parent=11 // pred_check
        %p240 = pneg %p170
      $region22: #{bottleneck_forward.19} parent=11 // pred_check_branch
        %242 = sbr.rel (%p240) target = $region24
      $region23: #{bottleneck_forward.19} parent=11 // pred_region
        _
      $region24: #{bottleneck_forward.19} parent=11 // pred_fallthru
        _
      // Predicated region
      $region25: #{bottleneck_forward.19} parent=11 // pred_check
        %p243 = pneg %p191
      $region26: #{bottleneck_forward.19} parent=11 // pred_check_branch
        %245 = sbr.rel (%p243) target = $region28
      $region27: #{bottleneck_forward.19} parent=11 // pred_region
        _
      $region28: #{bottleneck_forward.19} parent=11 // pred_fallthru
        _
    $region12: #{bottleneck_forward.19} parent=5 // pred_fallthru
      _
    %p246 = scmp.lt.s32.totalorder %s13, 2
    // Predicated region
    $region29: #{bottleneck_forward.19} parent=5 // pred_check
      %p247 = pneg %p246
    $region30: #{bottleneck_forward.19} parent=5 // pred_check_branch
      %249 = sbr.rel (%p247) target = $region32
    $region31: #{bottleneck_forward.19} parent=5 // pred_region
      // Predicated region
      $region33: #{bottleneck_forward.19} parent=31 // pred_check
        %p250 = pneg %p47
      $region34: #{bottleneck_forward.19} parent=31 // pred_check_branch
        %252 = sbr.rel (%p250) target = $region36
      $region35: #{bottleneck_forward.19} parent=31 // pred_region
        %s253 = smul.u32 8, %s21
        %p254 = scmp.lt.s32.totalorder %s20, 1
        %s255 = scalar_select %p254, %s20, 1
        %p256 = scmp.lt.s32.totalorder %s253, 7
        %s257 = scalar_select %p256, %s253, 7
        %s258 = smul.addr %s255, 8
        %s259 = sadd.s32 %s257, %s258
        %s260 = smul.addr %s259, 4
        %s261 = scalar_lea.vmem %s0, %s260
        %s262 = smul.u32 8, %s21
      $region36: #{bottleneck_forward.19} parent=31 // pred_fallthru
        _
      // Predicated region
      $region37: #{bottleneck_forward.19} parent=31 // pred_check
        %p263 = pneg %p75
      $region38: #{bottleneck_forward.19} parent=31 // pred_check_branch
        %265 = sbr.rel (%p263) target = $region40
      $region39: #{bottleneck_forward.19} parent=31 // pred_region
        %s266 = smul.u32 8, %s21
        %p267 = scmp.lt.s32.totalorder %s20, 1
        %s268 = scalar_select %p267, %s20, 1
        %p269 = scmp.lt.s32.totalorder %s266, 7
        %s270 = scalar_select %p269, %s266, 7
        %s271 = smul.addr %s268, 8
        %s272 = sadd.s32 %s270, %s271
        %s273 = smul.addr %s272, 4
        %s274 = scalar_lea.vmem %s1, %s273
        %s275 = smul.u32 8, %s21
      $region40: #{bottleneck_forward.19} parent=31 // pred_fallthru
        _
      // Predicated region
      $region41: #{bottleneck_forward.19} parent=31 // pred_check
        %p276 = pneg %p101
      $region42: #{bottleneck_forward.19} parent=31 // pred_check_branch
        %278 = sbr.rel (%p276) target = $region44
      $region43: #{bottleneck_forward.19} parent=31 // pred_region
        %p279 = scmp.lt.s32.totalorder %s20, 1
        %s280 = scalar_select %p279, %s20, 1
        %s281 = scalar_lea.vmem %s2, %s280
      $region44: #{bottleneck_forward.19} parent=31 // pred_fallthru
        _
    $region32: #{bottleneck_forward.19} parent=5 // pred_fallthru
      _
    %p282 = scmp.le.s32.totalorder 1, %s13
    %p283 = scmp.lt.s32.totalorder %s13, 3
    %p284 = pnand %p282, %p283
    %p285 = pneg %p284
    // Predicated region
    $region45: #{bottleneck_forward.19} parent=5 // pred_check
      _
    $region46: #{bottleneck_forward.19} parent=5 // pred_check_branch
      %287 = sbr.rel (%p284) target = $region48
    $region47: #{bottleneck_forward.19} parent=5 // pred_region
      %s288 = ssub.s32 %s13, 1
      %s289 = smul.u32 8, %s23
      %p290 = scmp.lt.s32.totalorder %s22, 1
      %s291 = scalar_select %p290, %s22, 1
      %p292 = scmp.lt.s32.totalorder %s289, 7
      %s293 = scalar_select %p292, %s289, 7
      %s294 = smul.addr %s291, 8
      %s295 = sadd.s32 %s293, %s294
      %s296 = smul.addr %s295, 4
      %s297 = scalar_lea.vmem %s0, %s296
      %p298 = pneg %p53
      %p299 = pneg %p50
      %s300 = smul.u32 8, %s23
      %p301 = scmp.lt.s32.totalorder %s22, 1
      %s302 = scalar_select %p301, %s22, 1
      %p303 = scmp.lt.s32.totalorder %s300, 7
      %s304 = scalar_select %p303, %s300, 7
      %s305 = smul.addr %s302, 8
      %s306 = sadd.s32 %s304, %s305
      %s307 = smul.addr %s306, 4
      %s308 = scalar_lea.vmem %s1, %s307
      %p309 = pneg %p81
      %p310 = pneg %p78
      %p311 = scmp.lt.s32.totalorder %s22, 1
      %s312 = scalar_select %p311, %s22, 1
      %s313 = scalar_lea.vmem %s2, %s312
      %p314 = pneg %p107
      %p315 = pneg %p104
      %p316 = pneg %p128
      %p317 = pneg %p125
      %p318 = pneg %p149
      %p319 = pneg %p146
      %p320 = pneg %p170
      %p321 = pneg %p167
      %p322 = pneg %p191
      %p323 = pneg %p188
      %p324 = pneg %p219
      %p325 = pneg %p216
      %s326 = smul.u32 8, %s23
      %p327 = scmp.lt.s32.totalorder %s22, 1
      %s328 = scalar_select %p327, %s22, 1
      %p329 = scmp.lt.s32.totalorder %s326, 7
      %s330 = scalar_select %p329, %s326, 7
      %s331 = smul.addr %s328, 8
      %s332 = sadd.s32 %s330, %s331
      %s333 = smul.addr %s332, 8
      %s334 = scalar_lea.vmem %s7, %s333
      %s335 = smul.u32 8, %s23
      %p336 = scmp.lt.s32.totalorder %s22, 1
      %s337 = scalar_select %p336, %s22, 1
      %p338 = scmp.lt.s32.totalorder %s335, 7
      %s339 = scalar_select %p338, %s335, 7
      %s340 = smul.addr %s337, 8
      %s341 = sadd.s32 %s339, %s340
      %s342 = smul.addr %s341, 4
      %s343 = scalar_lea.vmem %s0, %s342
      %s344 = smul.u32 8, %s23
      %s345 = smul.u32 8, %s23
      %p346 = scmp.lt.s32.totalorder %s22, 1
      %s347 = scalar_select %p346, %s22, 1
      %p348 = scmp.lt.s32.totalorder %s345, 7
      %s349 = scalar_select %p348, %s345, 7
      %s350 = smul.addr %s347, 8
      %s351 = sadd.s32 %s349, %s350
      %s352 = smul.addr %s351, 4
      %s353 = scalar_lea.vmem %s1, %s352
      %s354 = smul.u32 8, %s23
      %p355 = scmp.lt.s32.totalorder %s22, 1
      %s356 = scalar_select %p355, %s22, 1
      %s357 = scalar_lea.vmem %s2, %s356
      %s358 = smul.u32 8, %s23
      %p359 = scmp.lt.s32.totalorder %s22, 1
      %s360 = scalar_select %p359, %s22, 1
      %p361 = scmp.lt.s32.totalorder %s358, 7
      %s362 = scalar_select %p361, %s358, 7
      %s363 = smul.addr %s360, 8
      %s364 = sadd.s32 %s362, %s363
      %s365 = smul.addr %s364, 8
      %s366 = scalar_lea.vmem %s7, %s365
      %s367 = smul.u32 8, %s23
      %v368 = vld [vmem:[%s343] sm:$0xf]
      %v369 = vld [vmem:[%s343 + $0x4] sm:$0xf]
      %v370 = vld [vmem:[%s343 + $0x8] sm:$0xf]
      %v371 = vld [vmem:[%s343 + $0xc] sm:$0xf]
      %v372 = vld [vmem:[%s343 + $0x10] sm:$0xf]
      %v373 = vld [vmem:[%s343 + $0x14] sm:$0xf]
      %v374 = vld [vmem:[%s343 + $0x18] sm:$0xf]
      %v375 = vld [vmem:[%s343 + $0x1c] sm:$0xf]
      %v376 = vunpack.c.l.bf16 %v368
      %v377 = vunpack.c.l.bf16 %v369
      %v378 = vunpack.c.l.bf16 %v370
      %v379 = vunpack.c.l.bf16 %v371
      %v380 = vunpack.c.l.bf16 %v372
      %v381 = vunpack.c.l.bf16 %v373
      %v382 = vunpack.c.l.bf16 %v374
      %v383 = vunpack.c.l.bf16 %v375
      %v384 = vld [vmem:[%s353] sm:$0xf]
      %v385 = vld [vmem:[%s353 + $0x4] sm:$0xf]
      %v386 = vld [vmem:[%s353 + $0x8] sm:$0xf]
      %v387 = vld [vmem:[%s353 + $0xc] sm:$0xf]
      %v388 = vld [vmem:[%s353 + $0x10] sm:$0xf]
      %v389 = vld [vmem:[%s353 + $0x14] sm:$0xf]
      %v390 = vld [vmem:[%s353 + $0x18] sm:$0xf]
      %v391 = vld [vmem:[%s353 + $0x1c] sm:$0xf]
      %v392 = vunpack.c.l.bf16 %v384
      %v393 = vunpack.c.l.bf16 %v385
      %v394 = vunpack.c.l.bf16 %v386
      %v395 = vunpack.c.l.bf16 %v387
      %v396 = vunpack.c.l.bf16 %v388
      %v397 = vunpack.c.l.bf16 %v389
      %v398 = vunpack.c.l.bf16 %v390
      %v399 = vunpack.c.l.bf16 %v391
      %v400 = vld [vmem:[%s3] sm:$0x1]
      %v402 = vlaneseq
      %v403 = vshrl.u32 %v402, 7
      %v404 = vsub.s32 0, %v403
      %v405 = vrot.slane %v400, %v404
      %v407 = vmul.f32 %v376, %v405
      %v408 = vmul.f32 %v377, %v405
      %v409 = vmul.f32 %v378, %v405
      %v410 = vmul.f32 %v379, %v405
      %v411 = vmul.f32 %v380, %v405
      %v412 = vmul.f32 %v381, %v405
      %v413 = vmul.f32 %v382, %v405
      %v414 = vmul.f32 %v383, %v405
      %v415 = vld [vmem:[%s4] sm:$0x1]
      %v417 = vlaneseq
      %v418 = vshrl.u32 %v417, 7
      %v419 = vsub.s32 0, %v418
      %v420 = vrot.slane %v415, %v419
      %v422 = vadd.f32 %v407, %v420
      %v423 = vadd.f32 %v408, %v420
      %v424 = vadd.f32 %v409, %v420
      %v425 = vadd.f32 %v410, %v420
      %v426 = vadd.f32 %v411, %v420
      %v427 = vadd.f32 %v412, %v420
      %v428 = vadd.f32 %v413, %v420
      %v429 = vadd.f32 %v414, %v420
      %v430 = vld [vmem:[%s357] sm:$0x1]
      %v432 = vlaneseq
      %v433 = vshrl.u32 %v432, 7
      %v434 = vsub.s32 0, %v433
      %v435 = vrot.slane %v430, %v434
      %v437 = vmul.f32 %v422, %v435
      %v438 = vmul.f32 %v423, %v435
      %v439 = vmul.f32 %v424, %v435
      %v440 = vmul.f32 %v425, %v435
      %v441 = vmul.f32 %v426, %v435
      %v442 = vmul.f32 %v427, %v435
      %v443 = vmul.f32 %v428, %v435
      %v444 = vmul.f32 %v429, %v435
      %v445 = vld [vmem:[%s5] sm:$0x1]
      %v447 = vlaneseq
      %v448 = vshrl.u32 %v447, 7
      %v449 = vsub.s32 0, %v448
      %v450 = vrot.slane %v445, %v449
      %v452 = vmul.f32 %v392, %v450
      %v453 = vmul.f32 %v393, %v450
      %v454 = vmul.f32 %v394, %v450
      %v455 = vmul.f32 %v395, %v450
      %v456 = vmul.f32 %v396, %v450
      %v457 = vmul.f32 %v397, %v450
      %v458 = vmul.f32 %v398, %v450
      %v459 = vmul.f32 %v399, %v450
      %v460 = vld [vmem:[%s6] sm:$0x1]
      %v462 = vlaneseq
      %v463 = vshrl.u32 %v462, 7
      %v464 = vsub.s32 0, %v463
      %v465 = vrot.slane %v460, %v464
      %v467 = vadd.f32 %v452, %v465
      %v468 = vadd.f32 %v453, %v465
      %v469 = vadd.f32 %v454, %v465
      %v470 = vadd.f32 %v455, %v465
      %v471 = vadd.f32 %v456, %v465
      %v472 = vadd.f32 %v457, %v465
      %v473 = vadd.f32 %v458, %v465
      %v474 = vadd.f32 %v459, %v465
      %v475 = vadd.f32 %v437, %v467
      %v476 = vadd.f32 %v438, %v468
      %v477 = vadd.f32 %v439, %v469
      %v478 = vadd.f32 %v440, %v470
      %v479 = vadd.f32 %v441, %v471
      %v480 = vadd.f32 %v442, %v472
      %v481 = vadd.f32 %v443, %v473
      %v482 = vadd.f32 %v444, %v474
      %v483 = vmax.f32 %v475, 0.0
      %v484 = vmax.f32 %v476, 0.0
      %v485 = vmax.f32 %v477, 0.0
      %v486 = vmax.f32 %v478, 0.0
      %v487 = vmax.f32 %v479, 0.0
      %v488 = vmax.f32 %v480, 0.0
      %v489 = vmax.f32 %v481, 0.0
      %v490 = vmax.f32 %v482, 0.0
      %491 = vst [vmem:[%s366] sm:$0xff] %v483
      %492 = vst [vmem:[%s366 + $0x8] sm:$0xff] %v484
      %493 = vst [vmem:[%s366 + $0x10] sm:$0xff] %v485
      %494 = vst [vmem:[%s366 + $0x18] sm:$0xff] %v486
      %495 = vst [vmem:[%s366 + $0x20] sm:$0xff] %v487
      %496 = vst [vmem:[%s366 + $0x28] sm:$0xff] %v488
      %497 = vst [vmem:[%s366 + $0x30] sm:$0xff] %v489
      %498 = vst [vmem:[%s366 + $0x38] sm:$0xff] %v490
      %s499 = smul.u32 8, %s23
      %p500 = scmp.lt.s32.totalorder %s22, 1
      %s501 = scalar_select %p500, %s22, 1
      %p502 = scmp.lt.s32.totalorder %s499, 7
      %s503 = scalar_select %p502, %s499, 7
      %s504 = smul.addr %s501, 8
      %s505 = sadd.s32 %s503, %s504
      %s506 = smul.addr %s505, 8
      %s507 = scalar_lea.vmem %s7, %s506
      // Predicated region
      $region49: #{bottleneck_forward.19} parent=47 // pred_check
        %p508 = pneg %p216
      $region50: #{bottleneck_forward.19} parent=47 // pred_check_branch
        %510 = sbr.rel (%p508) target = $region52
      $region51: #{bottleneck_forward.19} parent=47 // pred_region
        %s511 = smul.u32 8, %s23
      $region52: #{bottleneck_forward.19} parent=47 // pred_fallthru
        _
    $region48: #{bottleneck_forward.19} parent=5 // pred_fallthru
      _
    %p512 = scmp.le.s32.totalorder 2, %s13
    // Predicated region
    $region53: #{bottleneck_forward.19} parent=5 // pred_check
      %p513 = pneg %p512
    $region54: #{bottleneck_forward.19} parent=5 // pred_check_branch
      %515 = sbr.rel (%p513) target = $region56
    $region55: #{bottleneck_forward.19} parent=5 // pred_region
      %s516 = ssub.s32 %s13, 2
      // Predicated region
      $region57: #{bottleneck_forward.19} parent=55 // pred_check
        %p517 = pneg %p222
      $region58: #{bottleneck_forward.19} parent=55 // pred_check_branch
        %519 = sbr.rel (%p517) target = $region60
      $region59: #{bottleneck_forward.19} parent=55 // pred_region
        %s520 = smul.u32 8, %s25
        %p521 = scmp.lt.s32.totalorder %s24, 1
        %s522 = scalar_select %p521, %s24, 1
        %p523 = scmp.lt.s32.totalorder %s520, 7
        %s524 = scalar_select %p523, %s520, 7
        %s525 = smul.addr %s522, 8
        %s526 = sadd.s32 %s524, %s525
        %s527 = smul.addr %s526, 8
        %s528 = scalar_lea.vmem %s7, %s527
      $region60: #{bottleneck_forward.19} parent=55 // pred_fallthru
        _
    $region56: #{bottleneck_forward.19} parent=5 // pred_fallthru
      _
  $region6: #{bottleneck_forward.19} parent=0 // loop_footer
    %s17 = sadd.s32 1, %s13
  $region7: #{bottleneck_forward.19} parent=0 // loop_footer_branch
    %12 = sbr.rel target = $region3
  $region8: #{bottleneck_forward.19} parent=0 // loop_exit
    _

</llo_original>
